<compile_context>
chip_gen: v5e
topology: v5e:2x2
jax: 0.10.0
libtpu: 0.0.40
codegen_flags: <defaults>
</compile_context>

<pallas_src>
import functools
import math

import jax
import jax.numpy as jnp
import numpy as np
from jax.experimental import pallas as pl
from jax.experimental.pallas import tpu as pltpu

_RESEED_EVERY = 8  # re-seed sin/cos recurrence every 8 ranks to bound fp error


def _posenc_kernel(x_ref, o_ref, *, max_rank, length, d):
    # x_ref: [tm, d]   o_ref: [tm, 2 * max_rank * d]  (lane-dense slab)
    tm = x_ref.shape[0]
    out_dt = o_ref.dtype

    def store(r, c, s):
        o_ref[:, (2 * r) * d:(2 * r + 1) * d] = c.astype(out_dt)
        o_ref[:, (2 * r + 1) * d:(2 * r + 2) * d] = s.astype(out_dt)

    # rank 0: cos(0) = 1, sin(0) = 0 -- pure constants, no transcendentals.
    store(0, jnp.ones((tm, d), jnp.float32), jnp.zeros((tm, d), jnp.float32))

    if max_rank == 1:
        return

    x = x_ref[...].astype(jnp.float32)

    # Rank 1 seeds the angle-addition recurrence; ranks >= 2 cost only
    # 4 mul + 2 add on the VALU (EUP slot freed), re-seeded periodically.
    # Note: for very large max_rank (dim >= 64) a lax.fori_loop over rank
    # groups would bound vreg live ranges; static unroll is fine at these dims.
    c1 = s1 = None
    c_prev = s_prev = None
    for r in range(1, max_rank):
        if r == 1:
            ang = x * jnp.float32(math.pi / length)
            c1 = jnp.cos(ang)
            s1 = jnp.sin(ang)
            c_r, s_r = c1, s1
        elif r % _RESEED_EVERY == 0:
            ang = x * jnp.float32(math.pi * r / length)  # periodic exact re-seed
            c_r = jnp.cos(ang)
            s_r = jnp.sin(ang)
        else:
            c_r = c_prev * c1 - s_prev * s1
            s_r = s_prev * c1 + c_prev * s1
        store(r, c_r, s_r)
        c_prev, s_prev = c_r, s_r


def _pick_row_tile(n, d_in, slab_w, in_itemsize, out_itemsize,
                   max_tile=512, vmem_budget_bytes=12 << 20):
    """Row tile: dtype-aware sublane multiple, VMEM-bounded (double-buffered
    input + output), and capped so the parallel grid keeps >= 2 steps when the
    batch allows (v7x TensorCore sharding)."""
    sub = {4: 8, 2: 16, 1: 32}.get(in_itemsize, 8)
    row_bytes = 2 * (d_in * in_itemsize + slab_w * out_itemsize)  # dbl-buffered
    tm = max(sub, (vmem_budget_bytes // row_bytes) // sub * sub)
    tm = min(tm, max_tile)
    n_sub = ((n + sub - 1) // sub) * sub
    if n_sub >= 2 * sub:  # keep at least 2 grid steps when possible
        tm = min(tm, max(sub, (n_sub // 2) // sub * sub))
    tm = min(tm, n_sub)
    return max(sub, (tm // sub) * sub)


def positional_encoder_pallas(x, *, dim, length=10, tm=None, out_dtype=None):
    """Pallas equivalent of PositionalEncoder(dim, length).forward(x).

    x: [N, *rest] -> output [N, dim, *rest]. `out_dtype` (e.g. bf16) can halve
    the dominant output HBM stream on write-bound chips; default keeps x.dtype."""
    assert dim % 2 == 0, "dim must be even for positional encoding for sin/cos"
    max_rank = dim // 2
    n = x.shape[0]
    rest = x.shape[1:]
    d = int(np.prod(rest)) if rest else 1
    slab_w = dim * d
    out_dtype = jnp.dtype(out_dtype) if out_dtype is not None else jnp.dtype(x.dtype)

    in_itemsize = jnp.dtype(x.dtype).itemsize
    out_itemsize = out_dtype.itemsize

    x2 = x.reshape(n, d)
    if tm is None:
        tm = _pick_row_tile(n, d, slab_w, in_itemsize, out_itemsize)

    # Pad awkward batch sizes up to a tile multiple (no silent giant block).
    n_pad = ((n + tm - 1) // tm) * tm
    if n_pad != n:
        x2 = jnp.pad(x2, ((0, n_pad - n), (0, 0)))

    kernel = functools.partial(_posenc_kernel, max_rank=max_rank,
                               length=float(length), d=d)

    # Cost model after the r==0 / recurrence changes.
    n_reseeds = sum(1 for r in range(2, max_rank) if r % _RESEED_EVERY == 0)
    n_seeds = (1 if max_rank > 1 else 0) + n_reseeds
    n_rec = max(0, (max_rank - 1) - n_seeds)

    out2 = pl.pallas_call(
        kernel,
        out_shape=jax.ShapeDtypeStruct((n_pad, slab_w), out_dtype),
        grid_spec=pltpu.PrefetchScalarGridSpec(
            num_scalar_prefetch=0,
            grid=(n_pad // tm,),
            in_specs=[pl.BlockSpec((tm, d), lambda i: (i, 0))],
            out_specs=pl.BlockSpec((tm, slab_w), lambda i: (i, 0)),
        ),
        compiler_params=pltpu.CompilerParams(
            dimension_semantics=("parallel",)),
        cost_estimate=pl.CostEstimate(
            flops=n * d * (n_seeds + 6 * n_rec),
            transcendentals=2 * n * d * n_seeds,
            bytes_accessed=n * d * in_itemsize + n * slab_w * out_itemsize,
        ),
    )(x2)

    if n_pad != n:
        out2 = out2[:n]
    return out2.reshape((n, dim) + rest)


def positional_encoder_ref(x, *, dim, length=10):
    """Pure-JAX reference matching the PyTorch module exactly."""
    max_rank = dim // 2
    parts = []
    for r in range(max_rank):
        ang = x / length * r * math.pi
        parts.append(jnp.stack([jnp.cos(ang), jnp.sin(ang)], axis=1))
    return jnp.concatenate(parts, axis=1)


if __name__ == "__main__":
    key = jax.random.PRNGKey(0)
    k1, k2 = jax.random.split(key)

    # Case A: lane-aligned trailing dim (D = 128), >= 2 parallel grid steps.
    DIM_A, LEN_A = 8, 10
    xa = jax.random.uniform(k1, (256, 128), jnp.float32, 0.0, float(LEN_A))
    ya = positional_encoder_pallas(xa, dim=DIM_A, length=LEN_A)
    jax.block_until_ready(ya)
    ya_ref = positional_encoder_ref(xa, dim=DIM_A, length=LEN_A)
    assert ya.shape == (256, DIM_A, 128), ya.shape
    assert jnp.allclose(ya, ya_ref, atol=1e-4, rtol=1e-4), \
        float(jnp.max(jnp.abs(ya - ya_ref)))

    # Case B: awkward batch (row padding), multi-dim rest, recurrence re-seed
    # (max_rank = 10 crosses the reseed boundary at rank 8).
    DIM_B, LEN_B = 20, 7
    xb = jax.random.uniform(k2, (50, 3, 5), jnp.float32, 0.0, float(LEN_B))
    yb = positional_encoder_pallas(xb, dim=DIM_B, length=LEN_B)
    jax.block_until_ready(yb)
    yb_ref = positional_encoder_ref(xb, dim=DIM_B, length=LEN_B)
    assert yb.shape == (50, DIM_B, 3, 5), yb.shape
    assert jnp.allclose(yb, yb_ref, atol=1e-4, rtol=1e-4), \
        float(jnp.max(jnp.abs(yb - yb_ref)))

    print("KERNEL_OK")
</pallas_src>

<mosaic_0001>
module attributes {stable_mosaic.version = 11 : i64} {
  func.func @_posenc_kernel(%arg0: i32, %arg1: memref<128x128xf32, #tpu.memory_space<vmem>>, %arg2: memref<128x1024xf32, #tpu.memory_space<vmem>>) attributes {dimension_semantics = [#tpu.dimension_semantics<parallel>], iteration_bounds = array<i64: 2>, scalar_prefetch = 0 : i64, scratch_operands = 0 : i64, tpu.core_type = #tpu.core_type<tc>, window_params = [{transform_indices = @transform_0, window_bounds = array<i64: 128, 128>}, {transform_indices = @transform_1, window_bounds = array<i64: 128, 1024>}]} {
    %cst = arith.constant 1.000000e+00 : f32
    %0 = vector.broadcast %cst : f32 to vector<128x128xf32>
    %cst_0 = arith.constant 0.000000e+00 : f32
    %1 = vector.broadcast %cst_0 : f32 to vector<128x128xf32>
    %c0 = arith.constant 0 : index
    %c0_1 = arith.constant 0 : index
    %2 = vector.load %arg2[%c0, %c0_1] : memref<128x1024xf32, #tpu.memory_space<vmem>>, vector<128x128xf32>
    tpu.vector_store %arg2[%c0, %c0_1], %0 {strides = array<i32>} : memref<128x1024xf32, #tpu.memory_space<vmem>>, vector<128x128xf32>,
    %c0_2 = arith.constant 0 : index
    %c128 = arith.constant 128 : index
    %3 = vector.load %arg2[%c0_2, %c128] : memref<128x1024xf32, #tpu.memory_space<vmem>>, vector<128x128xf32>
    tpu.vector_store %arg2[%c0_2, %c128], %1 {strides = array<i32>} : memref<128x1024xf32, #tpu.memory_space<vmem>>, vector<128x128xf32>,
    %c0_3 = arith.constant 0 : index
    %c0_4 = arith.constant 0 : index
    %4 = vector.load %arg1[%c0_3, %c0_4] : memref<128x128xf32, #tpu.memory_space<vmem>>, vector<128x128xf32>
    %cst_5 = arith.constant 0.314159274 : f32
    %5 = vector.broadcast %cst_5 : f32 to vector<128x128xf32>
    %6 = arith.mulf %4, %5 : vector<128x128xf32>
    %7 = math.cos %6 : vector<128x128xf32>
    %8 = math.sin %6 : vector<128x128xf32>
    %c0_6 = arith.constant 0 : index
    %c256 = arith.constant 256 : index
    %9 = vector.load %arg2[%c0_6, %c256] : memref<128x1024xf32, #tpu.memory_space<vmem>>, vector<128x128xf32>
    tpu.vector_store %arg2[%c0_6, %c256], %7 {strides = array<i32>} : memref<128x1024xf32, #tpu.memory_space<vmem>>, vector<128x128xf32>,
    %c0_7 = arith.constant 0 : index
    %c384 = arith.constant 384 : index
    %10 = vector.load %arg2[%c0_7, %c384] : memref<128x1024xf32, #tpu.memory_space<vmem>>, vector<128x128xf32>
    tpu.vector_store %arg2[%c0_7, %c384], %8 {strides = array<i32>} : memref<128x1024xf32, #tpu.memory_space<vmem>>, vector<128x128xf32>,
    %11 = arith.mulf %7, %7 : vector<128x128xf32>
    %12 = arith.mulf %8, %8 : vector<128x128xf32>
    %13 = arith.subf %11, %12 : vector<128x128xf32>
    %14 = arith.mulf %8, %7 : vector<128x128xf32>
    %15 = arith.mulf %7, %8 : vector<128x128xf32>
    %16 = arith.addf %14, %15 : vector<128x128xf32>
    %c0_8 = arith.constant 0 : index
    %c512 = arith.constant 512 : index
    %17 = vector.load %arg2[%c0_8, %c512] : memref<128x1024xf32, #tpu.memory_space<vmem>>, vector<128x128xf32>
    tpu.vector_store %arg2[%c0_8, %c512], %13 {strides = array<i32>} : memref<128x1024xf32, #tpu.memory_space<vmem>>, vector<128x128xf32>,
    %c0_9 = arith.constant 0 : index
    %c640 = arith.constant 640 : index
    %18 = vector.load %arg2[%c0_9, %c640] : memref<128x1024xf32, #tpu.memory_space<vmem>>, vector<128x128xf32>
    tpu.vector_store %arg2[%c0_9, %c640], %16 {strides = array<i32>} : memref<128x1024xf32, #tpu.memory_space<vmem>>, vector<128x128xf32>,
    %19 = arith.mulf %13, %7 : vector<128x128xf32>
    %20 = arith.mulf %16, %8 : vector<128x128xf32>
    %21 = arith.subf %19, %20 : vector<128x128xf32>
    %22 = arith.mulf %16, %7 : vector<128x128xf32>
    %23 = arith.mulf %13, %8 : vector<128x128xf32>
    %24 = arith.addf %22, %23 : vector<128x128xf32>
    %c0_10 = arith.constant 0 : index
    %c768 = arith.constant 768 : index
    %25 = vector.load %arg2[%c0_10, %c768] : memref<128x1024xf32, #tpu.memory_space<vmem>>, vector<128x128xf32>
    tpu.vector_store %arg2[%c0_10, %c768], %21 {strides = array<i32>} : memref<128x1024xf32, #tpu.memory_space<vmem>>, vector<128x128xf32>,
    %c0_11 = arith.constant 0 : index
    %c896 = arith.constant 896 : index
    %26 = vector.load %arg2[%c0_11, %c896] : memref<128x1024xf32, #tpu.memory_space<vmem>>, vector<128x128xf32>
    tpu.vector_store %arg2[%c0_11, %c896], %24 {strides = array<i32>} : memref<128x1024xf32, #tpu.memory_space<vmem>>, vector<128x128xf32>,
    return
  }
  func.func @transform_0(%arg0: i32) -> (i32, i32) {
    %c0_i32 = arith.constant 0 : i32
    %c0_i32_0 = arith.constant 0 : i32
    return %arg0, %c0_i32 : i32, i32
  }
  func.func @transform_1(%arg0: i32) -> (i32, i32) {
    %c0_i32 = arith.constant 0 : i32
    %c0_i32_0 = arith.constant 0 : i32
    return %arg0, %c0_i32 : i32, i32
  }
}

</mosaic_0001>

<llo_original>
// kernel: tpu_custom_call.1
$region0: #{tpu_custom_call.1}
  #allocation0 [shape = 'u32[]', space=smem, size = 0x4, offset = 0x4, fixed_abs, tag = 'smem constant byte address 0x4 - core index']
  #allocation1 [shape = 'u32[72,128]{1,0:T(1,128)}', space=vmem, size = 0x9000, scoped, tag = 'internal scratch']
  %s0 = inlined_call_operand.hbm [shape: f32[256,128], index: 0, kind: input, shape index: {}]
  %s1 = inlined_call_operand.hbm [shape: f32[256,1024], index: 1, kind: output, shape index: {}]
  %s2 = sld [smem:[#allocation0]]
  $region41: #{tpu_custom_call.1} parent=0
    _
  %s4 = ssub.s32 1, %s2
  %s5 = scalar_select 0, %s4, %s2
  $region1: #{tpu_custom_call.1} parent=0
    #allocation2 [shape = 'u8[131072]{0}', space=vmem, size = 0x20000, scoped, tag = 'input window, operand 0']
    #allocation3 [shape = 's32[2]{0}', space=sflag, size = 0x8, scoped, tag = 'scoped memory for tpu_custom_call.1']
    #allocation4 [shape = 's32[2]{0}', space=sflag, size = 0x8, scoped, tag = 'scoped memory for tpu_custom_call.1']
    #allocation5 [shape = 'u8[1048576]{0}', space=vmem, size = 0x100000, scoped, tag = 'output window, operand 0']
    %6 = vsyncpa [#allocation3], 0
    %s7 = scalar_lea.sflag [#allocation3], 1
    %8 = vsyncpa %s7, 0
    %9 = vsyncpa [#allocation4], 0
    %s10 = scalar_lea.sflag [#allocation4], 1
    %11 = vsyncpa %s10, 0
    loop: start=0, step=1, limit=4
    $region2: #{tpu_custom_call.1} parent=1 // loop_pre_header
      _
    $region3: #{tpu_custom_call.1} parent=1 // loop_header
      %s13 = sphi 0, %s17
      %p14 = scmp.ge.s32.totalorder %s13, 4
      %s23 = sphi 0, %s25
      %s26 = sphi 0, %s23
      %s27 = sphi 0, %s26
      %s43 = sphi 0, %s27
      %s49 = sphi 0, %s51
      %s52 = sphi 0, %s49
      %s53 = sphi 0, %s52
      %s69 = sphi 0, %s53
    $region4: #{tpu_custom_call.1} parent=1 // loop_header_branch
      %16 = sbr.rel (%p14) target = $region8
    $region5: #{tpu_custom_call.1} parent=1 // loop_body
      %s18 = ssub.s32 %s13, 1
      %s19 = ssub.s32 %s13, 2
      %s20 = sadd.s32 %s13, 1
      %s21 = ssub.s32 %s13, %s20
      %p22 = scmp.eq.s32.totalorder %s21, 0
      %s24 = sadd.s32 %s23, 1
      %s25 = scalar_select %p22, %s23, %s24
      %p28 = pneg %p22
      %p29 = scmp.eq.s32.totalorder %s13, 1
      %p30 = por %p28, %p29
      %p31 = scmp.ne.s32.totalorder %s23, %s26
      %p32 = scmp.eq.s32.totalorder %s13, 0
      %p33 = por %p31, %p32
      %p34 = scmp.ne.s32.totalorder %s23, %s26
      %p35 = scmp.eq.s32.totalorder %s18, 1
      %p36 = por %p34, %p35
      %p37 = scmp.ne.s32.totalorder %s26, %s27
      %p38 = scmp.eq.s32.totalorder %s18, 0
      %p39 = por %p37, %p38
      %p40 = scmp.ne.s32.totalorder %s26, %s27
      %p41 = scmp.eq.s32.totalorder %s19, 1
      %p42 = por %p40, %p41
      %p44 = scmp.ne.s32.totalorder %s27, %s43
      %p45 = scmp.eq.s32.totalorder %s19, 0
      %p46 = por %p44, %p45
      %s47 = ssub.s32 %s13, %s20
      %p48 = scmp.eq.s32.totalorder %s47, 0
      %s50 = sadd.s32 %s49, 1
      %s51 = scalar_select %p48, %s49, %s50
      %p54 = pneg %p48
      %p55 = scmp.eq.s32.totalorder %s13, 1
      %p56 = por %p54, %p55
      %p57 = scmp.ne.s32.totalorder %s49, %s52
      %p58 = scmp.eq.s32.totalorder %s13, 0
      %p59 = por %p57, %p58
      %p60 = scmp.ne.s32.totalorder %s49, %s52
      %p61 = scmp.eq.s32.totalorder %s18, 1
      %p62 = por %p60, %p61
      %p63 = scmp.ne.s32.totalorder %s52, %s53
      %p64 = scmp.eq.s32.totalorder %s18, 0
      %p65 = por %p63, %p64
      %p66 = scmp.ne.s32.totalorder %s52, %s53
      %p67 = scmp.eq.s32.totalorder %s19, 1
      %p68 = por %p66, %p67
      %p70 = scmp.ne.s32.totalorder %s53, %s69
      %p71 = scmp.eq.s32.totalorder %s19, 0
      %p72 = por %p70, %p71
      %p73 = scmp.le.s32.totalorder 1, %s13
      %p74 = scmp.lt.s32.totalorder %s13, 3
      %p75 = pnand %p73, %p74
      %p76 = pneg %p75
      // Predicated region
      $region9: #{tpu_custom_call.1} parent=5 // pred_check
        _
      $region10: #{tpu_custom_call.1} parent=5 // pred_check_branch
        %78 = sbr.rel (%p75) target = $region12
      $region11: #{tpu_custom_call.1} parent=5 // pred_region
        %s79 = ssub.s32 %s13, 1
      $region12: #{tpu_custom_call.1} parent=5 // pred_fallthru
        _
      %p80 = scmp.lt.s32.totalorder %s13, 2
      // Predicated region
      $region13: #{tpu_custom_call.1} parent=5 // pred_check
        %p81 = pneg %p80
      $region14: #{tpu_custom_call.1} parent=5 // pred_check_branch
        %83 = sbr.rel (%p81) target = $region16
      $region15: #{tpu_custom_call.1} parent=5 // pred_region
        // Predicated region
        $region17: #{tpu_custom_call.1} parent=15 // pred_check
          %p84 = pneg %p33
        $region18: #{tpu_custom_call.1} parent=15 // pred_check_branch
          %86 = sbr.rel (%p84) target = $region20
        $region19: #{tpu_custom_call.1} parent=15 // pred_region
          %s87 = sand.u32 %s23, 1
          %s88 = scalar_lea.sflag [#allocation3], %s87
          %s89 = sand.u32 %s23, 1
          %s90 = smul.addr %s89, 128
          %s91 = scalar_lea.vmem [#allocation2], %s90
          %s92 = smul.u32 16, %s13
          %94 = vsyncadd %s88, 0
          %s95 = smul.addr %s92, 8
          %s96 = scalar_lea.hbm %s0, %s95
          %s97 = sshll.u32 %s96, 4
          %s98 = int_to_ptr.hbm [resolvable:$true] %s97
          %s99 = sshll.u32 %s91, 4
          %s100 = int_to_ptr.vmem [resolvable:$true] %s99
          %105 = dma.hbm_to_vmem [thread:$0]  %s98, 2048, %s100, %s88, 128, 128, 8
        $region20: #{tpu_custom_call.1} parent=15 // pred_fallthru
          _
      $region16: #{tpu_custom_call.1} parent=5 // pred_fallthru
        _
      %p106 = scmp.le.s32.totalorder 1, %s13
      %p107 = scmp.lt.s32.totalorder %s13, 3
      %p108 = pnand %p106, %p107
      %p109 = pneg %p108
      // Predicated region
      $region21: #{tpu_custom_call.1} parent=5 // pred_check
        _
      $region22: #{tpu_custom_call.1} parent=5 // pred_check_branch
        %111 = sbr.rel (%p108) target = $region24
      $region23: #{tpu_custom_call.1} parent=5 // pred_region
        %s112 = ssub.s32 %s13, 1
        %s113 = sand.u32 %s26, 1
        %s114 = scalar_lea.sflag [#allocation3], %s113
        %s115 = sand.u32 %s26, 1
        %s116 = smul.addr %s115, 128
        %s117 = scalar_lea.vmem [#allocation2], %s116
        // Predicated region
        $region25: #{tpu_custom_call.1} parent=23 // pred_check
          %p118 = pneg %p39
        $region26: #{tpu_custom_call.1} parent=23 // pred_check_branch
          %120 = sbr.rel (%p118) target = $region28
        $region27: #{tpu_custom_call.1} parent=23 // pred_region
          %122 = dma.done %s114, 2048
        $region28: #{tpu_custom_call.1} parent=23 // pred_fallthru
          _
        %s123 = sand.u32 %s26, 1
        %s124 = scalar_lea.sflag [#allocation3], %s123
        %s125 = sand.u32 %s26, 1
        %s126 = smul.addr %s125, 128
        %s127 = scalar_lea.vmem [#allocation2], %s126
        %p128 = pneg %p39
        %p129 = pneg %p36
        %p130 = pneg %p65
        %p131 = pneg %p62
        %s132 = sand.u32 %s52, 1
        %s133 = scalar_lea.sflag [#allocation4], %s132
        %s134 = sand.u32 %s52, 1
        %s135 = smul.addr %s134, 1024
        %s136 = scalar_lea.vmem [#allocation5], %s135
        %s137 = smul.u32 16, %s18
        %s138 = smul.u32 16, %s18
        %139 = vst [vmem:[%s136] sm:$0xff] 1.0
        %140 = vst [vmem:[%s136 + $0x40] sm:$0xff] 1.0
        %141 = vst [vmem:[%s136 + $0x80] sm:$0xff] 1.0
        %142 = vst [vmem:[%s136 + $0xc0] sm:$0xff] 1.0
        %143 = vst [vmem:[%s136 + $0x100] sm:$0xff] 1.0
        %144 = vst [vmem:[%s136 + $0x140] sm:$0xff] 1.0
        %145 = vst [vmem:[%s136 + $0x180] sm:$0xff] 1.0
        %146 = vst [vmem:[%s136 + $0x1c0] sm:$0xff] 1.0
        %147 = vst [vmem:[%s136 + $0x200] sm:$0xff] 1.0
        %148 = vst [vmem:[%s136 + $0x240] sm:$0xff] 1.0
        %149 = vst [vmem:[%s136 + $0x280] sm:$0xff] 1.0
        %150 = vst [vmem:[%s136 + $0x2c0] sm:$0xff] 1.0
        %151 = vst [vmem:[%s136 + $0x300] sm:$0xff] 1.0
        %152 = vst [vmem:[%s136 + $0x340] sm:$0xff] 1.0
        %153 = vst [vmem:[%s136 + $0x380] sm:$0xff] 1.0
        %154 = vst [vmem:[%s136 + $0x3c0] sm:$0xff] 1.0
        %155 = vst [vmem:[%s136 + $0x8] sm:$0xff] 0.0
        %156 = vst [vmem:[%s136 + $0x48] sm:$0xff] 0.0
        %157 = vst [vmem:[%s136 + $0x88] sm:$0xff] 0.0
        %158 = vst [vmem:[%s136 + $0xc8] sm:$0xff] 0.0
        %159 = vst [vmem:[%s136 + $0x108] sm:$0xff] 0.0
        %160 = vst [vmem:[%s136 + $0x148] sm:$0xff] 0.0
        %161 = vst [vmem:[%s136 + $0x188] sm:$0xff] 0.0
        %162 = vst [vmem:[%s136 + $0x1c8] sm:$0xff] 0.0
        %163 = vst [vmem:[%s136 + $0x208] sm:$0xff] 0.0
        %164 = vst [vmem:[%s136 + $0x248] sm:$0xff] 0.0
        %165 = vst [vmem:[%s136 + $0x288] sm:$0xff] 0.0
        %166 = vst [vmem:[%s136 + $0x2c8] sm:$0xff] 0.0
        %167 = vst [vmem:[%s136 + $0x308] sm:$0xff] 0.0
        %168 = vst [vmem:[%s136 + $0x348] sm:$0xff] 0.0
        %169 = vst [vmem:[%s136 + $0x388] sm:$0xff] 0.0
        %170 = vst [vmem:[%s136 + $0x3c8] sm:$0xff] 0.0
        %v171 = vld [vmem:[%s117] sm:$0xff]
        %v172 = vld [vmem:[%s117 + $0x8] sm:$0xff]
        %v173 = vld [vmem:[%s117 + $0x10] sm:$0xff]
        %v174 = vld [vmem:[%s117 + $0x18] sm:$0xff]
        %v175 = vld [vmem:[%s117 + $0x20] sm:$0xff]
        %v176 = vld [vmem:[%s117 + $0x28] sm:$0xff]
        %v177 = vld [vmem:[%s117 + $0x30] sm:$0xff]
        %v178 = vld [vmem:[%s117 + $0x38] sm:$0xff]
        %v179 = vld [vmem:[%s117 + $0x40] sm:$0xff]
        %v180 = vld [vmem:[%s117 + $0x48] sm:$0xff]
        %v181 = vld [vmem:[%s117 + $0x50] sm:$0xff]
        %v182 = vld [vmem:[%s117 + $0x58] sm:$0xff]
        %v183 = vld [vmem:[%s117 + $0x60] sm:$0xff]
        %v184 = vld [vmem:[%s117 + $0x68] sm:$0xff]
        %v185 = vld [vmem:[%s117 + $0x70] sm:$0xff]
        %v186 = vld [vmem:[%s117 + $0x78] sm:$0xff]
        %v187 = vmul.f32 %v171, 0.31415927
        %v188 = vmul.f32 %v172, 0.31415927
        %v189 = vmul.f32 %v173, 0.31415927
        %v190 = vmul.f32 %v174, 0.31415927
        %v191 = vmul.f32 %v175, 0.31415927
        %v192 = vmul.f32 %v176, 0.31415927
        %v193 = vmul.f32 %v177, 0.31415927
        %v194 = vmul.f32 %v178, 0.31415927
        %v195 = vmul.f32 %v179, 0.31415927
        %v196 = vmul.f32 %v180, 0.31415927
        %v197 = vmul.f32 %v181, 0.31415927
        %v198 = vmul.f32 %v182, 0.31415927
        %v199 = vmul.f32 %v183, 0.31415927
        %v200 = vmul.f32 %v184, 0.31415927
        %v201 = vmul.f32 %v185, 0.31415927
        %v202 = vmul.f32 %v186, 0.31415927
        %v203 = vand.u32 2147483647, %v187
        %vm204 = vcmp.le.f32.partialorder %v203, 0.7853982
        %vm205 = vcmp.lt.s32.totalorder %v187, 0
        %v206 = vand.u32 %v187, 2139095040
        %v207 = vshrl.u32 %v206, 23
        %v208 = vsub.s32 %v207, 127
        %v209 = vand.u32 2147483647, %v187
        %v210 = vand.u32 %v209, 8388607
        %v211 = vor.u32 %v210, 8388608
        %v212 = vsub.s32 0, %v211
        %v213 = vadd.s32 %v208, 1
        %vm214 = vcmp.gt.s32.totalorder %v213, 0
        %v215 = vsel %vm214, %v213, 0
        %v216 = vshrl.u32 %v215, 5
        %v217 = vand.u32 %v215, 31
        %v218 = vsub.s32 32, %v217
        %v219 = vshrl.u32 683565275, %v218
        %v220 = vshll.u32 683565275, %v217
        %v221 = vshrl.u32 2475754826, %v218
        %v222 = vor.u32 %v220, %v221
        %v223 = vshll.u32 2475754826, %v217
        %v224 = vshrl.u32 2131351028, %v218
        %v225 = vor.u32 %v223, %v224
        %v226 = vshll.u32 2131351028, %v217
        %v227 = vshrl.u32 2102212464, %v218
        %v228 = vor.u32 %v226, %v227
        %v229 = vshll.u32 2102212464, %v217
        %v230 = vshrl.u32 920167782, %v218
        %v231 = vor.u32 %v229, %v230
        %v232 = vshll.u32 920167782, %v217
        %v233 = vshrl.u32 1326507024, %v218
        %v234 = vor.u32 %v232, %v233
        %vm235 = vcmp.lt.s32.totalorder %v216, 1
        %vm236 = vcmp.lt.s32.totalorder %v216, 2
        %vm237 = vcmp.lt.s32.totalorder %v216, 3
        %vm238 = vcmp.lt.s32.totalorder %v216, 4
        %v239 = vsel %vm235, %v219, %v222
        %v240 = vsel %vm238, %v228, 2102212464
        %v241 = vsel %vm237, %v225, %v240
        %v242 = vsel %vm236, %v239, %v241
        %v243 = vsel %vm235, %v222, %v225
        %v244 = vsel %vm238, %v231, 920167782
        %v245 = vsel %vm237, %v228, %v244
        %v246 = vsel %vm236, %v243, %v245
        %v247 = vsel %vm235, %v225, %v228
        %v248 = vsel %vm238, %v234, 1326507024
        %v249 = vsel %vm237, %v231, %v248
        %v250 = vsel %vm236, %v247, %v249
        %v251 = vshll.u32 %v211, 8
        %v252 = vand.u32 %v251, 65535
        %v253 = vshrl.u32 %v251, 16
        %v254 = vand.u32 %v250, 65535
        %v255 = vshrl.u32 %v250, 16
        %v256 = vmul.u32 %v252, %v254
        %v257 = vmul.u32 %v252, %v255
        %v258 = vmul.u32 %v253, %v254
        %v259 = vmul.u32 %v253, %v255
        %v260 = vshll.u32 %v257, 16
        %v261 = vshrl.u32 %v257, 16
        %v262 = vshll.u32 %v258, 16
        %v263 = vshrl.u32 %v258, 16
        %vm264 = vc.u32 %v256, %v260
        %v265 = vsel %vm264, 1, 0
        %v266 = vadd.s32 %v256, %v260
        %v267 = vadd.s32 %v259, %v265
        %vm268 = vc.u32 %v266, %v262
        %v269 = vsel %vm268, 1, 0
        %v270 = vadd.s32 %v266, %v262
        %v271 = vadd.s32 %v267, %v269
        %v272 = vadd.s32 %v271, %v261
        %v273 = vadd.s32 %v272, %v263
        %v274 = vand.u32 %v251, 65535
        %v275 = vshrl.u32 %v251, 16
        %v276 = vand.u32 %v246, 65535
        %v277 = vshrl.u32 %v246, 16
        %v278 = vmul.u32 %v274, %v276
        %v279 = vmul.u32 %v274, %v277
        %v280 = vmul.u32 %v275, %v276
        %v281 = vmul.u32 %v275, %v277
        %v282 = vshll.u32 %v279, 16
        %v283 = vshrl.u32 %v279, 16
        %v284 = vshll.u32 %v280, 16
        %v285 = vshrl.u32 %v280, 16
        %vm286 = vc.u32 %v278, %v282
        %v287 = vsel %vm286, 1, 0
        %v288 = vadd.s32 %v278, %v282
        %v289 = vadd.s32 %v281, %v287
        %vm290 = vc.u32 %v288, %v284
        %v291 = vsel %vm290, 1, 0
        %v292 = vadd.s32 %v288, %v284
        %v293 = vadd.s32 %v289, %v291
        %v294 = vadd.s32 %v293, %v283
        %v295 = vadd.s32 %v294, %v285
        %v296 = vmul.u32 %v251, %v242
        %v297 = vadd.s32 %v273, %v292
        %vm298 = vc.u32 %v273, %v292
        %v299 = vadd.s32 %v295, 1
        %v300 = vsel %vm298, %v299, %v295
        %v301 = vadd.s32 %v296, %v300
        %v302 = vadd.s32 %v301, 536870912
        %v303 = vshrl.u32 %v302, 30
        %v304 = vshll.u32 %v303, 30
        %v305 = vsub.s32 %v301, %v304
        %vm306 = vcmp.lt.s32.totalorder %v305, 0
        %v307 = vsub.s32 0, %v305
        %v308 = vsel %vm306, %v307, %v305
        %v309 = vclz %v308
        %v310 = vsub.s32 %v309, 2
        %vm311 = vcmp.gt.s32.totalorder 0, %v310
        %v312 = vsel %vm311, 0, %v310
        %v313 = vsub.s32 32, %v312
        %v314 = vshll.u32 %v305, %v312
        %v315 = vshrl.u32 %v297, %v313
        %v316 = vor.u32 %v314, %v315
        %v317 = vsub.s32 4294967266, %v312
        %v318 = vadd.s32 %v317, 127
        %v319 = vshll.u32 %v318, 23
        %v320 = vor.u32 4788187, %v319
        %v321 = vand.u32 2147483647, %v320
        %v323 = vcvt.s32.f32 %v316
        %v324 = vmul.f32 %v323, %v321
        %v325 = vxor.u32 %v324, 2147483648
        %v326 = vsel %vm205, %v325, %v324
        %v327 = vsub.s32 4, %v303
        %v328 = vsel %vm205, %v327, %v303
        %v329 = vsel %vm204, %v187, %v326
        %v330 = vsel %vm204, 0, %v328
        %v331 = vmul.f32 %v329, %v329
        %v332 = vmul.f32 %v331, -0.001358992
        %v333 = vadd.f32 %v332, 0.041655596
        %v334 = vmul.f32 %v331, %v333
        %v335 = vadd.f32 %v334, -0.4999988
        %v336 = vmul.f32 %v331, %v335
        %v337 = vadd.f32 1.0, %v336
        %v338 = vmul.f32 %v329, %v329
        %v339 = vmul.f32 %v338, -0.00019511016
        %v340 = vadd.f32 %v339, 0.008332121
        %v341 = vmul.f32 %v338, %v340
        %v342 = vadd.f32 %v341, -0.16666654
        %v343 = vmul.f32 %v338, %v342
        %v344 = vadd.f32 %v343, 1.0
        %v345 = vmul.f32 %v344, %v329
        %vm346 = vweird.f32 %v187
        %v347 = vand.u32 %v330, 3
        %vm348 = vcmp.lt.s32.totalorder %v347, 2
        %vm349 = vcmp.eq.s32.totalorder %v347, 0
        %v350 = vxor.u32 %v345, 2147483648
        %v351 = vsel %vm349, %v337, %v350
        %vm352 = vcmp.eq.s32.totalorder %v347, 2
        %v353 = vxor.u32 %v337, 2147483648
        %v354 = vsel %vm352, %v353, %v345
        %v355 = vsel %vm348, %v351, %v354
        %v356 = vsel %vm346, nan, %v355
        %v357 = vand.u32 2147483647, %v188
        %vm358 = vcmp.le.f32.partialorder %v357, 0.7853982
        %vm359 = vcmp.lt.s32.totalorder %v188, 0
        %v360 = vand.u32 %v188, 2139095040
        %v361 = vshrl.u32 %v360, 23
        %v362 = vsub.s32 %v361, 127
        %v363 = vand.u32 2147483647, %v188
        %v364 = vand.u32 %v363, 8388607
        %v365 = vor.u32 %v364, 8388608
        %v366 = vsub.s32 0, %v365
        %v367 = vadd.s32 %v362, 1
        %vm368 = vcmp.gt.s32.totalorder %v367, 0
        %v369 = vsel %vm368, %v367, 0
        %v370 = vshrl.u32 %v369, 5
        %v371 = vand.u32 %v369, 31
        %v372 = vsub.s32 32, %v371
        %v373 = vshrl.u32 683565275, %v372
        %v374 = vshll.u32 683565275, %v371
        %v375 = vshrl.u32 2475754826, %v372
        %v376 = vor.u32 %v374, %v375
        %v377 = vshll.u32 2475754826, %v371
        %v378 = vshrl.u32 2131351028, %v372
        %v379 = vor.u32 %v377, %v378
        %v380 = vshll.u32 2131351028, %v371
        %v381 = vshrl.u32 2102212464, %v372
        %v382 = vor.u32 %v380, %v381
        %v383 = vshll.u32 2102212464, %v371
        %v384 = vshrl.u32 920167782, %v372
        %v385 = vor.u32 %v383, %v384
        %v386 = vshll.u32 920167782, %v371
        %v387 = vshrl.u32 1326507024, %v372
        %v388 = vor.u32 %v386, %v387
        %vm389 = vcmp.lt.s32.totalorder %v370, 1
        %vm390 = vcmp.lt.s32.totalorder %v370, 2
        %vm391 = vcmp.lt.s32.totalorder %v370, 3
        %vm392 = vcmp.lt.s32.totalorder %v370, 4
        %v393 = vsel %vm389, %v373, %v376
        %v394 = vsel %vm392, %v382, 2102212464
        %v395 = vsel %vm391, %v379, %v394
        %v396 = vsel %vm390, %v393, %v395
        %v397 = vsel %vm389, %v376, %v379
        %v398 = vsel %vm392, %v385, 920167782
        %v399 = vsel %vm391, %v382, %v398
        %v400 = vsel %vm390, %v397, %v399
        %v401 = vsel %vm389, %v379, %v382
        %v402 = vsel %vm392, %v388, 1326507024
        %v403 = vsel %vm391, %v385, %v402
        %v404 = vsel %vm390, %v401, %v403
        %v405 = vshll.u32 %v365, 8
        %v406 = vand.u32 %v405, 65535
        %v407 = vshrl.u32 %v405, 16
        %v408 = vand.u32 %v404, 65535
        %v409 = vshrl.u32 %v404, 16
        %v410 = vmul.u32 %v406, %v408
        %v411 = vmul.u32 %v406, %v409
        %v412 = vmul.u32 %v407, %v408
        %v413 = vmul.u32 %v407, %v409
        %v414 = vshll.u32 %v411, 16
        %v415 = vshrl.u32 %v411, 16
        %v416 = vshll.u32 %v412, 16
        %v417 = vshrl.u32 %v412, 16
        %vm418 = vc.u32 %v410, %v414
        %v419 = vsel %vm418, 1, 0
        %v420 = vadd.s32 %v410, %v414
        %v421 = vadd.s32 %v413, %v419
        %vm422 = vc.u32 %v420, %v416
        %v423 = vsel %vm422, 1, 0
        %v424 = vadd.s32 %v420, %v416
        %v425 = vadd.s32 %v421, %v423
        %v426 = vadd.s32 %v425, %v415
        %v427 = vadd.s32 %v426, %v417
        %v428 = vand.u32 %v405, 65535
        %v429 = vshrl.u32 %v405, 16
        %v430 = vand.u32 %v400, 65535
        %v431 = vshrl.u32 %v400, 16
        %v432 = vmul.u32 %v428, %v430
        %v433 = vmul.u32 %v428, %v431
        %v434 = vmul.u32 %v429, %v430
        %v435 = vmul.u32 %v429, %v431
        %v436 = vshll.u32 %v433, 16
        %v437 = vshrl.u32 %v433, 16
        %v438 = vshll.u32 %v434, 16
        %v439 = vshrl.u32 %v434, 16
        %vm440 = vc.u32 %v432, %v436
        %v441 = vsel %vm440, 1, 0
        %v442 = vadd.s32 %v432, %v436
        %v443 = vadd.s32 %v435, %v441
        %vm444 = vc.u32 %v442, %v438
        %v445 = vsel %vm444, 1, 0
        %v446 = vadd.s32 %v442, %v438
        %v447 = vadd.s32 %v443, %v445
        %v448 = vadd.s32 %v447, %v437
        %v449 = vadd.s32 %v448, %v439
        %v450 = vmul.u32 %v405, %v396
        %v451 = vadd.s32 %v427, %v446
        %vm452 = vc.u32 %v427, %v446
        %v453 = vadd.s32 %v449, 1
        %v454 = vsel %vm452, %v453, %v449
        %v455 = vadd.s32 %v450, %v454
        %v456 = vadd.s32 %v455, 536870912
        %v457 = vshrl.u32 %v456, 30
        %v458 = vshll.u32 %v457, 30
        %v459 = vsub.s32 %v455, %v458
        %vm460 = vcmp.lt.s32.totalorder %v459, 0
        %v461 = vsub.s32 0, %v459
        %v462 = vsel %vm460, %v461, %v459
        %v463 = vclz %v462
        %v464 = vsub.s32 %v463, 2
        %vm465 = vcmp.gt.s32.totalorder 0, %v464
        %v466 = vsel %vm465, 0, %v464
        %v467 = vsub.s32 32, %v466
        %v468 = vshll.u32 %v459, %v466
        %v469 = vshrl.u32 %v451, %v467
        %v470 = vor.u32 %v468, %v469
        %v471 = vsub.s32 4294967266, %v466
        %v472 = vadd.s32 %v471, 127
        %v473 = vshll.u32 %v472, 23
        %v474 = vor.u32 4788187, %v473
        %v475 = vand.u32 2147483647, %v474
        %v477 = vcvt.s32.f32 %v470
        %v478 = vmul.f32 %v477, %v475
        %v479 = vxor.u32 %v478, 2147483648
        %v480 = vsel %vm359, %v479, %v478
        %v481 = vsub.s32 4, %v457
        %v482 = vsel %vm359, %v481, %v457
        %v483 = vsel %vm358, %v188, %v480
        %v484 = vsel %vm358, 0, %v482
        %v485 = vmul.f32 %v483, %v483
        %v486 = vmul.f32 %v485, -0.001358992
        %v487 = vadd.f32 %v486, 0.041655596
        %v488 = vmul.f32 %v485, %v487
        %v489 = vadd.f32 %v488, -0.4999988
        %v490 = vmul.f32 %v485, %v489
        %v491 = vadd.f32 1.0, %v490
        %v492 = vmul.f32 %v483, %v483
        %v493 = vmul.f32 %v492, -0.00019511016
        %v494 = vadd.f32 %v493, 0.008332121
        %v495 = vmul.f32 %v492, %v494
        %v496 = vadd.f32 %v495, -0.16666654
        %v497 = vmul.f32 %v492, %v496
        %v498 = vadd.f32 %v497, 1.0
        %v499 = vmul.f32 %v498, %v483
        %vm500 = vweird.f32 %v188
        %v501 = vand.u32 %v484, 3
        %vm502 = vcmp.lt.s32.totalorder %v501, 2
        %vm503 = vcmp.eq.s32.totalorder %v501, 0
        %v504 = vxor.u32 %v499, 2147483648
        %v505 = vsel %vm503, %v491, %v504
        %vm506 = vcmp.eq.s32.totalorder %v501, 2
        %v507 = vxor.u32 %v491, 2147483648
        %v508 = vsel %vm506, %v507, %v499
        %v509 = vsel %vm502, %v505, %v508
        %v510 = vsel %vm500, nan, %v509
        %v511 = vand.u32 2147483647, %v189
        %vm512 = vcmp.le.f32.partialorder %v511, 0.7853982
        %vm513 = vcmp.lt.s32.totalorder %v189, 0
        %v514 = vand.u32 %v189, 2139095040
        %v515 = vshrl.u32 %v514, 23
        %v516 = vsub.s32 %v515, 127
        %v517 = vand.u32 2147483647, %v189
        %v518 = vand.u32 %v517, 8388607
        %v519 = vor.u32 %v518, 8388608
        %v520 = vsub.s32 0, %v519
        %v521 = vadd.s32 %v516, 1
        %vm522 = vcmp.gt.s32.totalorder %v521, 0
        %v523 = vsel %vm522, %v521, 0
        %v524 = vshrl.u32 %v523, 5
        %v525 = vand.u32 %v523, 31
        %v526 = vsub.s32 32, %v525
        %v527 = vshrl.u32 683565275, %v526
        %v528 = vshll.u32 683565275, %v525
        %v529 = vshrl.u32 2475754826, %v526
        %v530 = vor.u32 %v528, %v529
        %v531 = vshll.u32 2475754826, %v525
        %v532 = vshrl.u32 2131351028, %v526
        %v533 = vor.u32 %v531, %v532
        %v534 = vshll.u32 2131351028, %v525
        %v535 = vshrl.u32 2102212464, %v526
        %v536 = vor.u32 %v534, %v535
        %v537 = vshll.u32 2102212464, %v525
        %v538 = vshrl.u32 920167782, %v526
        %v539 = vor.u32 %v537, %v538
        %v540 = vshll.u32 920167782, %v525
        %v541 = vshrl.u32 1326507024, %v526
        %v542 = vor.u32 %v540, %v541
        %vm543 = vcmp.lt.s32.totalorder %v524, 1
        %vm544 = vcmp.lt.s32.totalorder %v524, 2
        %vm545 = vcmp.lt.s32.totalorder %v524, 3
        %vm546 = vcmp.lt.s32.totalorder %v524, 4
        %v547 = vsel %vm543, %v527, %v530
        %v548 = vsel %vm546, %v536, 2102212464
        %v549 = vsel %vm545, %v533, %v548
        %v550 = vsel %vm544, %v547, %v549
        %v551 = vsel %vm543, %v530, %v533
        %v552 = vsel %vm546, %v539, 920167782
        %v553 = vsel %vm545, %v536, %v552
        %v554 = vsel %vm544, %v551, %v553
        %v555 = vsel %vm543, %v533, %v536
        %v556 = vsel %vm546, %v542, 1326507024
        %v557 = vsel %vm545, %v539, %v556
        %v558 = vsel %vm544, %v555, %v557
        %v559 = vshll.u32 %v519, 8
        %v560 = vand.u32 %v559, 65535
        %v561 = vshrl.u32 %v559, 16
        %v562 = vand.u32 %v558, 65535
        %v563 = vshrl.u32 %v558, 16
        %v564 = vmul.u32 %v560, %v562
        %v565 = vmul.u32 %v560, %v563
        %v566 = vmul.u32 %v561, %v562
        %v567 = vmul.u32 %v561, %v563
        %v568 = vshll.u32 %v565, 16
        %v569 = vshrl.u32 %v565, 16
        %v570 = vshll.u32 %v566, 16
        %v571 = vshrl.u32 %v566, 16
        %vm572 = vc.u32 %v564, %v568
        %v573 = vsel %vm572, 1, 0
        %v574 = vadd.s32 %v564, %v568
        %v575 = vadd.s32 %v567, %v573
        %vm576 = vc.u32 %v574, %v570
        %v577 = vsel %vm576, 1, 0
        %v578 = vadd.s32 %v574, %v570
        %v579 = vadd.s32 %v575, %v577
        %v580 = vadd.s32 %v579, %v569
        %v581 = vadd.s32 %v580, %v571
        %v582 = vand.u32 %v559, 65535
        %v583 = vshrl.u32 %v559, 16
        %v584 = vand.u32 %v554, 65535
        %v585 = vshrl.u32 %v554, 16
        %v586 = vmul.u32 %v582, %v584
        %v587 = vmul.u32 %v582, %v585
        %v588 = vmul.u32 %v583, %v584
        %v589 = vmul.u32 %v583, %v585
        %v590 = vshll.u32 %v587, 16
        %v591 = vshrl.u32 %v587, 16
        %v592 = vshll.u32 %v588, 16
        %v593 = vshrl.u32 %v588, 16
        %vm594 = vc.u32 %v586, %v590
        %v595 = vsel %vm594, 1, 0
        %v596 = vadd.s32 %v586, %v590
        %v597 = vadd.s32 %v589, %v595
        %vm598 = vc.u32 %v596, %v592
        %v599 = vsel %vm598, 1, 0
        %v600 = vadd.s32 %v596, %v592
        %v601 = vadd.s32 %v597, %v599
        %v602 = vadd.s32 %v601, %v591
        %v603 = vadd.s32 %v602, %v593
        %v604 = vmul.u32 %v559, %v550
        %v605 = vadd.s32 %v581, %v600
        %vm606 = vc.u32 %v581, %v600
        %v607 = vadd.s32 %v603, 1
        %v608 = vsel %vm606, %v607, %v603
        %v609 = vadd.s32 %v604, %v608
        %v610 = vadd.s32 %v609, 536870912
        %v611 = vshrl.u32 %v610, 30
        %v612 = vshll.u32 %v611, 30
        %v613 = vsub.s32 %v609, %v612
        %vm614 = vcmp.lt.s32.totalorder %v613, 0
        %v615 = vsub.s32 0, %v613
        %v616 = vsel %vm614, %v615, %v613
        %v617 = vclz %v616
        %v618 = vsub.s32 %v617, 2
        %vm619 = vcmp.gt.s32.totalorder 0, %v618
        %v620 = vsel %vm619, 0, %v618
        %v621 = vsub.s32 32, %v620
        %v622 = vshll.u32 %v613, %v620
        %v623 = vshrl.u32 %v605, %v621
        %v624 = vor.u32 %v622, %v623
        %v625 = vsub.s32 4294967266, %v620
        %v626 = vadd.s32 %v625, 127
        %v627 = vshll.u32 %v626, 23
        %v628 = vor.u32 4788187, %v627
        %v629 = vand.u32 2147483647, %v628
        %v631 = vcvt.s32.f32 %v624
        %v632 = vmul.f32 %v631, %v629
        %v633 = vxor.u32 %v632, 2147483648
        %v634 = vsel %vm513, %v633, %v632
        %v635 = vsub.s32 4, %v611
        %v636 = vsel %vm513, %v635, %v611
        %v637 = vsel %vm512, %v189, %v634
        %v638 = vsel %vm512, 0, %v636
        %v639 = vmul.f32 %v637, %v637
        %v640 = vmul.f32 %v639, -0.001358992
        %v641 = vadd.f32 %v640, 0.041655596
        %v642 = vmul.f32 %v639, %v641
        %v643 = vadd.f32 %v642, -0.4999988
        %v644 = vmul.f32 %v639, %v643
        %v645 = vadd.f32 1.0, %v644
        %v646 = vmul.f32 %v637, %v637
        %v647 = vmul.f32 %v646, -0.00019511016
        %v648 = vadd.f32 %v647, 0.008332121
        %v649 = vmul.f32 %v646, %v648
        %v650 = vadd.f32 %v649, -0.16666654
        %v651 = vmul.f32 %v646, %v650
        %v652 = vadd.f32 %v651, 1.0
        %v653 = vmul.f32 %v652, %v637
        %vm654 = vweird.f32 %v189
        %v655 = vand.u32 %v638, 3
        %vm656 = vcmp.lt.s32.totalorder %v655, 2
        %vm657 = vcmp.eq.s32.totalorder %v655, 0
        %v658 = vxor.u32 %v653, 2147483648
        %v659 = vsel %vm657, %v645, %v658
        %vm660 = vcmp.eq.s32.totalorder %v655, 2
        %v661 = vxor.u32 %v645, 2147483648
        %v662 = vsel %vm660, %v661, %v653
        %v663 = vsel %vm656, %v659, %v662
        %v664 = vsel %vm654, nan, %v663
        %v665 = vand.u32 2147483647, %v190
        %vm666 = vcmp.le.f32.partialorder %v665, 0.7853982
        %vm667 = vcmp.lt.s32.totalorder %v190, 0
        %v668 = vand.u32 %v190, 2139095040
        %v669 = vshrl.u32 %v668, 23
        %v670 = vsub.s32 %v669, 127
        %v671 = vand.u32 2147483647, %v190
        %v672 = vand.u32 %v671, 8388607
        %v673 = vor.u32 %v672, 8388608
        %v674 = vsub.s32 0, %v673
        %v675 = vadd.s32 %v670, 1
        %vm676 = vcmp.gt.s32.totalorder %v675, 0
        %v677 = vsel %vm676, %v675, 0
        %v678 = vshrl.u32 %v677, 5
        %v679 = vand.u32 %v677, 31
        %v680 = vsub.s32 32, %v679
        %v681 = vshrl.u32 683565275, %v680
        %v682 = vshll.u32 683565275, %v679
        %v683 = vshrl.u32 2475754826, %v680
        %v684 = vor.u32 %v682, %v683
        %v685 = vshll.u32 2475754826, %v679
        %v686 = vshrl.u32 2131351028, %v680
        %v687 = vor.u32 %v685, %v686
        %v688 = vshll.u32 2131351028, %v679
        %v689 = vshrl.u32 2102212464, %v680
        %v690 = vor.u32 %v688, %v689
        %v691 = vshll.u32 2102212464, %v679
        %v692 = vshrl.u32 920167782, %v680
        %v693 = vor.u32 %v691, %v692
        %v694 = vshll.u32 920167782, %v679
        %v695 = vshrl.u32 1326507024, %v680
        %v696 = vor.u32 %v694, %v695
        %vm697 = vcmp.lt.s32.totalorder %v678, 1
        %vm698 = vcmp.lt.s32.totalorder %v678, 2
        %vm699 = vcmp.lt.s32.totalorder %v678, 3
        %vm700 = vcmp.lt.s32.totalorder %v678, 4
        %v701 = vsel %vm697, %v681, %v684
        %v702 = vsel %vm700, %v690, 2102212464
        %v703 = vsel %vm699, %v687, %v702
        %v704 = vsel %vm698, %v701, %v703
        %v705 = vsel %vm697, %v684, %v687
        %v706 = vsel %vm700, %v693, 920167782
        %v707 = vsel %vm699, %v690, %v706
        %v708 = vsel %vm698, %v705, %v707
        %v709 = vsel %vm697, %v687, %v690
        %v710 = vsel %vm700, %v696, 1326507024
        %v711 = vsel %vm699, %v693, %v710
        %v712 = vsel %vm698, %v709, %v711
        %v713 = vshll.u32 %v673, 8
        %v714 = vand.u32 %v713, 65535
        %v715 = vshrl.u32 %v713, 16
        %v716 = vand.u32 %v712, 65535
        %v717 = vshrl.u32 %v712, 16
        %v718 = vmul.u32 %v714, %v716
        %v719 = vmul.u32 %v714, %v717
        %v720 = vmul.u32 %v715, %v716
        %v721 = vmul.u32 %v715, %v717
        %v722 = vshll.u32 %v719, 16
        %v723 = vshrl.u32 %v719, 16
        %v724 = vshll.u32 %v720, 16
        %v725 = vshrl.u32 %v720, 16
        %vm726 = vc.u32 %v718, %v722
        %v727 = vsel %vm726, 1, 0
        %v728 = vadd.s32 %v718, %v722
        %v729 = vadd.s32 %v721, %v727
        %vm730 = vc.u32 %v728, %v724
        %v731 = vsel %vm730, 1, 0
        %v732 = vadd.s32 %v728, %v724
        %v733 = vadd.s32 %v729, %v731
        %v734 = vadd.s32 %v733, %v723
        %v735 = vadd.s32 %v734, %v725
        %v736 = vand.u32 %v713, 65535
        %v737 = vshrl.u32 %v713, 16
        %v738 = vand.u32 %v708, 65535
        %v739 = vshrl.u32 %v708, 16
        %v740 = vmul.u32 %v736, %v738
        %v741 = vmul.u32 %v736, %v739
        %v742 = vmul.u32 %v737, %v738
        %v743 = vmul.u32 %v737, %v739
        %v744 = vshll.u32 %v741, 16
        %v745 = vshrl.u32 %v741, 16
        %v746 = vshll.u32 %v742, 16
        %v747 = vshrl.u32 %v742, 16
        %vm748 = vc.u32 %v740, %v744
        %v749 = vsel %vm748, 1, 0
        %v750 = vadd.s32 %v740, %v744
        %v751 = vadd.s32 %v743, %v749
        %vm752 = vc.u32 %v750, %v746
        %v753 = vsel %vm752, 1, 0
        %v754 = vadd.s32 %v750, %v746
        %v755 = vadd.s32 %v751, %v753
        %v756 = vadd.s32 %v755, %v745
        %v757 = vadd.s32 %v756, %v747
        %v758 = vmul.u32 %v713, %v704
        %v759 = vadd.s32 %v735, %v754
        %vm760 = vc.u32 %v735, %v754
        %v761 = vadd.s32 %v757, 1
        %v762 = vsel %vm760, %v761, %v757
        %v763 = vadd.s32 %v758, %v762
        %v764 = vadd.s32 %v763, 536870912
        %v765 = vshrl.u32 %v764, 30
        %v766 = vshll.u32 %v765, 30
        %v767 = vsub.s32 %v763, %v766
        %vm768 = vcmp.lt.s32.totalorder %v767, 0
        %v769 = vsub.s32 0, %v767
        %v770 = vsel %vm768, %v769, %v767
        %v771 = vclz %v770
        %v772 = vsub.s32 %v771, 2
        %vm773 = vcmp.gt.s32.totalorder 0, %v772
        %v774 = vsel %vm773, 0, %v772
        %v775 = vsub.s32 32, %v774
        %v776 = vshll.u32 %v767, %v774
        %v777 = vshrl.u32 %v759, %v775
        %v778 = vor.u32 %v776, %v777
        %v779 = vsub.s32 4294967266, %v774
        %v780 = vadd.s32 %v779, 127
        %v781 = vshll.u32 %v780, 23
        %v782 = vor.u32 4788187, %v781
        %v783 = vand.u32 2147483647, %v782
        %v785 = vcvt.s32.f32 %v778
        %v786 = vmul.f32 %v785, %v783
        %v787 = vxor.u32 %v786, 2147483648
        %v788 = vsel %vm667, %v787, %v786
        %v789 = vsub.s32 4, %v765
        %v790 = vsel %vm667, %v789, %v765
        %v791 = vsel %vm666, %v190, %v788
        %v792 = vsel %vm666, 0, %v790
        %v793 = vmul.f32 %v791, %v791
        %v794 = vmul.f32 %v793, -0.001358992
        %v795 = vadd.f32 %v794, 0.041655596
        %v796 = vmul.f32 %v793, %v795
        %v797 = vadd.f32 %v796, -0.4999988
        %v798 = vmul.f32 %v793, %v797
        %v799 = vadd.f32 1.0, %v798
        %v800 = vmul.f32 %v791, %v791
        %v801 = vmul.f32 %v800, -0.00019511016
        %v802 = vadd.f32 %v801, 0.008332121
        %v803 = vmul.f32 %v800, %v802
        %v804 = vadd.f32 %v803, -0.16666654
        %v805 = vmul.f32 %v800, %v804
        %v806 = vadd.f32 %v805, 1.0
        %v807 = vmul.f32 %v806, %v791
        %vm808 = vweird.f32 %v190
        %v809 = vand.u32 %v792, 3
        %vm810 = vcmp.lt.s32.totalorder %v809, 2
        %vm811 = vcmp.eq.s32.totalorder %v809, 0
        %v812 = vxor.u32 %v807, 2147483648
        %v813 = vsel %vm811, %v799, %v812
        %vm814 = vcmp.eq.s32.totalorder %v809, 2
        %v815 = vxor.u32 %v799, 2147483648
        %v816 = vsel %vm814, %v815, %v807
        %v817 = vsel %vm810, %v813, %v816
        %v818 = vsel %vm808, nan, %v817
        %v819 = vand.u32 2147483647, %v191
        %vm820 = vcmp.le.f32.partialorder %v819, 0.7853982
        %vm821 = vcmp.lt.s32.totalorder %v191, 0
        %v822 = vand.u32 %v191, 2139095040
        %v823 = vshrl.u32 %v822, 23
        %v824 = vsub.s32 %v823, 127
        %v825 = vand.u32 2147483647, %v191
        %v826 = vand.u32 %v825, 8388607
        %v827 = vor.u32 %v826, 8388608
        %v828 = vsub.s32 0, %v827
        %v829 = vadd.s32 %v824, 1
        %vm830 = vcmp.gt.s32.totalorder %v829, 0
        %v831 = vsel %vm830, %v829, 0
        %v832 = vshrl.u32 %v831, 5
        %v833 = vand.u32 %v831, 31
        %v834 = vsub.s32 32, %v833
        %v835 = vshrl.u32 683565275, %v834
        %v836 = vshll.u32 683565275, %v833
        %v837 = vshrl.u32 2475754826, %v834
        %v838 = vor.u32 %v836, %v837
        %v839 = vshll.u32 2475754826, %v833
        %v840 = vshrl.u32 2131351028, %v834
        %v841 = vor.u32 %v839, %v840
        %v842 = vshll.u32 2131351028, %v833
        %v843 = vshrl.u32 2102212464, %v834
        %v844 = vor.u32 %v842, %v843
        %v845 = vshll.u32 2102212464, %v833
        %v846 = vshrl.u32 920167782, %v834
        %v847 = vor.u32 %v845, %v846
        %v848 = vshll.u32 920167782, %v833
        %v849 = vshrl.u32 1326507024, %v834
        %v850 = vor.u32 %v848, %v849
        %vm851 = vcmp.lt.s32.totalorder %v832, 1
        %vm852 = vcmp.lt.s32.totalorder %v832, 2
        %vm853 = vcmp.lt.s32.totalorder %v832, 3
        %vm854 = vcmp.lt.s32.totalorder %v832, 4
        %v855 = vsel %vm851, %v835, %v838
        %v856 = vsel %vm854, %v844, 2102212464
        %v857 = vsel %vm853, %v841, %v856
        %v858 = vsel %vm852, %v855, %v857
        %v859 = vsel %vm851, %v838, %v841
        %v860 = vsel %vm854, %v847, 920167782
        %v861 = vsel %vm853, %v844, %v860
        %v862 = vsel %vm852, %v859, %v861
        %v863 = vsel %vm851, %v841, %v844
        %v864 = vsel %vm854, %v850, 1326507024
        %v865 = vsel %vm853, %v847, %v864
        %v866 = vsel %vm852, %v863, %v865
        %v867 = vshll.u32 %v827, 8
        %v868 = vand.u32 %v867, 65535
        %v869 = vshrl.u32 %v867, 16
        %v870 = vand.u32 %v866, 65535
        %v871 = vshrl.u32 %v866, 16
        %v872 = vmul.u32 %v868, %v870
        %v873 = vmul.u32 %v868, %v871
        %v874 = vmul.u32 %v869, %v870
        %v875 = vmul.u32 %v869, %v871
        %v876 = vshll.u32 %v873, 16
        %v877 = vshrl.u32 %v873, 16
        %v878 = vshll.u32 %v874, 16
        %v879 = vshrl.u32 %v874, 16
        %vm880 = vc.u32 %v872, %v876
        %v881 = vsel %vm880, 1, 0
        %v882 = vadd.s32 %v872, %v876
        %v883 = vadd.s32 %v875, %v881
        %vm884 = vc.u32 %v882, %v878
        %v885 = vsel %vm884, 1, 0
        %v886 = vadd.s32 %v882, %v878
        %v887 = vadd.s32 %v883, %v885
        %v888 = vadd.s32 %v887, %v877
        %v889 = vadd.s32 %v888, %v879
        %v890 = vand.u32 %v867, 65535
        %v891 = vshrl.u32 %v867, 16
        %v892 = vand.u32 %v862, 65535
        %v893 = vshrl.u32 %v862, 16
        %v894 = vmul.u32 %v890, %v892
        %v895 = vmul.u32 %v890, %v893
        %v896 = vmul.u32 %v891, %v892
        %v897 = vmul.u32 %v891, %v893
        %v898 = vshll.u32 %v895, 16
        %v899 = vshrl.u32 %v895, 16
        %v900 = vshll.u32 %v896, 16
        %v901 = vshrl.u32 %v896, 16
        %vm902 = vc.u32 %v894, %v898
        %v903 = vsel %vm902, 1, 0
        %v904 = vadd.s32 %v894, %v898
        %v905 = vadd.s32 %v897, %v903
        %vm906 = vc.u32 %v904, %v900
        %v907 = vsel %vm906, 1, 0
        %v908 = vadd.s32 %v904, %v900
        %v909 = vadd.s32 %v905, %v907
        %v910 = vadd.s32 %v909, %v899
        %v911 = vadd.s32 %v910, %v901
        %v912 = vmul.u32 %v867, %v858
        %v913 = vadd.s32 %v889, %v908
        %vm914 = vc.u32 %v889, %v908
        %v915 = vadd.s32 %v911, 1
        %v916 = vsel %vm914, %v915, %v911
        %v917 = vadd.s32 %v912, %v916
        %v918 = vadd.s32 %v917, 536870912
        %v919 = vshrl.u32 %v918, 30
        %v920 = vshll.u32 %v919, 30
        %v921 = vsub.s32 %v917, %v920
        %vm922 = vcmp.lt.s32.totalorder %v921, 0
        %v923 = vsub.s32 0, %v921
        %v924 = vsel %vm922, %v923, %v921
        %v925 = vclz %v924
        %v926 = vsub.s32 %v925, 2
        %vm927 = vcmp.gt.s32.totalorder 0, %v926
        %v928 = vsel %vm927, 0, %v926
        %v929 = vsub.s32 32, %v928
        %v930 = vshll.u32 %v921, %v928
        %v931 = vshrl.u32 %v913, %v929
        %v932 = vor.u32 %v930, %v931
        %v933 = vsub.s32 4294967266, %v928
        %v934 = vadd.s32 %v933, 127
        %v935 = vshll.u32 %v934, 23
        %v936 = vor.u32 4788187, %v935
        %v937 = vand.u32 2147483647, %v936
        %v939 = vcvt.s32.f32 %v932
        %v940 = vmul.f32 %v939, %v937
        %v941 = vxor.u32 %v940, 2147483648
        %v942 = vsel %vm821, %v941, %v940
        %v943 = vsub.s32 4, %v919
        %v944 = vsel %vm821, %v943, %v919
        %v945 = vsel %vm820, %v191, %v942
        %v946 = vsel %vm820, 0, %v944
        %v947 = vmul.f32 %v945, %v945
        %v948 = vmul.f32 %v947, -0.001358992
        %v949 = vadd.f32 %v948, 0.041655596
        %v950 = vmul.f32 %v947, %v949
        %v951 = vadd.f32 %v950, -0.4999988
        %v952 = vmul.f32 %v947, %v951
        %v953 = vadd.f32 1.0, %v952
        %v954 = vmul.f32 %v945, %v945
        %v955 = vmul.f32 %v954, -0.00019511016
        %v956 = vadd.f32 %v955, 0.008332121
        %v957 = vmul.f32 %v954, %v956
        %v958 = vadd.f32 %v957, -0.16666654
        %v959 = vmul.f32 %v954, %v958
        %v960 = vadd.f32 %v959, 1.0
        %v961 = vmul.f32 %v960, %v945
        %vm962 = vweird.f32 %v191
        %v963 = vand.u32 %v946, 3
        %vm964 = vcmp.lt.s32.totalorder %v963, 2
        %vm965 = vcmp.eq.s32.totalorder %v963, 0
        %v966 = vxor.u32 %v961, 2147483648
        %v967 = vsel %vm965, %v953, %v966
        %vm968 = vcmp.eq.s32.totalorder %v963, 2
        %v969 = vxor.u32 %v953, 2147483648
        %v970 = vsel %vm968, %v969, %v961
        %v971 = vsel %vm964, %v967, %v970
        %v972 = vsel %vm962, nan, %v971
        %v973 = vand.u32 2147483647, %v192
        %vm974 = vcmp.le.f32.partialorder %v973, 0.7853982
        %vm975 = vcmp.lt.s32.totalorder %v192, 0
        %v976 = vand.u32 %v192, 2139095040
        %v977 = vshrl.u32 %v976, 23
        %v978 = vsub.s32 %v977, 127
        %v979 = vand.u32 2147483647, %v192
        %v980 = vand.u32 %v979, 8388607
        %v981 = vor.u32 %v980, 8388608
        %v982 = vsub.s32 0, %v981
        %v983 = vadd.s32 %v978, 1
        %vm984 = vcmp.gt.s32.totalorder %v983, 0
        %v985 = vsel %vm984, %v983, 0
        %v986 = vshrl.u32 %v985, 5
        %v987 = vand.u32 %v985, 31
        %v988 = vsub.s32 32, %v987
        %v989 = vshrl.u32 683565275, %v988
        %v990 = vshll.u32 683565275, %v987
        %v991 = vshrl.u32 2475754826, %v988
        %v992 = vor.u32 %v990, %v991
        %v993 = vshll.u32 2475754826, %v987
        %v994 = vshrl.u32 2131351028, %v988
        %v995 = vor.u32 %v993, %v994
        %v996 = vshll.u32 2131351028, %v987
        %v997 = vshrl.u32 2102212464, %v988
        %v998 = vor.u32 %v996, %v997
        %v999 = vshll.u32 2102212464, %v987
        %v1000 = vshrl.u32 920167782, %v988
        %v1001 = vor.u32 %v999, %v1000
        %v1002 = vshll.u32 920167782, %v987
        %v1003 = vshrl.u32 1326507024, %v988
        %v1004 = vor.u32 %v1002, %v1003
        %vm1005 = vcmp.lt.s32.totalorder %v986, 1
        %vm1006 = vcmp.lt.s32.totalorder %v986, 2
        %vm1007 = vcmp.lt.s32.totalorder %v986, 3
        %vm1008 = vcmp.lt.s32.totalorder %v986, 4
        %v1009 = vsel %vm1005, %v989, %v992
        %v1010 = vsel %vm1008, %v998, 2102212464
        %v1011 = vsel %vm1007, %v995, %v1010
        %v1012 = vsel %vm1006, %v1009, %v1011
        %v1013 = vsel %vm1005, %v992, %v995
        %v1014 = vsel %vm1008, %v1001, 920167782
        %v1015 = vsel %vm1007, %v998, %v1014
        %v1016 = vsel %vm1006, %v1013, %v1015
        %v1017 = vsel %vm1005, %v995, %v998
        %v1018 = vsel %vm1008, %v1004, 1326507024
        %v1019 = vsel %vm1007, %v1001, %v1018
        %v1020 = vsel %vm1006, %v1017, %v1019
        %v1021 = vshll.u32 %v981, 8
        %v1022 = vand.u32 %v1021, 65535
        %v1023 = vshrl.u32 %v1021, 16
        %v1024 = vand.u32 %v1020, 65535
        %v1025 = vshrl.u32 %v1020, 16
        %v1026 = vmul.u32 %v1022, %v1024
        %v1027 = vmul.u32 %v1022, %v1025
        %v1028 = vmul.u32 %v1023, %v1024
        %v1029 = vmul.u32 %v1023, %v1025
        %v1030 = vshll.u32 %v1027, 16
        %v1031 = vshrl.u32 %v1027, 16
        %v1032 = vshll.u32 %v1028, 16
        %v1033 = vshrl.u32 %v1028, 16
        %vm1034 = vc.u32 %v1026, %v1030
        %v1035 = vsel %vm1034, 1, 0
        %v1036 = vadd.s32 %v1026, %v1030
        %v1037 = vadd.s32 %v1029, %v1035
        %vm1038 = vc.u32 %v1036, %v1032
        %v1039 = vsel %vm1038, 1, 0
        %v1040 = vadd.s32 %v1036, %v1032
        %v1041 = vadd.s32 %v1037, %v1039
        %v1042 = vadd.s32 %v1041, %v1031
        %v1043 = vadd.s32 %v1042, %v1033
        %v1044 = vand.u32 %v1021, 65535
        %v1045 = vshrl.u32 %v1021, 16
        %v1046 = vand.u32 %v1016, 65535
        %v1047 = vshrl.u32 %v1016, 16
        %v1048 = vmul.u32 %v1044, %v1046
        %v1049 = vmul.u32 %v1044, %v1047
        %v1050 = vmul.u32 %v1045, %v1046
        %v1051 = vmul.u32 %v1045, %v1047
        %v1052 = vshll.u32 %v1049, 16
        %v1053 = vshrl.u32 %v1049, 16
        %v1054 = vshll.u32 %v1050, 16
        %v1055 = vshrl.u32 %v1050, 16
        %vm1056 = vc.u32 %v1048, %v1052
        %v1057 = vsel %vm1056, 1, 0
        %v1058 = vadd.s32 %v1048, %v1052
        %v1059 = vadd.s32 %v1051, %v1057
        %vm1060 = vc.u32 %v1058, %v1054
        %v1061 = vsel %vm1060, 1, 0
        %v1062 = vadd.s32 %v1058, %v1054
        %v1063 = vadd.s32 %v1059, %v1061
        %v1064 = vadd.s32 %v1063, %v1053
        %v1065 = vadd.s32 %v1064, %v1055
        %v1066 = vmul.u32 %v1021, %v1012
        %v1067 = vadd.s32 %v1043, %v1062
        %vm1068 = vc.u32 %v1043, %v1062
        %v1069 = vadd.s32 %v1065, 1
        %v1070 = vsel %vm1068, %v1069, %v1065
        %v1071 = vadd.s32 %v1066, %v1070
        %v1072 = vadd.s32 %v1071, 536870912
        %v1073 = vshrl.u32 %v1072, 30
        %v1074 = vshll.u32 %v1073, 30
        %v1075 = vsub.s32 %v1071, %v1074
        %vm1076 = vcmp.lt.s32.totalorder %v1075, 0
        %v1077 = vsub.s32 0, %v1075
        %v1078 = vsel %vm1076, %v1077, %v1075
        %v1079 = vclz %v1078
        %v1080 = vsub.s32 %v1079, 2
        %vm1081 = vcmp.gt.s32.totalorder 0, %v1080
        %v1082 = vsel %vm1081, 0, %v1080
        %v1083 = vsub.s32 32, %v1082
        %v1084 = vshll.u32 %v1075, %v1082
        %v1085 = vshrl.u32 %v1067, %v1083
        %v1086 = vor.u32 %v1084, %v1085
        %v1087 = vsub.s32 4294967266, %v1082
        %v1088 = vadd.s32 %v1087, 127
        %v1089 = vshll.u32 %v1088, 23
        %v1090 = vor.u32 4788187, %v1089
        %v1091 = vand.u32 2147483647, %v1090
        %v1093 = vcvt.s32.f32 %v1086
        %v1094 = vmul.f32 %v1093, %v1091
        %v1095 = vxor.u32 %v1094, 2147483648
        %v1096 = vsel %vm975, %v1095, %v1094
        %v1097 = vsub.s32 4, %v1073
        %v1098 = vsel %vm975, %v1097, %v1073
        %v1099 = vsel %vm974, %v192, %v1096
        %v1100 = vsel %vm974, 0, %v1098
        %v1101 = vmul.f32 %v1099, %v1099
        %v1102 = vmul.f32 %v1101, -0.001358992
        %v1103 = vadd.f32 %v1102, 0.041655596
        %v1104 = vmul.f32 %v1101, %v1103
        %v1105 = vadd.f32 %v1104, -0.4999988
        %v1106 = vmul.f32 %v1101, %v1105
        %v1107 = vadd.f32 1.0, %v1106
        %v1108 = vmul.f32 %v1099, %v1099
        %v1109 = vmul.f32 %v1108, -0.00019511016
        %v1110 = vadd.f32 %v1109, 0.008332121
        %v1111 = vmul.f32 %v1108, %v1110
        %v1112 = vadd.f32 %v1111, -0.16666654
        %v1113 = vmul.f32 %v1108, %v1112
        %v1114 = vadd.f32 %v1113, 1.0
        %v1115 = vmul.f32 %v1114, %v1099
        %vm1116 = vweird.f32 %v192
        %v1117 = vand.u32 %v1100, 3
        %vm1118 = vcmp.lt.s32.totalorder %v1117, 2
        %vm1119 = vcmp.eq.s32.totalorder %v1117, 0
        %v1120 = vxor.u32 %v1115, 2147483648
        %v1121 = vsel %vm1119, %v1107, %v1120
        %vm1122 = vcmp.eq.s32.totalorder %v1117, 2
        %v1123 = vxor.u32 %v1107, 2147483648
        %v1124 = vsel %vm1122, %v1123, %v1115
        %v1125 = vsel %vm1118, %v1121, %v1124
        %v1126 = vsel %vm1116, nan, %v1125
        %v1127 = vand.u32 2147483647, %v193
        %vm1128 = vcmp.le.f32.partialorder %v1127, 0.7853982
        %vm1129 = vcmp.lt.s32.totalorder %v193, 0
        %v1130 = vand.u32 %v193, 2139095040
        %v1131 = vshrl.u32 %v1130, 23
        %v1132 = vsub.s32 %v1131, 127
        %v1133 = vand.u32 2147483647, %v193
        %v1134 = vand.u32 %v1133, 8388607
        %v1135 = vor.u32 %v1134, 8388608
        %v1136 = vsub.s32 0, %v1135
        %v1137 = vadd.s32 %v1132, 1
        %vm1138 = vcmp.gt.s32.totalorder %v1137, 0
        %v1139 = vsel %vm1138, %v1137, 0
        %v1140 = vshrl.u32 %v1139, 5
        %v1141 = vand.u32 %v1139, 31
        %v1142 = vsub.s32 32, %v1141
        %v1143 = vshrl.u32 683565275, %v1142
        %v1144 = vshll.u32 683565275, %v1141
        %v1145 = vshrl.u32 2475754826, %v1142
        %v1146 = vor.u32 %v1144, %v1145
        %v1147 = vshll.u32 2475754826, %v1141
        %v1148 = vshrl.u32 2131351028, %v1142
        %v1149 = vor.u32 %v1147, %v1148
        %v1150 = vshll.u32 2131351028, %v1141
        %v1151 = vshrl.u32 2102212464, %v1142
        %v1152 = vor.u32 %v1150, %v1151
        %v1153 = vshll.u32 2102212464, %v1141
        %v1154 = vshrl.u32 920167782, %v1142
        %v1155 = vor.u32 %v1153, %v1154
        %v1156 = vshll.u32 920167782, %v1141
        %v1157 = vshrl.u32 1326507024, %v1142
        %v1158 = vor.u32 %v1156, %v1157
        %vm1159 = vcmp.lt.s32.totalorder %v1140, 1
        %vm1160 = vcmp.lt.s32.totalorder %v1140, 2
        %vm1161 = vcmp.lt.s32.totalorder %v1140, 3
        %vm1162 = vcmp.lt.s32.totalorder %v1140, 4
        %v1163 = vsel %vm1159, %v1143, %v1146
        %v1164 = vsel %vm1162, %v1152, 2102212464
        %v1165 = vsel %vm1161, %v1149, %v1164
        %v1166 = vsel %vm1160, %v1163, %v1165
        %v1167 = vsel %vm1159, %v1146, %v1149
        %v1168 = vsel %vm1162, %v1155, 920167782
        %v1169 = vsel %vm1161, %v1152, %v1168
        %v1170 = vsel %vm1160, %v1167, %v1169
        %v1171 = vsel %vm1159, %v1149, %v1152
        %v1172 = vsel %vm1162, %v1158, 1326507024
        %v1173 = vsel %vm1161, %v1155, %v1172
        %v1174 = vsel %vm1160, %v1171, %v1173
        %v1175 = vshll.u32 %v1135, 8
        %v1176 = vand.u32 %v1175, 65535
        %v1177 = vshrl.u32 %v1175, 16
        %v1178 = vand.u32 %v1174, 65535
        %v1179 = vshrl.u32 %v1174, 16
        %v1180 = vmul.u32 %v1176, %v1178
        %v1181 = vmul.u32 %v1176, %v1179
        %v1182 = vmul.u32 %v1177, %v1178
        %v1183 = vmul.u32 %v1177, %v1179
        %v1184 = vshll.u32 %v1181, 16
        %v1185 = vshrl.u32 %v1181, 16
        %v1186 = vshll.u32 %v1182, 16
        %v1187 = vshrl.u32 %v1182, 16
        %vm1188 = vc.u32 %v1180, %v1184
        %v1189 = vsel %vm1188, 1, 0
        %v1190 = vadd.s32 %v1180, %v1184
        %v1191 = vadd.s32 %v1183, %v1189
        %vm1192 = vc.u32 %v1190, %v1186
        %v1193 = vsel %vm1192, 1, 0
        %v1194 = vadd.s32 %v1190, %v1186
        %v1195 = vadd.s32 %v1191, %v1193
        %v1196 = vadd.s32 %v1195, %v1185
        %v1197 = vadd.s32 %v1196, %v1187
        %v1198 = vand.u32 %v1175, 65535
        %v1199 = vshrl.u32 %v1175, 16
        %v1200 = vand.u32 %v1170, 65535
        %v1201 = vshrl.u32 %v1170, 16
        %v1202 = vmul.u32 %v1198, %v1200
        %v1203 = vmul.u32 %v1198, %v1201
        %v1204 = vmul.u32 %v1199, %v1200
        %v1205 = vmul.u32 %v1199, %v1201
        %v1206 = vshll.u32 %v1203, 16
        %v1207 = vshrl.u32 %v1203, 16
        %v1208 = vshll.u32 %v1204, 16
        %v1209 = vshrl.u32 %v1204, 16
        %vm1210 = vc.u32 %v1202, %v1206
        %v1211 = vsel %vm1210, 1, 0
        %v1212 = vadd.s32 %v1202, %v1206
        %v1213 = vadd.s32 %v1205, %v1211
        %vm1214 = vc.u32 %v1212, %v1208
        %v1215 = vsel %vm1214, 1, 0
        %v1216 = vadd.s32 %v1212, %v1208
        %v1217 = vadd.s32 %v1213, %v1215
        %v1218 = vadd.s32 %v1217, %v1207
        %v1219 = vadd.s32 %v1218, %v1209
        %v1220 = vmul.u32 %v1175, %v1166
        %v1221 = vadd.s32 %v1197, %v1216
        %vm1222 = vc.u32 %v1197, %v1216
        %v1223 = vadd.s32 %v1219, 1
        %v1224 = vsel %vm1222, %v1223, %v1219
        %v1225 = vadd.s32 %v1220, %v1224
        %v1226 = vadd.s32 %v1225, 536870912
        %v1227 = vshrl.u32 %v1226, 30
        %v1228 = vshll.u32 %v1227, 30
        %v1229 = vsub.s32 %v1225, %v1228
        %vm1230 = vcmp.lt.s32.totalorder %v1229, 0
        %v1231 = vsub.s32 0, %v1229
        %v1232 = vsel %vm1230, %v1231, %v1229
        %v1233 = vclz %v1232
        %v1234 = vsub.s32 %v1233, 2
        %vm1235 = vcmp.gt.s32.totalorder 0, %v1234
        %v1236 = vsel %vm1235, 0, %v1234
        %v1237 = vsub.s32 32, %v1236
        %v1238 = vshll.u32 %v1229, %v1236
        %v1239 = vshrl.u32 %v1221, %v1237
        %v1240 = vor.u32 %v1238, %v1239
        %v1241 = vsub.s32 4294967266, %v1236
        %v1242 = vadd.s32 %v1241, 127
        %v1243 = vshll.u32 %v1242, 23
        %v1244 = vor.u32 4788187, %v1243
        %v1245 = vand.u32 2147483647, %v1244
        %v1247 = vcvt.s32.f32 %v1240
        %v1248 = vmul.f32 %v1247, %v1245
        %v1249 = vxor.u32 %v1248, 2147483648
        %v1250 = vsel %vm1129, %v1249, %v1248
        %v1251 = vsub.s32 4, %v1227
        %v1252 = vsel %vm1129, %v1251, %v1227
        %v1253 = vsel %vm1128, %v193, %v1250
        %v1254 = vsel %vm1128, 0, %v1252
        %v1255 = vmul.f32 %v1253, %v1253
        %v1256 = vmul.f32 %v1255, -0.001358992
        %v1257 = vadd.f32 %v1256, 0.041655596
        %v1258 = vmul.f32 %v1255, %v1257
        %v1259 = vadd.f32 %v1258, -0.4999988
        %v1260 = vmul.f32 %v1255, %v1259
        %v1261 = vadd.f32 1.0, %v1260
        %v1262 = vmul.f32 %v1253, %v1253
        %v1263 = vmul.f32 %v1262, -0.00019511016
        %v1264 = vadd.f32 %v1263, 0.008332121
        %v1265 = vmul.f32 %v1262, %v1264
        %v1266 = vadd.f32 %v1265, -0.16666654
        %v1267 = vmul.f32 %v1262, %v1266
        %v1268 = vadd.f32 %v1267, 1.0
        %v1269 = vmul.f32 %v1268, %v1253
        %vm1270 = vweird.f32 %v193
        %v1271 = vand.u32 %v1254, 3
        %vm1272 = vcmp.lt.s32.totalorder %v1271, 2
        %vm1273 = vcmp.eq.s32.totalorder %v1271, 0
        %v1274 = vxor.u32 %v1269, 2147483648
        %v1275 = vsel %vm1273, %v1261, %v1274
        %vm1276 = vcmp.eq.s32.totalorder %v1271, 2
        %v1277 = vxor.u32 %v1261, 2147483648
        %v1278 = vsel %vm1276, %v1277, %v1269
        %v1279 = vsel %vm1272, %v1275, %v1278
        %v1280 = vsel %vm1270, nan, %v1279
        %v1281 = vand.u32 2147483647, %v194
        %vm1282 = vcmp.le.f32.partialorder %v1281, 0.7853982
        %vm1283 = vcmp.lt.s32.totalorder %v194, 0
        %v1284 = vand.u32 %v194, 2139095040
        %v1285 = vshrl.u32 %v1284, 23
        %v1286 = vsub.s32 %v1285, 127
        %v1287 = vand.u32 2147483647, %v194
        %v1288 = vand.u32 %v1287, 8388607
        %v1289 = vor.u32 %v1288, 8388608
        %v1290 = vsub.s32 0, %v1289
        %v1291 = vadd.s32 %v1286, 1
        %vm1292 = vcmp.gt.s32.totalorder %v1291, 0
        %v1293 = vsel %vm1292, %v1291, 0
        %v1294 = vshrl.u32 %v1293, 5
        %v1295 = vand.u32 %v1293, 31
        %v1296 = vsub.s32 32, %v1295
        %v1297 = vshrl.u32 683565275, %v1296
        %v1298 = vshll.u32 683565275, %v1295
        %v1299 = vshrl.u32 2475754826, %v1296
        %v1300 = vor.u32 %v1298, %v1299
        %v1301 = vshll.u32 2475754826, %v1295
        %v1302 = vshrl.u32 2131351028, %v1296
        %v1303 = vor.u32 %v1301, %v1302
        %v1304 = vshll.u32 2131351028, %v1295
        %v1305 = vshrl.u32 2102212464, %v1296
        %v1306 = vor.u32 %v1304, %v1305
        %v1307 = vshll.u32 2102212464, %v1295
        %v1308 = vshrl.u32 920167782, %v1296
        %v1309 = vor.u32 %v1307, %v1308
        %v1310 = vshll.u32 920167782, %v1295
        %v1311 = vshrl.u32 1326507024, %v1296
        %v1312 = vor.u32 %v1310, %v1311
        %vm1313 = vcmp.lt.s32.totalorder %v1294, 1
        %vm1314 = vcmp.lt.s32.totalorder %v1294, 2
        %vm1315 = vcmp.lt.s32.totalorder %v1294, 3
        %vm1316 = vcmp.lt.s32.totalorder %v1294, 4
        %v1317 = vsel %vm1313, %v1297, %v1300
        %v1318 = vsel %vm1316, %v1306, 2102212464
        %v1319 = vsel %vm1315, %v1303, %v1318
        %v1320 = vsel %vm1314, %v1317, %v1319
        %v1321 = vsel %vm1313, %v1300, %v1303
        %v1322 = vsel %vm1316, %v1309, 920167782
        %v1323 = vsel %vm1315, %v1306, %v1322
        %v1324 = vsel %vm1314, %v1321, %v1323
        %v1325 = vsel %vm1313, %v1303, %v1306
        %v1326 = vsel %vm1316, %v1312, 1326507024
        %v1327 = vsel %vm1315, %v1309, %v1326
        %v1328 = vsel %vm1314, %v1325, %v1327
        %v1329 = vshll.u32 %v1289, 8
        %v1330 = vand.u32 %v1329, 65535
        %v1331 = vshrl.u32 %v1329, 16
        %v1332 = vand.u32 %v1328, 65535
        %v1333 = vshrl.u32 %v1328, 16
        %v1334 = vmul.u32 %v1330, %v1332
        %v1335 = vmul.u32 %v1330, %v1333
        %v1336 = vmul.u32 %v1331, %v1332
        %v1337 = vmul.u32 %v1331, %v1333
        %v1338 = vshll.u32 %v1335, 16
        %v1339 = vshrl.u32 %v1335, 16
        %v1340 = vshll.u32 %v1336, 16
        %v1341 = vshrl.u32 %v1336, 16
        %vm1342 = vc.u32 %v1334, %v1338
        %v1343 = vsel %vm1342, 1, 0
        %v1344 = vadd.s32 %v1334, %v1338
        %v1345 = vadd.s32 %v1337, %v1343
        %vm1346 = vc.u32 %v1344, %v1340
        %v1347 = vsel %vm1346, 1, 0
        %v1348 = vadd.s32 %v1344, %v1340
        %v1349 = vadd.s32 %v1345, %v1347
        %v1350 = vadd.s32 %v1349, %v1339
        %v1351 = vadd.s32 %v1350, %v1341
        %v1352 = vand.u32 %v1329, 65535
        %v1353 = vshrl.u32 %v1329, 16
        %v1354 = vand.u32 %v1324, 65535
        %v1355 = vshrl.u32 %v1324, 16
        %v1356 = vmul.u32 %v1352, %v1354
        %v1357 = vmul.u32 %v1352, %v1355
        %v1358 = vmul.u32 %v1353, %v1354
        %v1359 = vmul.u32 %v1353, %v1355
        %v1360 = vshll.u32 %v1357, 16
        %v1361 = vshrl.u32 %v1357, 16
        %v1362 = vshll.u32 %v1358, 16
        %v1363 = vshrl.u32 %v1358, 16
        %vm1364 = vc.u32 %v1356, %v1360
        %v1365 = vsel %vm1364, 1, 0
        %v1366 = vadd.s32 %v1356, %v1360
        %v1367 = vadd.s32 %v1359, %v1365
        %vm1368 = vc.u32 %v1366, %v1362
        %v1369 = vsel %vm1368, 1, 0
        %v1370 = vadd.s32 %v1366, %v1362
        %v1371 = vadd.s32 %v1367, %v1369
        %v1372 = vadd.s32 %v1371, %v1361
        %v1373 = vadd.s32 %v1372, %v1363
        %v1374 = vmul.u32 %v1329, %v1320
        %v1375 = vadd.s32 %v1351, %v1370
        %vm1376 = vc.u32 %v1351, %v1370
        %v1377 = vadd.s32 %v1373, 1
        %v1378 = vsel %vm1376, %v1377, %v1373
        %v1379 = vadd.s32 %v1374, %v1378
        %v1380 = vadd.s32 %v1379, 536870912
        %v1381 = vshrl.u32 %v1380, 30
        %v1382 = vshll.u32 %v1381, 30
        %v1383 = vsub.s32 %v1379, %v1382
        %vm1384 = vcmp.lt.s32.totalorder %v1383, 0
        %v1385 = vsub.s32 0, %v1383
        %v1386 = vsel %vm1384, %v1385, %v1383
        %v1387 = vclz %v1386
        %v1388 = vsub.s32 %v1387, 2
        %vm1389 = vcmp.gt.s32.totalorder 0, %v1388
        %v1390 = vsel %vm1389, 0, %v1388
        %v1391 = vsub.s32 32, %v1390
        %v1392 = vshll.u32 %v1383, %v1390
        %v1393 = vshrl.u32 %v1375, %v1391
        %v1394 = vor.u32 %v1392, %v1393
        %v1395 = vsub.s32 4294967266, %v1390
        %v1396 = vadd.s32 %v1395, 127
        %v1397 = vshll.u32 %v1396, 23
        %v1398 = vor.u32 4788187, %v1397
        %v1399 = vand.u32 2147483647, %v1398
        %v1401 = vcvt.s32.f32 %v1394
        %v1402 = vmul.f32 %v1401, %v1399
        %v1403 = vxor.u32 %v1402, 2147483648
        %v1404 = vsel %vm1283, %v1403, %v1402
        %v1405 = vsub.s32 4, %v1381
        %v1406 = vsel %vm1283, %v1405, %v1381
        %v1407 = vsel %vm1282, %v194, %v1404
        %v1408 = vsel %vm1282, 0, %v1406
        %v1409 = vmul.f32 %v1407, %v1407
        %v1410 = vmul.f32 %v1409, -0.001358992
        %v1411 = vadd.f32 %v1410, 0.041655596
        %v1412 = vmul.f32 %v1409, %v1411
        %v1413 = vadd.f32 %v1412, -0.4999988
        %v1414 = vmul.f32 %v1409, %v1413
        %v1415 = vadd.f32 1.0, %v1414
        %v1416 = vmul.f32 %v1407, %v1407
        %v1417 = vmul.f32 %v1416, -0.00019511016
        %v1418 = vadd.f32 %v1417, 0.008332121
        %v1419 = vmul.f32 %v1416, %v1418
        %v1420 = vadd.f32 %v1419, -0.16666654
        %v1421 = vmul.f32 %v1416, %v1420
        %v1422 = vadd.f32 %v1421, 1.0
        %v1423 = vmul.f32 %v1422, %v1407
        %vm1424 = vweird.f32 %v194
        %v1425 = vand.u32 %v1408, 3
        %vm1426 = vcmp.lt.s32.totalorder %v1425, 2
        %vm1427 = vcmp.eq.s32.totalorder %v1425, 0
        %v1428 = vxor.u32 %v1423, 2147483648
        %v1429 = vsel %vm1427, %v1415, %v1428
        %vm1430 = vcmp.eq.s32.totalorder %v1425, 2
        %v1431 = vxor.u32 %v1415, 2147483648
        %v1432 = vsel %vm1430, %v1431, %v1423
        %v1433 = vsel %vm1426, %v1429, %v1432
        %v1434 = vsel %vm1424, nan, %v1433
        %v1435 = vand.u32 2147483647, %v195
        %vm1436 = vcmp.le.f32.partialorder %v1435, 0.7853982
        %vm1437 = vcmp.lt.s32.totalorder %v195, 0
        %v1438 = vand.u32 %v195, 2139095040
        %v1439 = vshrl.u32 %v1438, 23
        %v1440 = vsub.s32 %v1439, 127
        %v1441 = vand.u32 2147483647, %v195
        %v1442 = vand.u32 %v1441, 8388607
        %v1443 = vor.u32 %v1442, 8388608
        %v1444 = vsub.s32 0, %v1443
        %v1445 = vadd.s32 %v1440, 1
        %vm1446 = vcmp.gt.s32.totalorder %v1445, 0
        %v1447 = vsel %vm1446, %v1445, 0
        %v1448 = vshrl.u32 %v1447, 5
        %v1449 = vand.u32 %v1447, 31
        %v1450 = vsub.s32 32, %v1449
        %v1451 = vshrl.u32 683565275, %v1450
        %v1452 = vshll.u32 683565275, %v1449
        %v1453 = vshrl.u32 2475754826, %v1450
        %v1454 = vor.u32 %v1452, %v1453
        %v1455 = vshll.u32 2475754826, %v1449
        %v1456 = vshrl.u32 2131351028, %v1450
        %v1457 = vor.u32 %v1455, %v1456
        %v1458 = vshll.u32 2131351028, %v1449
        %v1459 = vshrl.u32 2102212464, %v1450
        %v1460 = vor.u32 %v1458, %v1459
        %v1461 = vshll.u32 2102212464, %v1449
        %v1462 = vshrl.u32 920167782, %v1450
        %v1463 = vor.u32 %v1461, %v1462
        %v1464 = vshll.u32 920167782, %v1449
        %v1465 = vshrl.u32 1326507024, %v1450
        %v1466 = vor.u32 %v1464, %v1465
        %vm1467 = vcmp.lt.s32.totalorder %v1448, 1
        %vm1468 = vcmp.lt.s32.totalorder %v1448, 2
        %vm1469 = vcmp.lt.s32.totalorder %v1448, 3
        %vm1470 = vcmp.lt.s32.totalorder %v1448, 4
        %v1471 = vsel %vm1467, %v1451, %v1454
        %v1472 = vsel %vm1470, %v1460, 2102212464
        %v1473 = vsel %vm1469, %v1457, %v1472
        %v1474 = vsel %vm1468, %v1471, %v1473
        %v1475 = vsel %vm1467, %v1454, %v1457
        %v1476 = vsel %vm1470, %v1463, 920167782
        %v1477 = vsel %vm1469, %v1460, %v1476
        %v1478 = vsel %vm1468, %v1475, %v1477
        %v1479 = vsel %vm1467, %v1457, %v1460
        %v1480 = vsel %vm1470, %v1466, 1326507024
        %v1481 = vsel %vm1469, %v1463, %v1480
        %v1482 = vsel %vm1468, %v1479, %v1481
        %v1483 = vshll.u32 %v1443, 8
        %v1484 = vand.u32 %v1483, 65535
        %v1485 = vshrl.u32 %v1483, 16
        %v1486 = vand.u32 %v1482, 65535
        %v1487 = vshrl.u32 %v1482, 16
        %v1488 = vmul.u32 %v1484, %v1486
        %v1489 = vmul.u32 %v1484, %v1487
        %v1490 = vmul.u32 %v1485, %v1486
        %v1491 = vmul.u32 %v1485, %v1487
        %v1492 = vshll.u32 %v1489, 16
        %v1493 = vshrl.u32 %v1489, 16
        %v1494 = vshll.u32 %v1490, 16
        %v1495 = vshrl.u32 %v1490, 16
        %vm1496 = vc.u32 %v1488, %v1492
        %v1497 = vsel %vm1496, 1, 0
        %v1498 = vadd.s32 %v1488, %v1492
        %v1499 = vadd.s32 %v1491, %v1497
        %vm1500 = vc.u32 %v1498, %v1494
        %v1501 = vsel %vm1500, 1, 0
        %v1502 = vadd.s32 %v1498, %v1494
        %v1503 = vadd.s32 %v1499, %v1501
        %v1504 = vadd.s32 %v1503, %v1493
        %v1505 = vadd.s32 %v1504, %v1495
        %v1506 = vand.u32 %v1483, 65535
        %v1507 = vshrl.u32 %v1483, 16
        %v1508 = vand.u32 %v1478, 65535
        %v1509 = vshrl.u32 %v1478, 16
        %v1510 = vmul.u32 %v1506, %v1508
        %v1511 = vmul.u32 %v1506, %v1509
        %v1512 = vmul.u32 %v1507, %v1508
        %v1513 = vmul.u32 %v1507, %v1509
        %v1514 = vshll.u32 %v1511, 16
        %v1515 = vshrl.u32 %v1511, 16
        %v1516 = vshll.u32 %v1512, 16
        %v1517 = vshrl.u32 %v1512, 16
        %vm1518 = vc.u32 %v1510, %v1514
        %v1519 = vsel %vm1518, 1, 0
        %v1520 = vadd.s32 %v1510, %v1514
        %v1521 = vadd.s32 %v1513, %v1519
        %vm1522 = vc.u32 %v1520, %v1516
        %v1523 = vsel %vm1522, 1, 0
        %v1524 = vadd.s32 %v1520, %v1516
        %v1525 = vadd.s32 %v1521, %v1523
        %v1526 = vadd.s32 %v1525, %v1515
        %v1527 = vadd.s32 %v1526, %v1517
        %v1528 = vmul.u32 %v1483, %v1474
        %v1529 = vadd.s32 %v1505, %v1524
        %vm1530 = vc.u32 %v1505, %v1524
        %v1531 = vadd.s32 %v1527, 1
        %v1532 = vsel %vm1530, %v1531, %v1527
        %v1533 = vadd.s32 %v1528, %v1532
        %v1534 = vadd.s32 %v1533, 536870912
        %v1535 = vshrl.u32 %v1534, 30
        %v1536 = vshll.u32 %v1535, 30
        %v1537 = vsub.s32 %v1533, %v1536
        %vm1538 = vcmp.lt.s32.totalorder %v1537, 0
        %v1539 = vsub.s32 0, %v1537
        %v1540 = vsel %vm1538, %v1539, %v1537
        %v1541 = vclz %v1540
        %v1542 = vsub.s32 %v1541, 2
        %vm1543 = vcmp.gt.s32.totalorder 0, %v1542
        %v1544 = vsel %vm1543, 0, %v1542
        %v1545 = vsub.s32 32, %v1544
        %v1546 = vshll.u32 %v1537, %v1544
        %v1547 = vshrl.u32 %v1529, %v1545
        %v1548 = vor.u32 %v1546, %v1547
        %v1549 = vsub.s32 4294967266, %v1544
        %v1550 = vadd.s32 %v1549, 127
        %v1551 = vshll.u32 %v1550, 23
        %v1552 = vor.u32 4788187, %v1551
        %v1553 = vand.u32 2147483647, %v1552
        %v1555 = vcvt.s32.f32 %v1548
        %v1556 = vmul.f32 %v1555, %v1553
        %v1557 = vxor.u32 %v1556, 2147483648
        %v1558 = vsel %vm1437, %v1557, %v1556
        %v1559 = vsub.s32 4, %v1535
        %v1560 = vsel %vm1437, %v1559, %v1535
        %v1561 = vsel %vm1436, %v195, %v1558
        %v1562 = vsel %vm1436, 0, %v1560
        %v1563 = vmul.f32 %v1561, %v1561
        %v1564 = vmul.f32 %v1563, -0.001358992
        %v1565 = vadd.f32 %v1564, 0.041655596
        %v1566 = vmul.f32 %v1563, %v1565
        %v1567 = vadd.f32 %v1566, -0.4999988
        %v1568 = vmul.f32 %v1563, %v1567
        %v1569 = vadd.f32 1.0, %v1568
        %v1570 = vmul.f32 %v1561, %v1561
        %v1571 = vmul.f32 %v1570, -0.00019511016
        %v1572 = vadd.f32 %v1571, 0.008332121
        %v1573 = vmul.f32 %v1570, %v1572
        %v1574 = vadd.f32 %v1573, -0.16666654
        %v1575 = vmul.f32 %v1570, %v1574
        %v1576 = vadd.f32 %v1575, 1.0
        %v1577 = vmul.f32 %v1576, %v1561
        %vm1578 = vweird.f32 %v195
        %v1579 = vand.u32 %v1562, 3
        %vm1580 = vcmp.lt.s32.totalorder %v1579, 2
        %vm1581 = vcmp.eq.s32.totalorder %v1579, 0
        %v1582 = vxor.u32 %v1577, 2147483648
        %v1583 = vsel %vm1581, %v1569, %v1582
        %vm1584 = vcmp.eq.s32.totalorder %v1579, 2
        %v1585 = vxor.u32 %v1569, 2147483648
        %v1586 = vsel %vm1584, %v1585, %v1577
        %v1587 = vsel %vm1580, %v1583, %v1586
        %v1588 = vsel %vm1578, nan, %v1587
        %v1589 = vand.u32 2147483647, %v196
        %vm1590 = vcmp.le.f32.partialorder %v1589, 0.7853982
        %vm1591 = vcmp.lt.s32.totalorder %v196, 0
        %v1592 = vand.u32 %v196, 2139095040
        %v1593 = vshrl.u32 %v1592, 23
        %v1594 = vsub.s32 %v1593, 127
        %v1595 = vand.u32 2147483647, %v196
        %v1596 = vand.u32 %v1595, 8388607
        %v1597 = vor.u32 %v1596, 8388608
        %v1598 = vsub.s32 0, %v1597
        %v1599 = vadd.s32 %v1594, 1
        %vm1600 = vcmp.gt.s32.totalorder %v1599, 0
        %v1601 = vsel %vm1600, %v1599, 0
        %v1602 = vshrl.u32 %v1601, 5
        %v1603 = vand.u32 %v1601, 31
        %v1604 = vsub.s32 32, %v1603
        %v1605 = vshrl.u32 683565275, %v1604
        %v1606 = vshll.u32 683565275, %v1603
        %v1607 = vshrl.u32 2475754826, %v1604
        %v1608 = vor.u32 %v1606, %v1607
        %v1609 = vshll.u32 2475754826, %v1603
        %v1610 = vshrl.u32 2131351028, %v1604
        %v1611 = vor.u32 %v1609, %v1610
        %v1612 = vshll.u32 2131351028, %v1603
        %v1613 = vshrl.u32 2102212464, %v1604
        %v1614 = vor.u32 %v1612, %v1613
        %v1615 = vshll.u32 2102212464, %v1603
        %v1616 = vshrl.u32 920167782, %v1604
        %v1617 = vor.u32 %v1615, %v1616
        %v1618 = vshll.u32 920167782, %v1603
        %v1619 = vshrl.u32 1326507024, %v1604
        %v1620 = vor.u32 %v1618, %v1619
        %vm1621 = vcmp.lt.s32.totalorder %v1602, 1
        %vm1622 = vcmp.lt.s32.totalorder %v1602, 2
        %vm1623 = vcmp.lt.s32.totalorder %v1602, 3
        %vm1624 = vcmp.lt.s32.totalorder %v1602, 4
        %v1625 = vsel %vm1621, %v1605, %v1608
        %v1626 = vsel %vm1624, %v1614, 2102212464
        %v1627 = vsel %vm1623, %v1611, %v1626
        %v1628 = vsel %vm1622, %v1625, %v1627
        %v1629 = vsel %vm1621, %v1608, %v1611
        %v1630 = vsel %vm1624, %v1617, 920167782
        %v1631 = vsel %vm1623, %v1614, %v1630
        %v1632 = vsel %vm1622, %v1629, %v1631
        %v1633 = vsel %vm1621, %v1611, %v1614
        %v1634 = vsel %vm1624, %v1620, 1326507024
        %v1635 = vsel %vm1623, %v1617, %v1634
        %v1636 = vsel %vm1622, %v1633, %v1635
        %v1637 = vshll.u32 %v1597, 8
        %v1638 = vand.u32 %v1637, 65535
        %v1639 = vshrl.u32 %v1637, 16
        %v1640 = vand.u32 %v1636, 65535
        %v1641 = vshrl.u32 %v1636, 16
        %v1642 = vmul.u32 %v1638, %v1640
        %v1643 = vmul.u32 %v1638, %v1641
        %v1644 = vmul.u32 %v1639, %v1640
        %v1645 = vmul.u32 %v1639, %v1641
        %v1646 = vshll.u32 %v1643, 16
        %v1647 = vshrl.u32 %v1643, 16
        %v1648 = vshll.u32 %v1644, 16
        %v1649 = vshrl.u32 %v1644, 16
        %vm1650 = vc.u32 %v1642, %v1646
        %v1651 = vsel %vm1650, 1, 0
        %v1652 = vadd.s32 %v1642, %v1646
        %v1653 = vadd.s32 %v1645, %v1651
        %vm1654 = vc.u32 %v1652, %v1648
        %v1655 = vsel %vm1654, 1, 0
        %v1656 = vadd.s32 %v1652, %v1648
        %v1657 = vadd.s32 %v1653, %v1655
        %v1658 = vadd.s32 %v1657, %v1647
        %v1659 = vadd.s32 %v1658, %v1649
        %v1660 = vand.u32 %v1637, 65535
        %v1661 = vshrl.u32 %v1637, 16
        %v1662 = vand.u32 %v1632, 65535
        %v1663 = vshrl.u32 %v1632, 16
        %v1664 = vmul.u32 %v1660, %v1662
        %v1665 = vmul.u32 %v1660, %v1663
        %v1666 = vmul.u32 %v1661, %v1662
        %v1667 = vmul.u32 %v1661, %v1663
        %v1668 = vshll.u32 %v1665, 16
        %v1669 = vshrl.u32 %v1665, 16
        %v1670 = vshll.u32 %v1666, 16
        %v1671 = vshrl.u32 %v1666, 16
        %vm1672 = vc.u32 %v1664, %v1668
        %v1673 = vsel %vm1672, 1, 0
        %v1674 = vadd.s32 %v1664, %v1668
        %v1675 = vadd.s32 %v1667, %v1673
        %vm1676 = vc.u32 %v1674, %v1670
        %v1677 = vsel %vm1676, 1, 0
        %v1678 = vadd.s32 %v1674, %v1670
        %v1679 = vadd.s32 %v1675, %v1677
        %v1680 = vadd.s32 %v1679, %v1669
        %v1681 = vadd.s32 %v1680, %v1671
        %v1682 = vmul.u32 %v1637, %v1628
        %v1683 = vadd.s32 %v1659, %v1678
        %vm1684 = vc.u32 %v1659, %v1678
        %v1685 = vadd.s32 %v1681, 1
        %v1686 = vsel %vm1684, %v1685, %v1681
        %v1687 = vadd.s32 %v1682, %v1686
        %v1688 = vadd.s32 %v1687, 536870912
        %v1689 = vshrl.u32 %v1688, 30
        %v1690 = vshll.u32 %v1689, 30
        %v1691 = vsub.s32 %v1687, %v1690
        %vm1692 = vcmp.lt.s32.totalorder %v1691, 0
        %v1693 = vsub.s32 0, %v1691
        %v1694 = vsel %vm1692, %v1693, %v1691
        %v1695 = vclz %v1694
        %v1696 = vsub.s32 %v1695, 2
        %vm1697 = vcmp.gt.s32.totalorder 0, %v1696
        %v1698 = vsel %vm1697, 0, %v1696
        %v1699 = vsub.s32 32, %v1698
        %v1700 = vshll.u32 %v1691, %v1698
        %v1701 = vshrl.u32 %v1683, %v1699
        %v1702 = vor.u32 %v1700, %v1701
        %v1703 = vsub.s32 4294967266, %v1698
        %v1704 = vadd.s32 %v1703, 127
        %v1705 = vshll.u32 %v1704, 23
        %v1706 = vor.u32 4788187, %v1705
        %v1707 = vand.u32 2147483647, %v1706
        %v1709 = vcvt.s32.f32 %v1702
        %v1710 = vmul.f32 %v1709, %v1707
        %v1711 = vxor.u32 %v1710, 2147483648
        %v1712 = vsel %vm1591, %v1711, %v1710
        %v1713 = vsub.s32 4, %v1689
        %v1714 = vsel %vm1591, %v1713, %v1689
        %v1715 = vsel %vm1590, %v196, %v1712
        %v1716 = vsel %vm1590, 0, %v1714
        %v1717 = vmul.f32 %v1715, %v1715
        %v1718 = vmul.f32 %v1717, -0.001358992
        %v1719 = vadd.f32 %v1718, 0.041655596
        %v1720 = vmul.f32 %v1717, %v1719
        %v1721 = vadd.f32 %v1720, -0.4999988
        %v1722 = vmul.f32 %v1717, %v1721
        %v1723 = vadd.f32 1.0, %v1722
        %v1724 = vmul.f32 %v1715, %v1715
        %v1725 = vmul.f32 %v1724, -0.00019511016
        %v1726 = vadd.f32 %v1725, 0.008332121
        %v1727 = vmul.f32 %v1724, %v1726
        %v1728 = vadd.f32 %v1727, -0.16666654
        %v1729 = vmul.f32 %v1724, %v1728
        %v1730 = vadd.f32 %v1729, 1.0
        %v1731 = vmul.f32 %v1730, %v1715
        %vm1732 = vweird.f32 %v196
        %v1733 = vand.u32 %v1716, 3
        %vm1734 = vcmp.lt.s32.totalorder %v1733, 2
        %vm1735 = vcmp.eq.s32.totalorder %v1733, 0
        %v1736 = vxor.u32 %v1731, 2147483648
        %v1737 = vsel %vm1735, %v1723, %v1736
        %vm1738 = vcmp.eq.s32.totalorder %v1733, 2
        %v1739 = vxor.u32 %v1723, 2147483648
        %v1740 = vsel %vm1738, %v1739, %v1731
        %v1741 = vsel %vm1734, %v1737, %v1740
        %v1742 = vsel %vm1732, nan, %v1741
        %v1743 = vand.u32 2147483647, %v197
        %vm1744 = vcmp.le.f32.partialorder %v1743, 0.7853982
        %vm1745 = vcmp.lt.s32.totalorder %v197, 0
        %v1746 = vand.u32 %v197, 2139095040
        %v1747 = vshrl.u32 %v1746, 23
        %v1748 = vsub.s32 %v1747, 127
        %v1749 = vand.u32 2147483647, %v197
        %v1750 = vand.u32 %v1749, 8388607
        %v1751 = vor.u32 %v1750, 8388608
        %v1752 = vsub.s32 0, %v1751
        %v1753 = vadd.s32 %v1748, 1
        %vm1754 = vcmp.gt.s32.totalorder %v1753, 0
        %v1755 = vsel %vm1754, %v1753, 0
        %v1756 = vshrl.u32 %v1755, 5
        %v1757 = vand.u32 %v1755, 31
        %v1758 = vsub.s32 32, %v1757
        %v1759 = vshrl.u32 683565275, %v1758
        %v1760 = vshll.u32 683565275, %v1757
        %v1761 = vshrl.u32 2475754826, %v1758
        %v1762 = vor.u32 %v1760, %v1761
        %v1763 = vshll.u32 2475754826, %v1757
        %v1764 = vshrl.u32 2131351028, %v1758
        %v1765 = vor.u32 %v1763, %v1764
        %v1766 = vshll.u32 2131351028, %v1757
        %v1767 = vshrl.u32 2102212464, %v1758
        %v1768 = vor.u32 %v1766, %v1767
        %v1769 = vshll.u32 2102212464, %v1757
        %v1770 = vshrl.u32 920167782, %v1758
        %v1771 = vor.u32 %v1769, %v1770
        %v1772 = vshll.u32 920167782, %v1757
        %v1773 = vshrl.u32 1326507024, %v1758
        %v1774 = vor.u32 %v1772, %v1773
        %vm1775 = vcmp.lt.s32.totalorder %v1756, 1
        %vm1776 = vcmp.lt.s32.totalorder %v1756, 2
        %vm1777 = vcmp.lt.s32.totalorder %v1756, 3
        %vm1778 = vcmp.lt.s32.totalorder %v1756, 4
        %v1779 = vsel %vm1775, %v1759, %v1762
        %v1780 = vsel %vm1778, %v1768, 2102212464
        %v1781 = vsel %vm1777, %v1765, %v1780
        %v1782 = vsel %vm1776, %v1779, %v1781
        %v1783 = vsel %vm1775, %v1762, %v1765
        %v1784 = vsel %vm1778, %v1771, 920167782
        %v1785 = vsel %vm1777, %v1768, %v1784
        %v1786 = vsel %vm1776, %v1783, %v1785
        %v1787 = vsel %vm1775, %v1765, %v1768
        %v1788 = vsel %vm1778, %v1774, 1326507024
        %v1789 = vsel %vm1777, %v1771, %v1788
        %v1790 = vsel %vm1776, %v1787, %v1789
        %v1791 = vshll.u32 %v1751, 8
        %v1792 = vand.u32 %v1791, 65535
        %v1793 = vshrl.u32 %v1791, 16
        %v1794 = vand.u32 %v1790, 65535
        %v1795 = vshrl.u32 %v1790, 16
        %v1796 = vmul.u32 %v1792, %v1794
        %v1797 = vmul.u32 %v1792, %v1795
        %v1798 = vmul.u32 %v1793, %v1794
        %v1799 = vmul.u32 %v1793, %v1795
        %v1800 = vshll.u32 %v1797, 16
        %v1801 = vshrl.u32 %v1797, 16
        %v1802 = vshll.u32 %v1798, 16
        %v1803 = vshrl.u32 %v1798, 16
        %vm1804 = vc.u32 %v1796, %v1800
        %v1805 = vsel %vm1804, 1, 0
        %v1806 = vadd.s32 %v1796, %v1800
        %v1807 = vadd.s32 %v1799, %v1805
        %vm1808 = vc.u32 %v1806, %v1802
        %v1809 = vsel %vm1808, 1, 0
        %v1810 = vadd.s32 %v1806, %v1802
        %v1811 = vadd.s32 %v1807, %v1809
        %v1812 = vadd.s32 %v1811, %v1801
        %v1813 = vadd.s32 %v1812, %v1803
        %v1814 = vand.u32 %v1791, 65535
        %v1815 = vshrl.u32 %v1791, 16
        %v1816 = vand.u32 %v1786, 65535
        %v1817 = vshrl.u32 %v1786, 16
        %v1818 = vmul.u32 %v1814, %v1816
        %v1819 = vmul.u32 %v1814, %v1817
        %v1820 = vmul.u32 %v1815, %v1816
        %v1821 = vmul.u32 %v1815, %v1817
        %v1822 = vshll.u32 %v1819, 16
        %v1823 = vshrl.u32 %v1819, 16
        %v1824 = vshll.u32 %v1820, 16
        %v1825 = vshrl.u32 %v1820, 16
        %vm1826 = vc.u32 %v1818, %v1822
        %v1827 = vsel %vm1826, 1, 0
        %v1828 = vadd.s32 %v1818, %v1822
        %v1829 = vadd.s32 %v1821, %v1827
        %vm1830 = vc.u32 %v1828, %v1824
        %v1831 = vsel %vm1830, 1, 0
        %v1832 = vadd.s32 %v1828, %v1824
        %v1833 = vadd.s32 %v1829, %v1831
        %v1834 = vadd.s32 %v1833, %v1823
        %v1835 = vadd.s32 %v1834, %v1825
        %v1836 = vmul.u32 %v1791, %v1782
        %v1837 = vadd.s32 %v1813, %v1832
        %vm1838 = vc.u32 %v1813, %v1832
        %v1839 = vadd.s32 %v1835, 1
        %v1840 = vsel %vm1838, %v1839, %v1835
        %v1841 = vadd.s32 %v1836, %v1840
        %v1842 = vadd.s32 %v1841, 536870912
        %v1843 = vshrl.u32 %v1842, 30
        %v1844 = vshll.u32 %v1843, 30
        %v1845 = vsub.s32 %v1841, %v1844
        %vm1846 = vcmp.lt.s32.totalorder %v1845, 0
        %v1847 = vsub.s32 0, %v1845
        %v1848 = vsel %vm1846, %v1847, %v1845
        %v1849 = vclz %v1848
        %v1850 = vsub.s32 %v1849, 2
        %vm1851 = vcmp.gt.s32.totalorder 0, %v1850
        %v1852 = vsel %vm1851, 0, %v1850
        %v1853 = vsub.s32 32, %v1852
        %v1854 = vshll.u32 %v1845, %v1852
        %v1855 = vshrl.u32 %v1837, %v1853
        %v1856 = vor.u32 %v1854, %v1855
        %v1857 = vsub.s32 4294967266, %v1852
        %v1858 = vadd.s32 %v1857, 127
        %v1859 = vshll.u32 %v1858, 23
        %v1860 = vor.u32 4788187, %v1859
        %v1861 = vand.u32 2147483647, %v1860
        %v1863 = vcvt.s32.f32 %v1856
        %v1864 = vmul.f32 %v1863, %v1861
        %v1865 = vxor.u32 %v1864, 2147483648
        %v1866 = vsel %vm1745, %v1865, %v1864
        %v1867 = vsub.s32 4, %v1843
        %v1868 = vsel %vm1745, %v1867, %v1843
        %v1869 = vsel %vm1744, %v197, %v1866
        %v1870 = vsel %vm1744, 0, %v1868
        %v1871 = vmul.f32 %v1869, %v1869
        %v1872 = vmul.f32 %v1871, -0.001358992
        %v1873 = vadd.f32 %v1872, 0.041655596
        %v1874 = vmul.f32 %v1871, %v1873
        %v1875 = vadd.f32 %v1874, -0.4999988
        %v1876 = vmul.f32 %v1871, %v1875
        %v1877 = vadd.f32 1.0, %v1876
        %v1878 = vmul.f32 %v1869, %v1869
        %v1879 = vmul.f32 %v1878, -0.00019511016
        %v1880 = vadd.f32 %v1879, 0.008332121
        %v1881 = vmul.f32 %v1878, %v1880
        %v1882 = vadd.f32 %v1881, -0.16666654
        %v1883 = vmul.f32 %v1878, %v1882
        %v1884 = vadd.f32 %v1883, 1.0
        %v1885 = vmul.f32 %v1884, %v1869
        %vm1886 = vweird.f32 %v197
        %v1887 = vand.u32 %v1870, 3
        %vm1888 = vcmp.lt.s32.totalorder %v1887, 2
        %vm1889 = vcmp.eq.s32.totalorder %v1887, 0
        %v1890 = vxor.u32 %v1885, 2147483648
        %v1891 = vsel %vm1889, %v1877, %v1890
        %vm1892 = vcmp.eq.s32.totalorder %v1887, 2
        %v1893 = vxor.u32 %v1877, 2147483648
        %v1894 = vsel %vm1892, %v1893, %v1885
        %v1895 = vsel %vm1888, %v1891, %v1894
        %v1896 = vsel %vm1886, nan, %v1895
        %v1897 = vand.u32 2147483647, %v198
        %vm1898 = vcmp.le.f32.partialorder %v1897, 0.7853982
        %vm1899 = vcmp.lt.s32.totalorder %v198, 0
        %v1900 = vand.u32 %v198, 2139095040
        %v1901 = vshrl.u32 %v1900, 23
        %v1902 = vsub.s32 %v1901, 127
        %v1903 = vand.u32 2147483647, %v198
        %v1904 = vand.u32 %v1903, 8388607
        %v1905 = vor.u32 %v1904, 8388608
        %v1906 = vsub.s32 0, %v1905
        %v1907 = vadd.s32 %v1902, 1
        %vm1908 = vcmp.gt.s32.totalorder %v1907, 0
        %v1909 = vsel %vm1908, %v1907, 0
        %v1910 = vshrl.u32 %v1909, 5
        %v1911 = vand.u32 %v1909, 31
        %v1912 = vsub.s32 32, %v1911
        %v1913 = vshrl.u32 683565275, %v1912
        %v1914 = vshll.u32 683565275, %v1911
        %v1915 = vshrl.u32 2475754826, %v1912
        %v1916 = vor.u32 %v1914, %v1915
        %v1917 = vshll.u32 2475754826, %v1911
        %v1918 = vshrl.u32 2131351028, %v1912
        %v1919 = vor.u32 %v1917, %v1918
        %v1920 = vshll.u32 2131351028, %v1911
        %v1921 = vshrl.u32 2102212464, %v1912
        %v1922 = vor.u32 %v1920, %v1921
        %v1923 = vshll.u32 2102212464, %v1911
        %v1924 = vshrl.u32 920167782, %v1912
        %v1925 = vor.u32 %v1923, %v1924
        %v1926 = vshll.u32 920167782, %v1911
        %v1927 = vshrl.u32 1326507024, %v1912
        %v1928 = vor.u32 %v1926, %v1927
        %vm1929 = vcmp.lt.s32.totalorder %v1910, 1
        %vm1930 = vcmp.lt.s32.totalorder %v1910, 2
        %vm1931 = vcmp.lt.s32.totalorder %v1910, 3
        %vm1932 = vcmp.lt.s32.totalorder %v1910, 4
        %v1933 = vsel %vm1929, %v1913, %v1916
        %v1934 = vsel %vm1932, %v1922, 2102212464
        %v1935 = vsel %vm1931, %v1919, %v1934
        %v1936 = vsel %vm1930, %v1933, %v1935
        %v1937 = vsel %vm1929, %v1916, %v1919
        %v1938 = vsel %vm1932, %v1925, 920167782
        %v1939 = vsel %vm1931, %v1922, %v1938
        %v1940 = vsel %vm1930, %v1937, %v1939
        %v1941 = vsel %vm1929, %v1919, %v1922
        %v1942 = vsel %vm1932, %v1928, 1326507024
        %v1943 = vsel %vm1931, %v1925, %v1942
        %v1944 = vsel %vm1930, %v1941, %v1943
        %v1945 = vshll.u32 %v1905, 8
        %v1946 = vand.u32 %v1945, 65535
        %v1947 = vshrl.u32 %v1945, 16
        %v1948 = vand.u32 %v1944, 65535
        %v1949 = vshrl.u32 %v1944, 16
        %v1950 = vmul.u32 %v1946, %v1948
        %v1951 = vmul.u32 %v1946, %v1949
        %v1952 = vmul.u32 %v1947, %v1948
        %v1953 = vmul.u32 %v1947, %v1949
        %v1954 = vshll.u32 %v1951, 16
        %v1955 = vshrl.u32 %v1951, 16
        %v1956 = vshll.u32 %v1952, 16
        %v1957 = vshrl.u32 %v1952, 16
        %vm1958 = vc.u32 %v1950, %v1954
        %v1959 = vsel %vm1958, 1, 0
        %v1960 = vadd.s32 %v1950, %v1954
        %v1961 = vadd.s32 %v1953, %v1959
        %vm1962 = vc.u32 %v1960, %v1956
        %v1963 = vsel %vm1962, 1, 0
        %v1964 = vadd.s32 %v1960, %v1956
        %v1965 = vadd.s32 %v1961, %v1963
        %v1966 = vadd.s32 %v1965, %v1955
        %v1967 = vadd.s32 %v1966, %v1957
        %v1968 = vand.u32 %v1945, 65535
        %v1969 = vshrl.u32 %v1945, 16
        %v1970 = vand.u32 %v1940, 65535
        %v1971 = vshrl.u32 %v1940, 16
        %v1972 = vmul.u32 %v1968, %v1970
        %v1973 = vmul.u32 %v1968, %v1971
        %v1974 = vmul.u32 %v1969, %v1970
        %v1975 = vmul.u32 %v1969, %v1971
        %v1976 = vshll.u32 %v1973, 16
        %v1977 = vshrl.u32 %v1973, 16
        %v1978 = vshll.u32 %v1974, 16
        %v1979 = vshrl.u32 %v1974, 16
        %vm1980 = vc.u32 %v1972, %v1976
        %v1981 = vsel %vm1980, 1, 0
        %v1982 = vadd.s32 %v1972, %v1976
        %v1983 = vadd.s32 %v1975, %v1981
        %vm1984 = vc.u32 %v1982, %v1978
        %v1985 = vsel %vm1984, 1, 0
        %v1986 = vadd.s32 %v1982, %v1978
        %v1987 = vadd.s32 %v1983, %v1985
        %v1988 = vadd.s32 %v1987, %v1977
        %v1989 = vadd.s32 %v1988, %v1979
        %v1990 = vmul.u32 %v1945, %v1936
        %v1991 = vadd.s32 %v1967, %v1986
        %vm1992 = vc.u32 %v1967, %v1986
        %v1993 = vadd.s32 %v1989, 1
        %v1994 = vsel %vm1992, %v1993, %v1989
        %v1995 = vadd.s32 %v1990, %v1994
        %v1996 = vadd.s32 %v1995, 536870912
        %v1997 = vshrl.u32 %v1996, 30
        %v1998 = vshll.u32 %v1997, 30
        %v1999 = vsub.s32 %v1995, %v1998
        %vm2000 = vcmp.lt.s32.totalorder %v1999, 0
        %v2001 = vsub.s32 0, %v1999
        %v2002 = vsel %vm2000, %v2001, %v1999
        %v2003 = vclz %v2002
        %v2004 = vsub.s32 %v2003, 2
        %vm2005 = vcmp.gt.s32.totalorder 0, %v2004
        %v2006 = vsel %vm2005, 0, %v2004
        %v2007 = vsub.s32 32, %v2006
        %v2008 = vshll.u32 %v1999, %v2006
        %v2009 = vshrl.u32 %v1991, %v2007
        %v2010 = vor.u32 %v2008, %v2009
        %v2011 = vsub.s32 4294967266, %v2006
        %v2012 = vadd.s32 %v2011, 127
        %v2013 = vshll.u32 %v2012, 23
        %v2014 = vor.u32 4788187, %v2013
        %v2015 = vand.u32 2147483647, %v2014
        %v2017 = vcvt.s32.f32 %v2010
        %v2018 = vmul.f32 %v2017, %v2015
        %v2019 = vxor.u32 %v2018, 2147483648
        %v2020 = vsel %vm1899, %v2019, %v2018
        %v2021 = vsub.s32 4, %v1997
        %v2022 = vsel %vm1899, %v2021, %v1997
        %v2023 = vsel %vm1898, %v198, %v2020
        %v2024 = vsel %vm1898, 0, %v2022
        %v2025 = vmul.f32 %v2023, %v2023
        %v2026 = vmul.f32 %v2025, -0.001358992
        %v2027 = vadd.f32 %v2026, 0.041655596
        %v2028 = vmul.f32 %v2025, %v2027
        %v2029 = vadd.f32 %v2028, -0.4999988
        %v2030 = vmul.f32 %v2025, %v2029
        %v2031 = vadd.f32 1.0, %v2030
        %v2032 = vmul.f32 %v2023, %v2023
        %v2033 = vmul.f32 %v2032, -0.00019511016
        %v2034 = vadd.f32 %v2033, 0.008332121
        %v2035 = vmul.f32 %v2032, %v2034
        %v2036 = vadd.f32 %v2035, -0.16666654
        %v2037 = vmul.f32 %v2032, %v2036
        %v2038 = vadd.f32 %v2037, 1.0
        %v2039 = vmul.f32 %v2038, %v2023
        %vm2040 = vweird.f32 %v198
        %v2041 = vand.u32 %v2024, 3
        %vm2042 = vcmp.lt.s32.totalorder %v2041, 2
        %vm2043 = vcmp.eq.s32.totalorder %v2041, 0
        %v2044 = vxor.u32 %v2039, 2147483648
        %v2045 = vsel %vm2043, %v2031, %v2044
        %vm2046 = vcmp.eq.s32.totalorder %v2041, 2
        %v2047 = vxor.u32 %v2031, 2147483648
        %v2048 = vsel %vm2046, %v2047, %v2039
        %v2049 = vsel %vm2042, %v2045, %v2048
        %v2050 = vsel %vm2040, nan, %v2049
        %v2051 = vand.u32 2147483647, %v199
        %vm2052 = vcmp.le.f32.partialorder %v2051, 0.7853982
        %vm2053 = vcmp.lt.s32.totalorder %v199, 0
        %v2054 = vand.u32 %v199, 2139095040
        %v2055 = vshrl.u32 %v2054, 23
        %v2056 = vsub.s32 %v2055, 127
        %v2057 = vand.u32 2147483647, %v199
        %v2058 = vand.u32 %v2057, 8388607
        %v2059 = vor.u32 %v2058, 8388608
        %v2060 = vsub.s32 0, %v2059
        %v2061 = vadd.s32 %v2056, 1
        %vm2062 = vcmp.gt.s32.totalorder %v2061, 0
        %v2063 = vsel %vm2062, %v2061, 0
        %v2064 = vshrl.u32 %v2063, 5
        %v2065 = vand.u32 %v2063, 31
        %v2066 = vsub.s32 32, %v2065
        %v2067 = vshrl.u32 683565275, %v2066
        %v2068 = vshll.u32 683565275, %v2065
        %v2069 = vshrl.u32 2475754826, %v2066
        %v2070 = vor.u32 %v2068, %v2069
        %v2071 = vshll.u32 2475754826, %v2065
        %v2072 = vshrl.u32 2131351028, %v2066
        %v2073 = vor.u32 %v2071, %v2072
        %v2074 = vshll.u32 2131351028, %v2065
        %v2075 = vshrl.u32 2102212464, %v2066
        %v2076 = vor.u32 %v2074, %v2075
        %v2077 = vshll.u32 2102212464, %v2065
        %v2078 = vshrl.u32 920167782, %v2066
        %v2079 = vor.u32 %v2077, %v2078
        %v2080 = vshll.u32 920167782, %v2065
        %v2081 = vshrl.u32 1326507024, %v2066
        %v2082 = vor.u32 %v2080, %v2081
        %vm2083 = vcmp.lt.s32.totalorder %v2064, 1
        %vm2084 = vcmp.lt.s32.totalorder %v2064, 2
        %vm2085 = vcmp.lt.s32.totalorder %v2064, 3
        %vm2086 = vcmp.lt.s32.totalorder %v2064, 4
        %v2087 = vsel %vm2083, %v2067, %v2070
        %v2088 = vsel %vm2086, %v2076, 2102212464
        %v2089 = vsel %vm2085, %v2073, %v2088
        %v2090 = vsel %vm2084, %v2087, %v2089
        %v2091 = vsel %vm2083, %v2070, %v2073
        %v2092 = vsel %vm2086, %v2079, 920167782
        %v2093 = vsel %vm2085, %v2076, %v2092
        %v2094 = vsel %vm2084, %v2091, %v2093
        %v2095 = vsel %vm2083, %v2073, %v2076
        %v2096 = vsel %vm2086, %v2082, 1326507024
        %v2097 = vsel %vm2085, %v2079, %v2096
        %v2098 = vsel %vm2084, %v2095, %v2097
        %v2099 = vshll.u32 %v2059, 8
        %v2100 = vand.u32 %v2099, 65535
        %v2101 = vshrl.u32 %v2099, 16
        %v2102 = vand.u32 %v2098, 65535
        %v2103 = vshrl.u32 %v2098, 16
        %v2104 = vmul.u32 %v2100, %v2102
        %v2105 = vmul.u32 %v2100, %v2103
        %v2106 = vmul.u32 %v2101, %v2102
        %v2107 = vmul.u32 %v2101, %v2103
        %v2108 = vshll.u32 %v2105, 16
        %v2109 = vshrl.u32 %v2105, 16
        %v2110 = vshll.u32 %v2106, 16
        %v2111 = vshrl.u32 %v2106, 16
        %vm2112 = vc.u32 %v2104, %v2108
        %v2113 = vsel %vm2112, 1, 0
        %v2114 = vadd.s32 %v2104, %v2108
        %v2115 = vadd.s32 %v2107, %v2113
        %vm2116 = vc.u32 %v2114, %v2110
        %v2117 = vsel %vm2116, 1, 0
        %v2118 = vadd.s32 %v2114, %v2110
        %v2119 = vadd.s32 %v2115, %v2117
        %v2120 = vadd.s32 %v2119, %v2109
        %v2121 = vadd.s32 %v2120, %v2111
        %v2122 = vand.u32 %v2099, 65535
        %v2123 = vshrl.u32 %v2099, 16
        %v2124 = vand.u32 %v2094, 65535
        %v2125 = vshrl.u32 %v2094, 16
        %v2126 = vmul.u32 %v2122, %v2124
        %v2127 = vmul.u32 %v2122, %v2125
        %v2128 = vmul.u32 %v2123, %v2124
        %v2129 = vmul.u32 %v2123, %v2125
        %v2130 = vshll.u32 %v2127, 16
        %v2131 = vshrl.u32 %v2127, 16
        %v2132 = vshll.u32 %v2128, 16
        %v2133 = vshrl.u32 %v2128, 16
        %vm2134 = vc.u32 %v2126, %v2130
        %v2135 = vsel %vm2134, 1, 0
        %v2136 = vadd.s32 %v2126, %v2130
        %v2137 = vadd.s32 %v2129, %v2135
        %vm2138 = vc.u32 %v2136, %v2132
        %v2139 = vsel %vm2138, 1, 0
        %v2140 = vadd.s32 %v2136, %v2132
        %v2141 = vadd.s32 %v2137, %v2139
        %v2142 = vadd.s32 %v2141, %v2131
        %v2143 = vadd.s32 %v2142, %v2133
        %v2144 = vmul.u32 %v2099, %v2090
        %v2145 = vadd.s32 %v2121, %v2140
        %vm2146 = vc.u32 %v2121, %v2140
        %v2147 = vadd.s32 %v2143, 1
        %v2148 = vsel %vm2146, %v2147, %v2143
        %v2149 = vadd.s32 %v2144, %v2148
        %v2150 = vadd.s32 %v2149, 536870912
        %v2151 = vshrl.u32 %v2150, 30
        %v2152 = vshll.u32 %v2151, 30
        %v2153 = vsub.s32 %v2149, %v2152
        %vm2154 = vcmp.lt.s32.totalorder %v2153, 0
        %v2155 = vsub.s32 0, %v2153
        %v2156 = vsel %vm2154, %v2155, %v2153
        %v2157 = vclz %v2156
        %v2158 = vsub.s32 %v2157, 2
        %vm2159 = vcmp.gt.s32.totalorder 0, %v2158
        %v2160 = vsel %vm2159, 0, %v2158
        %v2161 = vsub.s32 32, %v2160
        %v2162 = vshll.u32 %v2153, %v2160
        %v2163 = vshrl.u32 %v2145, %v2161
        %v2164 = vor.u32 %v2162, %v2163
        %v2165 = vsub.s32 4294967266, %v2160
        %v2166 = vadd.s32 %v2165, 127
        %v2167 = vshll.u32 %v2166, 23
        %v2168 = vor.u32 4788187, %v2167
        %v2169 = vand.u32 2147483647, %v2168
        %v2171 = vcvt.s32.f32 %v2164
        %v2172 = vmul.f32 %v2171, %v2169
        %v2173 = vxor.u32 %v2172, 2147483648
        %v2174 = vsel %vm2053, %v2173, %v2172
        %v2175 = vsub.s32 4, %v2151
        %v2176 = vsel %vm2053, %v2175, %v2151
        %v2177 = vsel %vm2052, %v199, %v2174
        %v2178 = vsel %vm2052, 0, %v2176
        %v2179 = vmul.f32 %v2177, %v2177
        %v2180 = vmul.f32 %v2179, -0.001358992
        %v2181 = vadd.f32 %v2180, 0.041655596
        %v2182 = vmul.f32 %v2179, %v2181
        %v2183 = vadd.f32 %v2182, -0.4999988
        %v2184 = vmul.f32 %v2179, %v2183
        %v2185 = vadd.f32 1.0, %v2184
        %v2186 = vmul.f32 %v2177, %v2177
        %v2187 = vmul.f32 %v2186, -0.00019511016
        %v2188 = vadd.f32 %v2187, 0.008332121
        %v2189 = vmul.f32 %v2186, %v2188
        %v2190 = vadd.f32 %v2189, -0.16666654
        %v2191 = vmul.f32 %v2186, %v2190
        %v2192 = vadd.f32 %v2191, 1.0
        %v2193 = vmul.f32 %v2192, %v2177
        %vm2194 = vweird.f32 %v199
        %v2195 = vand.u32 %v2178, 3
        %vm2196 = vcmp.lt.s32.totalorder %v2195, 2
        %vm2197 = vcmp.eq.s32.totalorder %v2195, 0
        %v2198 = vxor.u32 %v2193, 2147483648
        %v2199 = vsel %vm2197, %v2185, %v2198
        %vm2200 = vcmp.eq.s32.totalorder %v2195, 2
        %v2201 = vxor.u32 %v2185, 2147483648
        %v2202 = vsel %vm2200, %v2201, %v2193
        %v2203 = vsel %vm2196, %v2199, %v2202
        %v2204 = vsel %vm2194, nan, %v2203
        %v2205 = vand.u32 2147483647, %v200
        %vm2206 = vcmp.le.f32.partialorder %v2205, 0.7853982
        %vm2207 = vcmp.lt.s32.totalorder %v200, 0
        %v2208 = vand.u32 %v200, 2139095040
        %v2209 = vshrl.u32 %v2208, 23
        %v2210 = vsub.s32 %v2209, 127
        %v2211 = vand.u32 2147483647, %v200
        %v2212 = vand.u32 %v2211, 8388607
        %v2213 = vor.u32 %v2212, 8388608
        %v2214 = vsub.s32 0, %v2213
        %v2215 = vadd.s32 %v2210, 1
        %vm2216 = vcmp.gt.s32.totalorder %v2215, 0
        %v2217 = vsel %vm2216, %v2215, 0
        %v2218 = vshrl.u32 %v2217, 5
        %v2219 = vand.u32 %v2217, 31
        %v2220 = vsub.s32 32, %v2219
        %v2221 = vshrl.u32 683565275, %v2220
        %v2222 = vshll.u32 683565275, %v2219
        %v2223 = vshrl.u32 2475754826, %v2220
        %v2224 = vor.u32 %v2222, %v2223
        %v2225 = vshll.u32 2475754826, %v2219
        %v2226 = vshrl.u32 2131351028, %v2220
        %v2227 = vor.u32 %v2225, %v2226
        %v2228 = vshll.u32 2131351028, %v2219
        %v2229 = vshrl.u32 2102212464, %v2220
        %v2230 = vor.u32 %v2228, %v2229
        %v2231 = vshll.u32 2102212464, %v2219
        %v2232 = vshrl.u32 920167782, %v2220
        %v2233 = vor.u32 %v2231, %v2232
        %v2234 = vshll.u32 920167782, %v2219
        %v2235 = vshrl.u32 1326507024, %v2220
        %v2236 = vor.u32 %v2234, %v2235
        %vm2237 = vcmp.lt.s32.totalorder %v2218, 1
        %vm2238 = vcmp.lt.s32.totalorder %v2218, 2
        %vm2239 = vcmp.lt.s32.totalorder %v2218, 3
        %vm2240 = vcmp.lt.s32.totalorder %v2218, 4
        %v2241 = vsel %vm2237, %v2221, %v2224
        %v2242 = vsel %vm2240, %v2230, 2102212464
        %v2243 = vsel %vm2239, %v2227, %v2242
        %v2244 = vsel %vm2238, %v2241, %v2243
        %v2245 = vsel %vm2237, %v2224, %v2227
        %v2246 = vsel %vm2240, %v2233, 920167782
        %v2247 = vsel %vm2239, %v2230, %v2246
        %v2248 = vsel %vm2238, %v2245, %v2247
        %v2249 = vsel %vm2237, %v2227, %v2230
        %v2250 = vsel %vm2240, %v2236, 1326507024
        %v2251 = vsel %vm2239, %v2233, %v2250
        %v2252 = vsel %vm2238, %v2249, %v2251
        %v2253 = vshll.u32 %v2213, 8
        %v2254 = vand.u32 %v2253, 65535
        %v2255 = vshrl.u32 %v2253, 16
        %v2256 = vand.u32 %v2252, 65535
        %v2257 = vshrl.u32 %v2252, 16
        %v2258 = vmul.u32 %v2254, %v2256
        %v2259 = vmul.u32 %v2254, %v2257
        %v2260 = vmul.u32 %v2255, %v2256
        %v2261 = vmul.u32 %v2255, %v2257
        %v2262 = vshll.u32 %v2259, 16
        %v2263 = vshrl.u32 %v2259, 16
        %v2264 = vshll.u32 %v2260, 16
        %v2265 = vshrl.u32 %v2260, 16
        %vm2266 = vc.u32 %v2258, %v2262
        %v2267 = vsel %vm2266, 1, 0
        %v2268 = vadd.s32 %v2258, %v2262
        %v2269 = vadd.s32 %v2261, %v2267
        %vm2270 = vc.u32 %v2268, %v2264
        %v2271 = vsel %vm2270, 1, 0
        %v2272 = vadd.s32 %v2268, %v2264
        %v2273 = vadd.s32 %v2269, %v2271
        %v2274 = vadd.s32 %v2273, %v2263
        %v2275 = vadd.s32 %v2274, %v2265
        %v2276 = vand.u32 %v2253, 65535
        %v2277 = vshrl.u32 %v2253, 16
        %v2278 = vand.u32 %v2248, 65535
        %v2279 = vshrl.u32 %v2248, 16
        %v2280 = vmul.u32 %v2276, %v2278
        %v2281 = vmul.u32 %v2276, %v2279
        %v2282 = vmul.u32 %v2277, %v2278
        %v2283 = vmul.u32 %v2277, %v2279
        %v2284 = vshll.u32 %v2281, 16
        %v2285 = vshrl.u32 %v2281, 16
        %v2286 = vshll.u32 %v2282, 16
        %v2287 = vshrl.u32 %v2282, 16
        %vm2288 = vc.u32 %v2280, %v2284
        %v2289 = vsel %vm2288, 1, 0
        %v2290 = vadd.s32 %v2280, %v2284
        %v2291 = vadd.s32 %v2283, %v2289
        %vm2292 = vc.u32 %v2290, %v2286
        %v2293 = vsel %vm2292, 1, 0
        %v2294 = vadd.s32 %v2290, %v2286
        %v2295 = vadd.s32 %v2291, %v2293
        %v2296 = vadd.s32 %v2295, %v2285
        %v2297 = vadd.s32 %v2296, %v2287
        %v2298 = vmul.u32 %v2253, %v2244
        %v2299 = vadd.s32 %v2275, %v2294
        %vm2300 = vc.u32 %v2275, %v2294
        %v2301 = vadd.s32 %v2297, 1
        %v2302 = vsel %vm2300, %v2301, %v2297
        %v2303 = vadd.s32 %v2298, %v2302
        %v2304 = vadd.s32 %v2303, 536870912
        %v2305 = vshrl.u32 %v2304, 30
        %v2306 = vshll.u32 %v2305, 30
        %v2307 = vsub.s32 %v2303, %v2306
        %vm2308 = vcmp.lt.s32.totalorder %v2307, 0
        %v2309 = vsub.s32 0, %v2307
        %v2310 = vsel %vm2308, %v2309, %v2307
        %v2311 = vclz %v2310
        %v2312 = vsub.s32 %v2311, 2
        %vm2313 = vcmp.gt.s32.totalorder 0, %v2312
        %v2314 = vsel %vm2313, 0, %v2312
        %v2315 = vsub.s32 32, %v2314
        %v2316 = vshll.u32 %v2307, %v2314
        %v2317 = vshrl.u32 %v2299, %v2315
        %v2318 = vor.u32 %v2316, %v2317
        %v2319 = vsub.s32 4294967266, %v2314
        %v2320 = vadd.s32 %v2319, 127
        %v2321 = vshll.u32 %v2320, 23
        %v2322 = vor.u32 4788187, %v2321
        %v2323 = vand.u32 2147483647, %v2322
        %v2325 = vcvt.s32.f32 %v2318
        %v2326 = vmul.f32 %v2325, %v2323
        %v2327 = vxor.u32 %v2326, 2147483648
        %v2328 = vsel %vm2207, %v2327, %v2326
        %v2329 = vsub.s32 4, %v2305
        %v2330 = vsel %vm2207, %v2329, %v2305
        %v2331 = vsel %vm2206, %v200, %v2328
        %v2332 = vsel %vm2206, 0, %v2330
        %v2333 = vmul.f32 %v2331, %v2331
        %v2334 = vmul.f32 %v2333, -0.001358992
        %v2335 = vadd.f32 %v2334, 0.041655596
        %v2336 = vmul.f32 %v2333, %v2335
        %v2337 = vadd.f32 %v2336, -0.4999988
        %v2338 = vmul.f32 %v2333, %v2337
        %v2339 = vadd.f32 1.0, %v2338
        %v2340 = vmul.f32 %v2331, %v2331
        %v2341 = vmul.f32 %v2340, -0.00019511016
        %v2342 = vadd.f32 %v2341, 0.008332121
        %v2343 = vmul.f32 %v2340, %v2342
        %v2344 = vadd.f32 %v2343, -0.16666654
        %v2345 = vmul.f32 %v2340, %v2344
        %v2346 = vadd.f32 %v2345, 1.0
        %v2347 = vmul.f32 %v2346, %v2331
        %vm2348 = vweird.f32 %v200
        %v2349 = vand.u32 %v2332, 3
        %vm2350 = vcmp.lt.s32.totalorder %v2349, 2
        %vm2351 = vcmp.eq.s32.totalorder %v2349, 0
        %v2352 = vxor.u32 %v2347, 2147483648
        %v2353 = vsel %vm2351, %v2339, %v2352
        %vm2354 = vcmp.eq.s32.totalorder %v2349, 2
        %v2355 = vxor.u32 %v2339, 2147483648
        %v2356 = vsel %vm2354, %v2355, %v2347
        %v2357 = vsel %vm2350, %v2353, %v2356
        %v2358 = vsel %vm2348, nan, %v2357
        %v2359 = vand.u32 2147483647, %v201
        %vm2360 = vcmp.le.f32.partialorder %v2359, 0.7853982
        %vm2361 = vcmp.lt.s32.totalorder %v201, 0
        %v2362 = vand.u32 %v201, 2139095040
        %v2363 = vshrl.u32 %v2362, 23
        %v2364 = vsub.s32 %v2363, 127
        %v2365 = vand.u32 2147483647, %v201
        %v2366 = vand.u32 %v2365, 8388607
        %v2367 = vor.u32 %v2366, 8388608
        %v2368 = vsub.s32 0, %v2367
        %v2369 = vadd.s32 %v2364, 1
        %vm2370 = vcmp.gt.s32.totalorder %v2369, 0
        %v2371 = vsel %vm2370, %v2369, 0
        %v2372 = vshrl.u32 %v2371, 5
        %v2373 = vand.u32 %v2371, 31
        %v2374 = vsub.s32 32, %v2373
        %v2375 = vshrl.u32 683565275, %v2374
        %v2376 = vshll.u32 683565275, %v2373
        %v2377 = vshrl.u32 2475754826, %v2374
        %v2378 = vor.u32 %v2376, %v2377
        %v2379 = vshll.u32 2475754826, %v2373
        %v2380 = vshrl.u32 2131351028, %v2374
        %v2381 = vor.u32 %v2379, %v2380
        %v2382 = vshll.u32 2131351028, %v2373
        %v2383 = vshrl.u32 2102212464, %v2374
        %v2384 = vor.u32 %v2382, %v2383
        %v2385 = vshll.u32 2102212464, %v2373
        %v2386 = vshrl.u32 920167782, %v2374
        %v2387 = vor.u32 %v2385, %v2386
        %v2388 = vshll.u32 920167782, %v2373
        %v2389 = vshrl.u32 1326507024, %v2374
        %v2390 = vor.u32 %v2388, %v2389
        %vm2391 = vcmp.lt.s32.totalorder %v2372, 1
        %vm2392 = vcmp.lt.s32.totalorder %v2372, 2
        %vm2393 = vcmp.lt.s32.totalorder %v2372, 3
        %vm2394 = vcmp.lt.s32.totalorder %v2372, 4
        %v2395 = vsel %vm2391, %v2375, %v2378
        %v2396 = vsel %vm2394, %v2384, 2102212464
        %v2397 = vsel %vm2393, %v2381, %v2396
        %v2398 = vsel %vm2392, %v2395, %v2397
        %v2399 = vsel %vm2391, %v2378, %v2381
        %v2400 = vsel %vm2394, %v2387, 920167782
        %v2401 = vsel %vm2393, %v2384, %v2400
        %v2402 = vsel %vm2392, %v2399, %v2401
        %v2403 = vsel %vm2391, %v2381, %v2384
        %v2404 = vsel %vm2394, %v2390, 1326507024
        %v2405 = vsel %vm2393, %v2387, %v2404
        %v2406 = vsel %vm2392, %v2403, %v2405
        %v2407 = vshll.u32 %v2367, 8
        %v2408 = vand.u32 %v2407, 65535
        %v2409 = vshrl.u32 %v2407, 16
        %v2410 = vand.u32 %v2406, 65535
        %v2411 = vshrl.u32 %v2406, 16
        %v2412 = vmul.u32 %v2408, %v2410
        %v2413 = vmul.u32 %v2408, %v2411
        %v2414 = vmul.u32 %v2409, %v2410
        %v2415 = vmul.u32 %v2409, %v2411
        %v2416 = vshll.u32 %v2413, 16
        %v2417 = vshrl.u32 %v2413, 16
        %v2418 = vshll.u32 %v2414, 16
        %v2419 = vshrl.u32 %v2414, 16
        %vm2420 = vc.u32 %v2412, %v2416
        %v2421 = vsel %vm2420, 1, 0
        %v2422 = vadd.s32 %v2412, %v2416
        %v2423 = vadd.s32 %v2415, %v2421
        %vm2424 = vc.u32 %v2422, %v2418
        %v2425 = vsel %vm2424, 1, 0
        %v2426 = vadd.s32 %v2422, %v2418
        %v2427 = vadd.s32 %v2423, %v2425
        %v2428 = vadd.s32 %v2427, %v2417
        %v2429 = vadd.s32 %v2428, %v2419
        %v2430 = vand.u32 %v2407, 65535
        %v2431 = vshrl.u32 %v2407, 16
        %v2432 = vand.u32 %v2402, 65535
        %v2433 = vshrl.u32 %v2402, 16
        %v2434 = vmul.u32 %v2430, %v2432
        %v2435 = vmul.u32 %v2430, %v2433
        %v2436 = vmul.u32 %v2431, %v2432
        %v2437 = vmul.u32 %v2431, %v2433
        %v2438 = vshll.u32 %v2435, 16
        %v2439 = vshrl.u32 %v2435, 16
        %v2440 = vshll.u32 %v2436, 16
        %v2441 = vshrl.u32 %v2436, 16
        %vm2442 = vc.u32 %v2434, %v2438
        %v2443 = vsel %vm2442, 1, 0
        %v2444 = vadd.s32 %v2434, %v2438
        %v2445 = vadd.s32 %v2437, %v2443
        %vm2446 = vc.u32 %v2444, %v2440
        %v2447 = vsel %vm2446, 1, 0
        %v2448 = vadd.s32 %v2444, %v2440
        %v2449 = vadd.s32 %v2445, %v2447
        %v2450 = vadd.s32 %v2449, %v2439
        %v2451 = vadd.s32 %v2450, %v2441
        %v2452 = vmul.u32 %v2407, %v2398
        %v2453 = vadd.s32 %v2429, %v2448
        %vm2454 = vc.u32 %v2429, %v2448
        %v2455 = vadd.s32 %v2451, 1
        %v2456 = vsel %vm2454, %v2455, %v2451
        %v2457 = vadd.s32 %v2452, %v2456
        %v2458 = vadd.s32 %v2457, 536870912
        %v2459 = vshrl.u32 %v2458, 30
        %v2460 = vshll.u32 %v2459, 30
        %v2461 = vsub.s32 %v2457, %v2460
        %vm2462 = vcmp.lt.s32.totalorder %v2461, 0
        %v2463 = vsub.s32 0, %v2461
        %v2464 = vsel %vm2462, %v2463, %v2461
        %v2465 = vclz %v2464
        %v2466 = vsub.s32 %v2465, 2
        %vm2467 = vcmp.gt.s32.totalorder 0, %v2466
        %v2468 = vsel %vm2467, 0, %v2466
        %v2469 = vsub.s32 32, %v2468
        %v2470 = vshll.u32 %v2461, %v2468
        %v2471 = vshrl.u32 %v2453, %v2469
        %v2472 = vor.u32 %v2470, %v2471
        %v2473 = vsub.s32 4294967266, %v2468
        %v2474 = vadd.s32 %v2473, 127
        %v2475 = vshll.u32 %v2474, 23
        %v2476 = vor.u32 4788187, %v2475
        %v2477 = vand.u32 2147483647, %v2476
        %v2479 = vcvt.s32.f32 %v2472
        %v2480 = vmul.f32 %v2479, %v2477
        %v2481 = vxor.u32 %v2480, 2147483648
        %v2482 = vsel %vm2361, %v2481, %v2480
        %v2483 = vsub.s32 4, %v2459
        %v2484 = vsel %vm2361, %v2483, %v2459
        %v2485 = vsel %vm2360, %v201, %v2482
        %v2486 = vsel %vm2360, 0, %v2484
        %v2487 = vmul.f32 %v2485, %v2485
        %v2488 = vmul.f32 %v2487, -0.001358992
        %v2489 = vadd.f32 %v2488, 0.041655596
        %v2490 = vmul.f32 %v2487, %v2489
        %v2491 = vadd.f32 %v2490, -0.4999988
        %v2492 = vmul.f32 %v2487, %v2491
        %v2493 = vadd.f32 1.0, %v2492
        %v2494 = vmul.f32 %v2485, %v2485
        %v2495 = vmul.f32 %v2494, -0.00019511016
        %v2496 = vadd.f32 %v2495, 0.008332121
        %v2497 = vmul.f32 %v2494, %v2496
        %v2498 = vadd.f32 %v2497, -0.16666654
        %v2499 = vmul.f32 %v2494, %v2498
        %v2500 = vadd.f32 %v2499, 1.0
        %v2501 = vmul.f32 %v2500, %v2485
        %vm2502 = vweird.f32 %v201
        %v2503 = vand.u32 %v2486, 3
        %vm2504 = vcmp.lt.s32.totalorder %v2503, 2
        %vm2505 = vcmp.eq.s32.totalorder %v2503, 0
        %v2506 = vxor.u32 %v2501, 2147483648
        %v2507 = vsel %vm2505, %v2493, %v2506
        %vm2508 = vcmp.eq.s32.totalorder %v2503, 2
        %v2509 = vxor.u32 %v2493, 2147483648
        %v2510 = vsel %vm2508, %v2509, %v2501
        %v2511 = vsel %vm2504, %v2507, %v2510
        %v2512 = vsel %vm2502, nan, %v2511
        %v2513 = vand.u32 2147483647, %v202
        %vm2514 = vcmp.le.f32.partialorder %v2513, 0.7853982
        %vm2515 = vcmp.lt.s32.totalorder %v202, 0
        %v2516 = vand.u32 %v202, 2139095040
        %v2517 = vshrl.u32 %v2516, 23
        %v2518 = vsub.s32 %v2517, 127
        %v2519 = vand.u32 2147483647, %v202
        %v2520 = vand.u32 %v2519, 8388607
        %v2521 = vor.u32 %v2520, 8388608
        %v2522 = vsub.s32 0, %v2521
        %v2523 = vadd.s32 %v2518, 1
        %vm2524 = vcmp.gt.s32.totalorder %v2523, 0
        %v2525 = vsel %vm2524, %v2523, 0
        %v2526 = vshrl.u32 %v2525, 5
        %v2527 = vand.u32 %v2525, 31
        %v2528 = vsub.s32 32, %v2527
        %v2529 = vshrl.u32 683565275, %v2528
        %v2530 = vshll.u32 683565275, %v2527
        %v2531 = vshrl.u32 2475754826, %v2528
        %v2532 = vor.u32 %v2530, %v2531
        %v2533 = vshll.u32 2475754826, %v2527
        %v2534 = vshrl.u32 2131351028, %v2528
        %v2535 = vor.u32 %v2533, %v2534
        %v2536 = vshll.u32 2131351028, %v2527
        %v2537 = vshrl.u32 2102212464, %v2528
        %v2538 = vor.u32 %v2536, %v2537
        %v2539 = vshll.u32 2102212464, %v2527
        %v2540 = vshrl.u32 920167782, %v2528
        %v2541 = vor.u32 %v2539, %v2540
        %v2542 = vshll.u32 920167782, %v2527
        %v2543 = vshrl.u32 1326507024, %v2528
        %v2544 = vor.u32 %v2542, %v2543
        %vm2545 = vcmp.lt.s32.totalorder %v2526, 1
        %vm2546 = vcmp.lt.s32.totalorder %v2526, 2
        %vm2547 = vcmp.lt.s32.totalorder %v2526, 3
        %vm2548 = vcmp.lt.s32.totalorder %v2526, 4
        %v2549 = vsel %vm2545, %v2529, %v2532
        %v2550 = vsel %vm2548, %v2538, 2102212464
        %v2551 = vsel %vm2547, %v2535, %v2550
        %v2552 = vsel %vm2546, %v2549, %v2551
        %v2553 = vsel %vm2545, %v2532, %v2535
        %v2554 = vsel %vm2548, %v2541, 920167782
        %v2555 = vsel %vm2547, %v2538, %v2554
        %v2556 = vsel %vm2546, %v2553, %v2555
        %v2557 = vsel %vm2545, %v2535, %v2538
        %v2558 = vsel %vm2548, %v2544, 1326507024
        %v2559 = vsel %vm2547, %v2541, %v2558
        %v2560 = vsel %vm2546, %v2557, %v2559
        %v2561 = vshll.u32 %v2521, 8
        %v2562 = vand.u32 %v2561, 65535
        %v2563 = vshrl.u32 %v2561, 16
        %v2564 = vand.u32 %v2560, 65535
        %v2565 = vshrl.u32 %v2560, 16
        %v2566 = vmul.u32 %v2562, %v2564
        %v2567 = vmul.u32 %v2562, %v2565
        %v2568 = vmul.u32 %v2563, %v2564
        %v2569 = vmul.u32 %v2563, %v2565
        %v2570 = vshll.u32 %v2567, 16
        %v2571 = vshrl.u32 %v2567, 16
        %v2572 = vshll.u32 %v2568, 16
        %v2573 = vshrl.u32 %v2568, 16
        %vm2574 = vc.u32 %v2566, %v2570
        %v2575 = vsel %vm2574, 1, 0
        %v2576 = vadd.s32 %v2566, %v2570
        %v2577 = vadd.s32 %v2569, %v2575
        %vm2578 = vc.u32 %v2576, %v2572
        %v2579 = vsel %vm2578, 1, 0
        %v2580 = vadd.s32 %v2576, %v2572
        %v2581 = vadd.s32 %v2577, %v2579
        %v2582 = vadd.s32 %v2581, %v2571
        %v2583 = vadd.s32 %v2582, %v2573
        %v2584 = vand.u32 %v2561, 65535
        %v2585 = vshrl.u32 %v2561, 16
        %v2586 = vand.u32 %v2556, 65535
        %v2587 = vshrl.u32 %v2556, 16
        %v2588 = vmul.u32 %v2584, %v2586
        %v2589 = vmul.u32 %v2584, %v2587
        %v2590 = vmul.u32 %v2585, %v2586
        %v2591 = vmul.u32 %v2585, %v2587
        %v2592 = vshll.u32 %v2589, 16
        %v2593 = vshrl.u32 %v2589, 16
        %v2594 = vshll.u32 %v2590, 16
        %v2595 = vshrl.u32 %v2590, 16
        %vm2596 = vc.u32 %v2588, %v2592
        %v2597 = vsel %vm2596, 1, 0
        %v2598 = vadd.s32 %v2588, %v2592
        %v2599 = vadd.s32 %v2591, %v2597
        %vm2600 = vc.u32 %v2598, %v2594
        %v2601 = vsel %vm2600, 1, 0
        %v2602 = vadd.s32 %v2598, %v2594
        %v2603 = vadd.s32 %v2599, %v2601
        %v2604 = vadd.s32 %v2603, %v2593
        %v2605 = vadd.s32 %v2604, %v2595
        %v2606 = vmul.u32 %v2561, %v2552
        %v2607 = vadd.s32 %v2583, %v2602
        %vm2608 = vc.u32 %v2583, %v2602
        %v2609 = vadd.s32 %v2605, 1
        %v2610 = vsel %vm2608, %v2609, %v2605
        %v2611 = vadd.s32 %v2606, %v2610
        %v2612 = vadd.s32 %v2611, 536870912
        %v2613 = vshrl.u32 %v2612, 30
        %v2614 = vshll.u32 %v2613, 30
        %v2615 = vsub.s32 %v2611, %v2614
        %vm2616 = vcmp.lt.s32.totalorder %v2615, 0
        %v2617 = vsub.s32 0, %v2615
        %v2618 = vsel %vm2616, %v2617, %v2615
        %v2619 = vclz %v2618
        %v2620 = vsub.s32 %v2619, 2
        %vm2621 = vcmp.gt.s32.totalorder 0, %v2620
        %v2622 = vsel %vm2621, 0, %v2620
        %v2623 = vsub.s32 32, %v2622
        %v2624 = vshll.u32 %v2615, %v2622
        %v2625 = vshrl.u32 %v2607, %v2623
        %v2626 = vor.u32 %v2624, %v2625
        %v2627 = vsub.s32 4294967266, %v2622
        %v2628 = vadd.s32 %v2627, 127
        %v2629 = vshll.u32 %v2628, 23
        %v2630 = vor.u32 4788187, %v2629
        %v2631 = vand.u32 2147483647, %v2630
        %v2633 = vcvt.s32.f32 %v2626
        %v2634 = vmul.f32 %v2633, %v2631
        %v2635 = vxor.u32 %v2634, 2147483648
        %v2636 = vsel %vm2515, %v2635, %v2634
        %v2637 = vsub.s32 4, %v2613
        %v2638 = vsel %vm2515, %v2637, %v2613
        %v2639 = vsel %vm2514, %v202, %v2636
        %v2640 = vsel %vm2514, 0, %v2638
        %v2641 = vmul.f32 %v2639, %v2639
        %v2642 = vmul.f32 %v2641, -0.001358992
        %v2643 = vadd.f32 %v2642, 0.041655596
        %v2644 = vmul.f32 %v2641, %v2643
        %v2645 = vadd.f32 %v2644, -0.4999988
        %v2646 = vmul.f32 %v2641, %v2645
        %v2647 = vadd.f32 1.0, %v2646
        %v2648 = vmul.f32 %v2639, %v2639
        %v2649 = vmul.f32 %v2648, -0.00019511016
        %v2650 = vadd.f32 %v2649, 0.008332121
        %v2651 = vmul.f32 %v2648, %v2650
        %v2652 = vadd.f32 %v2651, -0.16666654
        %v2653 = vmul.f32 %v2648, %v2652
        %v2654 = vadd.f32 %v2653, 1.0
        %v2655 = vmul.f32 %v2654, %v2639
        %vm2656 = vweird.f32 %v202
        %v2657 = vand.u32 %v2640, 3
        %vm2658 = vcmp.lt.s32.totalorder %v2657, 2
        %vm2659 = vcmp.eq.s32.totalorder %v2657, 0
        %v2660 = vxor.u32 %v2655, 2147483648
        %v2661 = vsel %vm2659, %v2647, %v2660
        %vm2662 = vcmp.eq.s32.totalorder %v2657, 2
        %v2663 = vxor.u32 %v2647, 2147483648
        %v2664 = vsel %vm2662, %v2663, %v2655
        %v2665 = vsel %vm2658, %v2661, %v2664
        %v2666 = vsel %vm2656, nan, %v2665
        %v2667 = vand.u32 2147483647, %v187
        %vm2668 = vcmp.le.f32.partialorder %v2667, 0.7853982
        %vm2669 = vcmp.lt.s32.totalorder %v187, 0
        %v2670 = vand.u32 %v187, 2139095040
        %v2671 = vshrl.u32 %v2670, 23
        %v2672 = vsub.s32 %v2671, 127
        %v2673 = vand.u32 2147483647, %v187
        %v2674 = vand.u32 %v2673, 8388607
        %v2675 = vor.u32 %v2674, 8388608
        %v2676 = vsub.s32 0, %v2675
        %v2677 = vadd.s32 %v2672, 1
        %vm2678 = vcmp.gt.s32.totalorder %v2677, 0
        %v2679 = vsel %vm2678, %v2677, 0
        %v2680 = vshrl.u32 %v2679, 5
        %v2681 = vand.u32 %v2679, 31
        %v2682 = vsub.s32 32, %v2681
        %v2683 = vshrl.u32 683565275, %v2682
        %v2684 = vshll.u32 683565275, %v2681
        %v2685 = vshrl.u32 2475754826, %v2682
        %v2686 = vor.u32 %v2684, %v2685
        %v2687 = vshll.u32 2475754826, %v2681
        %v2688 = vshrl.u32 2131351028, %v2682
        %v2689 = vor.u32 %v2687, %v2688
        %v2690 = vshll.u32 2131351028, %v2681
        %v2691 = vshrl.u32 2102212464, %v2682
        %v2692 = vor.u32 %v2690, %v2691
        %v2693 = vshll.u32 2102212464, %v2681
        %v2694 = vshrl.u32 920167782, %v2682
        %v2695 = vor.u32 %v2693, %v2694
        %v2696 = vshll.u32 920167782, %v2681
        %v2697 = vshrl.u32 1326507024, %v2682
        %v2698 = vor.u32 %v2696, %v2697
        %vm2699 = vcmp.lt.s32.totalorder %v2680, 1
        %vm2700 = vcmp.lt.s32.totalorder %v2680, 2
        %vm2701 = vcmp.lt.s32.totalorder %v2680, 3
        %vm2702 = vcmp.lt.s32.totalorder %v2680, 4
        %v2703 = vsel %vm2699, %v2683, %v2686
        %v2704 = vsel %vm2702, %v2692, 2102212464
        %v2705 = vsel %vm2701, %v2689, %v2704
        %v2706 = vsel %vm2700, %v2703, %v2705
        %v2707 = vsel %vm2699, %v2686, %v2689
        %v2708 = vsel %vm2702, %v2695, 920167782
        %v2709 = vsel %vm2701, %v2692, %v2708
        %v2710 = vsel %vm2700, %v2707, %v2709
        %v2711 = vsel %vm2699, %v2689, %v2692
        %v2712 = vsel %vm2702, %v2698, 1326507024
        %v2713 = vsel %vm2701, %v2695, %v2712
        %v2714 = vsel %vm2700, %v2711, %v2713
        %v2715 = vshll.u32 %v2675, 8
        %v2716 = vand.u32 %v2715, 65535
        %v2717 = vshrl.u32 %v2715, 16
        %v2718 = vand.u32 %v2714, 65535
        %v2719 = vshrl.u32 %v2714, 16
        %v2720 = vmul.u32 %v2716, %v2718
        %v2721 = vmul.u32 %v2716, %v2719
        %v2722 = vmul.u32 %v2717, %v2718
        %v2723 = vmul.u32 %v2717, %v2719
        %v2724 = vshll.u32 %v2721, 16
        %v2725 = vshrl.u32 %v2721, 16
        %v2726 = vshll.u32 %v2722, 16
        %v2727 = vshrl.u32 %v2722, 16
        %vm2728 = vc.u32 %v2720, %v2724
        %v2729 = vsel %vm2728, 1, 0
        %v2730 = vadd.s32 %v2720, %v2724
        %v2731 = vadd.s32 %v2723, %v2729
        %vm2732 = vc.u32 %v2730, %v2726
        %v2733 = vsel %vm2732, 1, 0
        %v2734 = vadd.s32 %v2730, %v2726
        %v2735 = vadd.s32 %v2731, %v2733
        %v2736 = vadd.s32 %v2735, %v2725
        %v2737 = vadd.s32 %v2736, %v2727
        %v2738 = vand.u32 %v2715, 65535
        %v2739 = vshrl.u32 %v2715, 16
        %v2740 = vand.u32 %v2710, 65535
        %v2741 = vshrl.u32 %v2710, 16
        %v2742 = vmul.u32 %v2738, %v2740
        %v2743 = vmul.u32 %v2738, %v2741
        %v2744 = vmul.u32 %v2739, %v2740
        %v2745 = vmul.u32 %v2739, %v2741
        %v2746 = vshll.u32 %v2743, 16
        %v2747 = vshrl.u32 %v2743, 16
        %v2748 = vshll.u32 %v2744, 16
        %v2749 = vshrl.u32 %v2744, 16
        %vm2750 = vc.u32 %v2742, %v2746
        %v2751 = vsel %vm2750, 1, 0
        %v2752 = vadd.s32 %v2742, %v2746
        %v2753 = vadd.s32 %v2745, %v2751
        %vm2754 = vc.u32 %v2752, %v2748
        %v2755 = vsel %vm2754, 1, 0
        %v2756 = vadd.s32 %v2752, %v2748
        %v2757 = vadd.s32 %v2753, %v2755
        %v2758 = vadd.s32 %v2757, %v2747
        %v2759 = vadd.s32 %v2758, %v2749
        %v2760 = vmul.u32 %v2715, %v2706
        %v2761 = vadd.s32 %v2737, %v2756
        %vm2762 = vc.u32 %v2737, %v2756
        %v2763 = vadd.s32 %v2759, 1
        %v2764 = vsel %vm2762, %v2763, %v2759
        %v2765 = vadd.s32 %v2760, %v2764
        %v2766 = vadd.s32 %v2765, 536870912
        %v2767 = vshrl.u32 %v2766, 30
        %v2768 = vshll.u32 %v2767, 30
        %v2769 = vsub.s32 %v2765, %v2768
        %vm2770 = vcmp.lt.s32.totalorder %v2769, 0
        %v2771 = vsub.s32 0, %v2769
        %v2772 = vsel %vm2770, %v2771, %v2769
        %v2773 = vclz %v2772
        %v2774 = vsub.s32 %v2773, 2
        %vm2775 = vcmp.gt.s32.totalorder 0, %v2774
        %v2776 = vsel %vm2775, 0, %v2774
        %v2777 = vsub.s32 32, %v2776
        %v2778 = vshll.u32 %v2769, %v2776
        %v2779 = vshrl.u32 %v2761, %v2777
        %v2780 = vor.u32 %v2778, %v2779
        %v2781 = vsub.s32 4294967266, %v2776
        %v2782 = vadd.s32 %v2781, 127
        %v2783 = vshll.u32 %v2782, 23
        %v2784 = vor.u32 4788187, %v2783
        %v2785 = vand.u32 2147483647, %v2784
        %v2787 = vcvt.s32.f32 %v2780
        %v2788 = vmul.f32 %v2787, %v2785
        %v2789 = vxor.u32 %v2788, 2147483648
        %v2790 = vsel %vm2669, %v2789, %v2788
        %v2791 = vsub.s32 4, %v2767
        %v2792 = vsel %vm2669, %v2791, %v2767
        %v2793 = vsel %vm2668, %v187, %v2790
        %v2794 = vsel %vm2668, 0, %v2792
        %v2795 = vmul.f32 %v2793, %v2793
        %v2796 = vmul.f32 %v2795, -0.001358992
        %v2797 = vadd.f32 %v2796, 0.041655596
        %v2798 = vmul.f32 %v2795, %v2797
        %v2799 = vadd.f32 %v2798, -0.4999988
        %v2800 = vmul.f32 %v2795, %v2799
        %v2801 = vadd.f32 1.0, %v2800
        %v2802 = vmul.f32 %v2793, %v2793
        %v2803 = vmul.f32 %v2802, -0.00019511016
        %v2804 = vadd.f32 %v2803, 0.008332121
        %v2805 = vmul.f32 %v2802, %v2804
        %v2806 = vadd.f32 %v2805, -0.16666654
        %v2807 = vmul.f32 %v2802, %v2806
        %v2808 = vadd.f32 %v2807, 1.0
        %v2809 = vmul.f32 %v2808, %v2793
        %vm2810 = vweird.f32 %v187
        %v2811 = vadd.s32 %v2794, 3
        %v2812 = vand.u32 %v2811, 3
        %vm2813 = vcmp.lt.s32.totalorder %v2812, 2
        %vm2814 = vcmp.eq.s32.totalorder %v2812, 0
        %v2815 = vxor.u32 %v2809, 2147483648
        %v2816 = vsel %vm2814, %v2801, %v2815
        %vm2817 = vcmp.eq.s32.totalorder %v2812, 2
        %v2818 = vxor.u32 %v2801, 2147483648
        %v2819 = vsel %vm2817, %v2818, %v2809
        %v2820 = vsel %vm2813, %v2816, %v2819
        %v2821 = vsel %vm2810, nan, %v2820
        %v2822 = vand.u32 2147483647, %v188
        %vm2823 = vcmp.le.f32.partialorder %v2822, 0.7853982
        %vm2824 = vcmp.lt.s32.totalorder %v188, 0
        %v2825 = vand.u32 %v188, 2139095040
        %v2826 = vshrl.u32 %v2825, 23
        %v2827 = vsub.s32 %v2826, 127
        %v2828 = vand.u32 2147483647, %v188
        %v2829 = vand.u32 %v2828, 8388607
        %v2830 = vor.u32 %v2829, 8388608
        %v2831 = vsub.s32 0, %v2830
        %v2832 = vadd.s32 %v2827, 1
        %vm2833 = vcmp.gt.s32.totalorder %v2832, 0
        %v2834 = vsel %vm2833, %v2832, 0
        %v2835 = vshrl.u32 %v2834, 5
        %v2836 = vand.u32 %v2834, 31
        %v2837 = vsub.s32 32, %v2836
        %v2838 = vshrl.u32 683565275, %v2837
        %v2839 = vshll.u32 683565275, %v2836
        %v2840 = vshrl.u32 2475754826, %v2837
        %v2841 = vor.u32 %v2839, %v2840
        %v2842 = vshll.u32 2475754826, %v2836
        %v2843 = vshrl.u32 2131351028, %v2837
        %v2844 = vor.u32 %v2842, %v2843
        %v2845 = vshll.u32 2131351028, %v2836
        %v2846 = vshrl.u32 2102212464, %v2837
        %v2847 = vor.u32 %v2845, %v2846
        %v2848 = vshll.u32 2102212464, %v2836
        %v2849 = vshrl.u32 920167782, %v2837
        %v2850 = vor.u32 %v2848, %v2849
        %v2851 = vshll.u32 920167782, %v2836
        %v2852 = vshrl.u32 1326507024, %v2837
        %v2853 = vor.u32 %v2851, %v2852
        %vm2854 = vcmp.lt.s32.totalorder %v2835, 1
        %vm2855 = vcmp.lt.s32.totalorder %v2835, 2
        %vm2856 = vcmp.lt.s32.totalorder %v2835, 3
        %vm2857 = vcmp.lt.s32.totalorder %v2835, 4
        %v2858 = vsel %vm2854, %v2838, %v2841
        %v2859 = vsel %vm2857, %v2847, 2102212464
        %v2860 = vsel %vm2856, %v2844, %v2859
        %v2861 = vsel %vm2855, %v2858, %v2860
        %v2862 = vsel %vm2854, %v2841, %v2844
        %v2863 = vsel %vm2857, %v2850, 920167782
        %v2864 = vsel %vm2856, %v2847, %v2863
        %v2865 = vsel %vm2855, %v2862, %v2864
        %v2866 = vsel %vm2854, %v2844, %v2847
        %v2867 = vsel %vm2857, %v2853, 1326507024
        %v2868 = vsel %vm2856, %v2850, %v2867
        %v2869 = vsel %vm2855, %v2866, %v2868
        %v2870 = vshll.u32 %v2830, 8
        %v2871 = vand.u32 %v2870, 65535
        %v2872 = vshrl.u32 %v2870, 16
        %v2873 = vand.u32 %v2869, 65535
        %v2874 = vshrl.u32 %v2869, 16
        %v2875 = vmul.u32 %v2871, %v2873
        %v2876 = vmul.u32 %v2871, %v2874
        %v2877 = vmul.u32 %v2872, %v2873
        %v2878 = vmul.u32 %v2872, %v2874
        %v2879 = vshll.u32 %v2876, 16
        %v2880 = vshrl.u32 %v2876, 16
        %v2881 = vshll.u32 %v2877, 16
        %v2882 = vshrl.u32 %v2877, 16
        %vm2883 = vc.u32 %v2875, %v2879
        %v2884 = vsel %vm2883, 1, 0
        %v2885 = vadd.s32 %v2875, %v2879
        %v2886 = vadd.s32 %v2878, %v2884
        %vm2887 = vc.u32 %v2885, %v2881
        %v2888 = vsel %vm2887, 1, 0
        %v2889 = vadd.s32 %v2885, %v2881
        %v2890 = vadd.s32 %v2886, %v2888
        %v2891 = vadd.s32 %v2890, %v2880
        %v2892 = vadd.s32 %v2891, %v2882
        %v2893 = vand.u32 %v2870, 65535
        %v2894 = vshrl.u32 %v2870, 16
        %v2895 = vand.u32 %v2865, 65535
        %v2896 = vshrl.u32 %v2865, 16
        %v2897 = vmul.u32 %v2893, %v2895
        %v2898 = vmul.u32 %v2893, %v2896
        %v2899 = vmul.u32 %v2894, %v2895
        %v2900 = vmul.u32 %v2894, %v2896
        %v2901 = vshll.u32 %v2898, 16
        %v2902 = vshrl.u32 %v2898, 16
        %v2903 = vshll.u32 %v2899, 16
        %v2904 = vshrl.u32 %v2899, 16
        %vm2905 = vc.u32 %v2897, %v2901
        %v2906 = vsel %vm2905, 1, 0
        %v2907 = vadd.s32 %v2897, %v2901
        %v2908 = vadd.s32 %v2900, %v2906
        %vm2909 = vc.u32 %v2907, %v2903
        %v2910 = vsel %vm2909, 1, 0
        %v2911 = vadd.s32 %v2907, %v2903
        %v2912 = vadd.s32 %v2908, %v2910
        %v2913 = vadd.s32 %v2912, %v2902
        %v2914 = vadd.s32 %v2913, %v2904
        %v2915 = vmul.u32 %v2870, %v2861
        %v2916 = vadd.s32 %v2892, %v2911
        %vm2917 = vc.u32 %v2892, %v2911
        %v2918 = vadd.s32 %v2914, 1
        %v2919 = vsel %vm2917, %v2918, %v2914
        %v2920 = vadd.s32 %v2915, %v2919
        %v2921 = vadd.s32 %v2920, 536870912
        %v2922 = vshrl.u32 %v2921, 30
        %v2923 = vshll.u32 %v2922, 30
        %v2924 = vsub.s32 %v2920, %v2923
        %vm2925 = vcmp.lt.s32.totalorder %v2924, 0
        %v2926 = vsub.s32 0, %v2924
        %v2927 = vsel %vm2925, %v2926, %v2924
        %v2928 = vclz %v2927
        %v2929 = vsub.s32 %v2928, 2
        %vm2930 = vcmp.gt.s32.totalorder 0, %v2929
        %v2931 = vsel %vm2930, 0, %v2929
        %v2932 = vsub.s32 32, %v2931
        %v2933 = vshll.u32 %v2924, %v2931
        %v2934 = vshrl.u32 %v2916, %v2932
        %v2935 = vor.u32 %v2933, %v2934
        %v2936 = vsub.s32 4294967266, %v2931
        %v2937 = vadd.s32 %v2936, 127
        %v2938 = vshll.u32 %v2937, 23
        %v2939 = vor.u32 4788187, %v2938
        %v2940 = vand.u32 2147483647, %v2939
        %v2942 = vcvt.s32.f32 %v2935
        %v2943 = vmul.f32 %v2942, %v2940
        %v2944 = vxor.u32 %v2943, 2147483648
        %v2945 = vsel %vm2824, %v2944, %v2943
        %v2946 = vsub.s32 4, %v2922
        %v2947 = vsel %vm2824, %v2946, %v2922
        %v2948 = vsel %vm2823, %v188, %v2945
        %v2949 = vsel %vm2823, 0, %v2947
        %v2950 = vmul.f32 %v2948, %v2948
        %v2951 = vmul.f32 %v2950, -0.001358992
        %v2952 = vadd.f32 %v2951, 0.041655596
        %v2953 = vmul.f32 %v2950, %v2952
        %v2954 = vadd.f32 %v2953, -0.4999988
        %v2955 = vmul.f32 %v2950, %v2954
        %v2956 = vadd.f32 1.0, %v2955
        %v2957 = vmul.f32 %v2948, %v2948
        %v2958 = vmul.f32 %v2957, -0.00019511016
        %v2959 = vadd.f32 %v2958, 0.008332121
        %v2960 = vmul.f32 %v2957, %v2959
        %v2961 = vadd.f32 %v2960, -0.16666654
        %v2962 = vmul.f32 %v2957, %v2961
        %v2963 = vadd.f32 %v2962, 1.0
        %v2964 = vmul.f32 %v2963, %v2948
        %vm2965 = vweird.f32 %v188
        %v2966 = vadd.s32 %v2949, 3
        %v2967 = vand.u32 %v2966, 3
        %vm2968 = vcmp.lt.s32.totalorder %v2967, 2
        %vm2969 = vcmp.eq.s32.totalorder %v2967, 0
        %v2970 = vxor.u32 %v2964, 2147483648
        %v2971 = vsel %vm2969, %v2956, %v2970
        %vm2972 = vcmp.eq.s32.totalorder %v2967, 2
        %v2973 = vxor.u32 %v2956, 2147483648
        %v2974 = vsel %vm2972, %v2973, %v2964
        %v2975 = vsel %vm2968, %v2971, %v2974
        %v2976 = vsel %vm2965, nan, %v2975
        %v2977 = vand.u32 2147483647, %v189
        %vm2978 = vcmp.le.f32.partialorder %v2977, 0.7853982
        %vm2979 = vcmp.lt.s32.totalorder %v189, 0
        %v2980 = vand.u32 %v189, 2139095040
        %v2981 = vshrl.u32 %v2980, 23
        %v2982 = vsub.s32 %v2981, 127
        %v2983 = vand.u32 2147483647, %v189
        %v2984 = vand.u32 %v2983, 8388607
        %v2985 = vor.u32 %v2984, 8388608
        %v2986 = vsub.s32 0, %v2985
        %v2987 = vadd.s32 %v2982, 1
        %vm2988 = vcmp.gt.s32.totalorder %v2987, 0
        %v2989 = vsel %vm2988, %v2987, 0
        %v2990 = vshrl.u32 %v2989, 5
        %v2991 = vand.u32 %v2989, 31
        %v2992 = vsub.s32 32, %v2991
        %v2993 = vshrl.u32 683565275, %v2992
        %v2994 = vshll.u32 683565275, %v2991
        %v2995 = vshrl.u32 2475754826, %v2992
        %v2996 = vor.u32 %v2994, %v2995
        %v2997 = vshll.u32 2475754826, %v2991
        %v2998 = vshrl.u32 2131351028, %v2992
        %v2999 = vor.u32 %v2997, %v2998
        %v3000 = vshll.u32 2131351028, %v2991
        %v3001 = vshrl.u32 2102212464, %v2992
        %v3002 = vor.u32 %v3000, %v3001
        %v3003 = vshll.u32 2102212464, %v2991
        %v3004 = vshrl.u32 920167782, %v2992
        %v3005 = vor.u32 %v3003, %v3004
        %v3006 = vshll.u32 920167782, %v2991
        %v3007 = vshrl.u32 1326507024, %v2992
        %v3008 = vor.u32 %v3006, %v3007
        %vm3009 = vcmp.lt.s32.totalorder %v2990, 1
        %vm3010 = vcmp.lt.s32.totalorder %v2990, 2
        %vm3011 = vcmp.lt.s32.totalorder %v2990, 3
        %vm3012 = vcmp.lt.s32.totalorder %v2990, 4
        %v3013 = vsel %vm3009, %v2993, %v2996
        %v3014 = vsel %vm3012, %v3002, 2102212464
        %v3015 = vsel %vm3011, %v2999, %v3014
        %v3016 = vsel %vm3010, %v3013, %v3015
        %v3017 = vsel %vm3009, %v2996, %v2999
        %v3018 = vsel %vm3012, %v3005, 920167782
        %v3019 = vsel %vm3011, %v3002, %v3018
        %v3020 = vsel %vm3010, %v3017, %v3019
        %v3021 = vsel %vm3009, %v2999, %v3002
        %v3022 = vsel %vm3012, %v3008, 1326507024
        %v3023 = vsel %vm3011, %v3005, %v3022
        %v3024 = vsel %vm3010, %v3021, %v3023
        %v3025 = vshll.u32 %v2985, 8
        %v3026 = vand.u32 %v3025, 65535
        %v3027 = vshrl.u32 %v3025, 16
        %v3028 = vand.u32 %v3024, 65535
        %v3029 = vshrl.u32 %v3024, 16
        %v3030 = vmul.u32 %v3026, %v3028
        %v3031 = vmul.u32 %v3026, %v3029
        %v3032 = vmul.u32 %v3027, %v3028
        %v3033 = vmul.u32 %v3027, %v3029
        %v3034 = vshll.u32 %v3031, 16
        %v3035 = vshrl.u32 %v3031, 16
        %v3036 = vshll.u32 %v3032, 16
        %v3037 = vshrl.u32 %v3032, 16
        %vm3038 = vc.u32 %v3030, %v3034
        %v3039 = vsel %vm3038, 1, 0
        %v3040 = vadd.s32 %v3030, %v3034
        %v3041 = vadd.s32 %v3033, %v3039
        %vm3042 = vc.u32 %v3040, %v3036
        %v3043 = vsel %vm3042, 1, 0
        %v3044 = vadd.s32 %v3040, %v3036
        %v3045 = vadd.s32 %v3041, %v3043
        %v3046 = vadd.s32 %v3045, %v3035
        %v3047 = vadd.s32 %v3046, %v3037
        %v3048 = vand.u32 %v3025, 65535
        %v3049 = vshrl.u32 %v3025, 16
        %v3050 = vand.u32 %v3020, 65535
        %v3051 = vshrl.u32 %v3020, 16
        %v3052 = vmul.u32 %v3048, %v3050
        %v3053 = vmul.u32 %v3048, %v3051
        %v3054 = vmul.u32 %v3049, %v3050
        %v3055 = vmul.u32 %v3049, %v3051
        %v3056 = vshll.u32 %v3053, 16
        %v3057 = vshrl.u32 %v3053, 16
        %v3058 = vshll.u32 %v3054, 16
        %v3059 = vshrl.u32 %v3054, 16
        %vm3060 = vc.u32 %v3052, %v3056
        %v3061 = vsel %vm3060, 1, 0
        %v3062 = vadd.s32 %v3052, %v3056
        %v3063 = vadd.s32 %v3055, %v3061
        %vm3064 = vc.u32 %v3062, %v3058
        %v3065 = vsel %vm3064, 1, 0
        %v3066 = vadd.s32 %v3062, %v3058
        %v3067 = vadd.s32 %v3063, %v3065
        %v3068 = vadd.s32 %v3067, %v3057
        %v3069 = vadd.s32 %v3068, %v3059
        %v3070 = vmul.u32 %v3025, %v3016
        %v3071 = vadd.s32 %v3047, %v3066
        %vm3072 = vc.u32 %v3047, %v3066
        %v3073 = vadd.s32 %v3069, 1
        %v3074 = vsel %vm3072, %v3073, %v3069
        %v3075 = vadd.s32 %v3070, %v3074
        %v3076 = vadd.s32 %v3075, 536870912
        %v3077 = vshrl.u32 %v3076, 30
        %v3078 = vshll.u32 %v3077, 30
        %v3079 = vsub.s32 %v3075, %v3078
        %vm3080 = vcmp.lt.s32.totalorder %v3079, 0
        %v3081 = vsub.s32 0, %v3079
        %v3082 = vsel %vm3080, %v3081, %v3079
        %v3083 = vclz %v3082
        %v3084 = vsub.s32 %v3083, 2
        %vm3085 = vcmp.gt.s32.totalorder 0, %v3084
        %v3086 = vsel %vm3085, 0, %v3084
        %v3087 = vsub.s32 32, %v3086
        %v3088 = vshll.u32 %v3079, %v3086
        %v3089 = vshrl.u32 %v3071, %v3087
        %v3090 = vor.u32 %v3088, %v3089
        %v3091 = vsub.s32 4294967266, %v3086
        %v3092 = vadd.s32 %v3091, 127
        %v3093 = vshll.u32 %v3092, 23
        %v3094 = vor.u32 4788187, %v3093
        %v3095 = vand.u32 2147483647, %v3094
        %v3097 = vcvt.s32.f32 %v3090
        %v3098 = vmul.f32 %v3097, %v3095
        %v3099 = vxor.u32 %v3098, 2147483648
        %v3100 = vsel %vm2979, %v3099, %v3098
        %v3101 = vsub.s32 4, %v3077
        %v3102 = vsel %vm2979, %v3101, %v3077
        %v3103 = vsel %vm2978, %v189, %v3100
        %v3104 = vsel %vm2978, 0, %v3102
        %v3105 = vmul.f32 %v3103, %v3103
        %v3106 = vmul.f32 %v3105, -0.001358992
        %v3107 = vadd.f32 %v3106, 0.041655596
        %v3108 = vmul.f32 %v3105, %v3107
        %v3109 = vadd.f32 %v3108, -0.4999988
        %v3110 = vmul.f32 %v3105, %v3109
        %v3111 = vadd.f32 1.0, %v3110
        %v3112 = vmul.f32 %v3103, %v3103
        %v3113 = vmul.f32 %v3112, -0.00019511016
        %v3114 = vadd.f32 %v3113, 0.008332121
        %v3115 = vmul.f32 %v3112, %v3114
        %v3116 = vadd.f32 %v3115, -0.16666654
        %v3117 = vmul.f32 %v3112, %v3116
        %v3118 = vadd.f32 %v3117, 1.0
        %v3119 = vmul.f32 %v3118, %v3103
        %vm3120 = vweird.f32 %v189
        %v3121 = vadd.s32 %v3104, 3
        %v3122 = vand.u32 %v3121, 3
        %vm3123 = vcmp.lt.s32.totalorder %v3122, 2
        %vm3124 = vcmp.eq.s32.totalorder %v3122, 0
        %v3125 = vxor.u32 %v3119, 2147483648
        %v3126 = vsel %vm3124, %v3111, %v3125
        %vm3127 = vcmp.eq.s32.totalorder %v3122, 2
        %v3128 = vxor.u32 %v3111, 2147483648
        %v3129 = vsel %vm3127, %v3128, %v3119
        %v3130 = vsel %vm3123, %v3126, %v3129
        %v3131 = vsel %vm3120, nan, %v3130
        %v3132 = vand.u32 2147483647, %v190
        %vm3133 = vcmp.le.f32.partialorder %v3132, 0.7853982
        %vm3134 = vcmp.lt.s32.totalorder %v190, 0
        %v3135 = vand.u32 %v190, 2139095040
        %v3136 = vshrl.u32 %v3135, 23
        %v3137 = vsub.s32 %v3136, 127
        %v3138 = vand.u32 2147483647, %v190
        %v3139 = vand.u32 %v3138, 8388607
        %v3140 = vor.u32 %v3139, 8388608
        %v3141 = vsub.s32 0, %v3140
        %v3142 = vadd.s32 %v3137, 1
        %vm3143 = vcmp.gt.s32.totalorder %v3142, 0
        %v3144 = vsel %vm3143, %v3142, 0
        %v3145 = vshrl.u32 %v3144, 5
        %v3146 = vand.u32 %v3144, 31
        %v3147 = vsub.s32 32, %v3146
        %v3148 = vshrl.u32 683565275, %v3147
        %v3149 = vshll.u32 683565275, %v3146
        %v3150 = vshrl.u32 2475754826, %v3147
        %v3151 = vor.u32 %v3149, %v3150
        %v3152 = vshll.u32 2475754826, %v3146
        %v3153 = vshrl.u32 2131351028, %v3147
        %v3154 = vor.u32 %v3152, %v3153
        %v3155 = vshll.u32 2131351028, %v3146
        %v3156 = vshrl.u32 2102212464, %v3147
        %v3157 = vor.u32 %v3155, %v3156
        %v3158 = vshll.u32 2102212464, %v3146
        %v3159 = vshrl.u32 920167782, %v3147
        %v3160 = vor.u32 %v3158, %v3159
        %v3161 = vshll.u32 920167782, %v3146
        %v3162 = vshrl.u32 1326507024, %v3147
        %v3163 = vor.u32 %v3161, %v3162
        %vm3164 = vcmp.lt.s32.totalorder %v3145, 1
        %vm3165 = vcmp.lt.s32.totalorder %v3145, 2
        %vm3166 = vcmp.lt.s32.totalorder %v3145, 3
        %vm3167 = vcmp.lt.s32.totalorder %v3145, 4
        %v3168 = vsel %vm3164, %v3148, %v3151
        %v3169 = vsel %vm3167, %v3157, 2102212464
        %v3170 = vsel %vm3166, %v3154, %v3169
        %v3171 = vsel %vm3165, %v3168, %v3170
        %v3172 = vsel %vm3164, %v3151, %v3154
        %v3173 = vsel %vm3167, %v3160, 920167782
        %v3174 = vsel %vm3166, %v3157, %v3173
        %v3175 = vsel %vm3165, %v3172, %v3174
        %v3176 = vsel %vm3164, %v3154, %v3157
        %v3177 = vsel %vm3167, %v3163, 1326507024
        %v3178 = vsel %vm3166, %v3160, %v3177
        %v3179 = vsel %vm3165, %v3176, %v3178
        %v3180 = vshll.u32 %v3140, 8
        %v3181 = vand.u32 %v3180, 65535
        %v3182 = vshrl.u32 %v3180, 16
        %v3183 = vand.u32 %v3179, 65535
        %v3184 = vshrl.u32 %v3179, 16
        %v3185 = vmul.u32 %v3181, %v3183
        %v3186 = vmul.u32 %v3181, %v3184
        %v3187 = vmul.u32 %v3182, %v3183
        %v3188 = vmul.u32 %v3182, %v3184
        %v3189 = vshll.u32 %v3186, 16
        %v3190 = vshrl.u32 %v3186, 16
        %v3191 = vshll.u32 %v3187, 16
        %v3192 = vshrl.u32 %v3187, 16
        %vm3193 = vc.u32 %v3185, %v3189
        %v3194 = vsel %vm3193, 1, 0
        %v3195 = vadd.s32 %v3185, %v3189
        %v3196 = vadd.s32 %v3188, %v3194
        %vm3197 = vc.u32 %v3195, %v3191
        %v3198 = vsel %vm3197, 1, 0
        %v3199 = vadd.s32 %v3195, %v3191
        %v3200 = vadd.s32 %v3196, %v3198
        %v3201 = vadd.s32 %v3200, %v3190
        %v3202 = vadd.s32 %v3201, %v3192
        %v3203 = vand.u32 %v3180, 65535
        %v3204 = vshrl.u32 %v3180, 16
        %v3205 = vand.u32 %v3175, 65535
        %v3206 = vshrl.u32 %v3175, 16
        %v3207 = vmul.u32 %v3203, %v3205
        %v3208 = vmul.u32 %v3203, %v3206
        %v3209 = vmul.u32 %v3204, %v3205
        %v3210 = vmul.u32 %v3204, %v3206
        %v3211 = vshll.u32 %v3208, 16
        %v3212 = vshrl.u32 %v3208, 16
        %v3213 = vshll.u32 %v3209, 16
        %v3214 = vshrl.u32 %v3209, 16
        %vm3215 = vc.u32 %v3207, %v3211
        %v3216 = vsel %vm3215, 1, 0
        %v3217 = vadd.s32 %v3207, %v3211
        %v3218 = vadd.s32 %v3210, %v3216
        %vm3219 = vc.u32 %v3217, %v3213
        %v3220 = vsel %vm3219, 1, 0
        %v3221 = vadd.s32 %v3217, %v3213
        %v3222 = vadd.s32 %v3218, %v3220
        %v3223 = vadd.s32 %v3222, %v3212
        %v3224 = vadd.s32 %v3223, %v3214
        %v3225 = vmul.u32 %v3180, %v3171
        %v3226 = vadd.s32 %v3202, %v3221
        %vm3227 = vc.u32 %v3202, %v3221
        %v3228 = vadd.s32 %v3224, 1
        %v3229 = vsel %vm3227, %v3228, %v3224
        %v3230 = vadd.s32 %v3225, %v3229
        %v3231 = vadd.s32 %v3230, 536870912
        %v3232 = vshrl.u32 %v3231, 30
        %v3233 = vshll.u32 %v3232, 30
        %v3234 = vsub.s32 %v3230, %v3233
        %vm3235 = vcmp.lt.s32.totalorder %v3234, 0
        %v3236 = vsub.s32 0, %v3234
        %v3237 = vsel %vm3235, %v3236, %v3234
        %v3238 = vclz %v3237
        %v3239 = vsub.s32 %v3238, 2
        %vm3240 = vcmp.gt.s32.totalorder 0, %v3239
        %v3241 = vsel %vm3240, 0, %v3239
        %v3242 = vsub.s32 32, %v3241
        %v3243 = vshll.u32 %v3234, %v3241
        %v3244 = vshrl.u32 %v3226, %v3242
        %v3245 = vor.u32 %v3243, %v3244
        %v3246 = vsub.s32 4294967266, %v3241
        %v3247 = vadd.s32 %v3246, 127
        %v3248 = vshll.u32 %v3247, 23
        %v3249 = vor.u32 4788187, %v3248
        %v3250 = vand.u32 2147483647, %v3249
        %v3252 = vcvt.s32.f32 %v3245
        %v3253 = vmul.f32 %v3252, %v3250
        %v3254 = vxor.u32 %v3253, 2147483648
        %v3255 = vsel %vm3134, %v3254, %v3253
        %v3256 = vsub.s32 4, %v3232
        %v3257 = vsel %vm3134, %v3256, %v3232
        %v3258 = vsel %vm3133, %v190, %v3255
        %v3259 = vsel %vm3133, 0, %v3257
        %v3260 = vmul.f32 %v3258, %v3258
        %v3261 = vmul.f32 %v3260, -0.001358992
        %v3262 = vadd.f32 %v3261, 0.041655596
        %v3263 = vmul.f32 %v3260, %v3262
        %v3264 = vadd.f32 %v3263, -0.4999988
        %v3265 = vmul.f32 %v3260, %v3264
        %v3266 = vadd.f32 1.0, %v3265
        %v3267 = vmul.f32 %v3258, %v3258
        %v3268 = vmul.f32 %v3267, -0.00019511016
        %v3269 = vadd.f32 %v3268, 0.008332121
        %v3270 = vmul.f32 %v3267, %v3269
        %v3271 = vadd.f32 %v3270, -0.16666654
        %v3272 = vmul.f32 %v3267, %v3271
        %v3273 = vadd.f32 %v3272, 1.0
        %v3274 = vmul.f32 %v3273, %v3258
        %vm3275 = vweird.f32 %v190
        %v3276 = vadd.s32 %v3259, 3
        %v3277 = vand.u32 %v3276, 3
        %vm3278 = vcmp.lt.s32.totalorder %v3277, 2
        %vm3279 = vcmp.eq.s32.totalorder %v3277, 0
        %v3280 = vxor.u32 %v3274, 2147483648
        %v3281 = vsel %vm3279, %v3266, %v3280
        %vm3282 = vcmp.eq.s32.totalorder %v3277, 2
        %v3283 = vxor.u32 %v3266, 2147483648
        %v3284 = vsel %vm3282, %v3283, %v3274
        %v3285 = vsel %vm3278, %v3281, %v3284
        %v3286 = vsel %vm3275, nan, %v3285
        %v3287 = vand.u32 2147483647, %v191
        %vm3288 = vcmp.le.f32.partialorder %v3287, 0.7853982
        %vm3289 = vcmp.lt.s32.totalorder %v191, 0
        %v3290 = vand.u32 %v191, 2139095040
        %v3291 = vshrl.u32 %v3290, 23
        %v3292 = vsub.s32 %v3291, 127
        %v3293 = vand.u32 2147483647, %v191
        %v3294 = vand.u32 %v3293, 8388607
        %v3295 = vor.u32 %v3294, 8388608
        %v3296 = vsub.s32 0, %v3295
        %v3297 = vadd.s32 %v3292, 1
        %vm3298 = vcmp.gt.s32.totalorder %v3297, 0
        %v3299 = vsel %vm3298, %v3297, 0
        %v3300 = vshrl.u32 %v3299, 5
        %v3301 = vand.u32 %v3299, 31
        %v3302 = vsub.s32 32, %v3301
        %v3303 = vshrl.u32 683565275, %v3302
        %v3304 = vshll.u32 683565275, %v3301
        %v3305 = vshrl.u32 2475754826, %v3302
        %v3306 = vor.u32 %v3304, %v3305
        %v3307 = vshll.u32 2475754826, %v3301
        %v3308 = vshrl.u32 2131351028, %v3302
        %v3309 = vor.u32 %v3307, %v3308
        %v3310 = vshll.u32 2131351028, %v3301
        %v3311 = vshrl.u32 2102212464, %v3302
        %v3312 = vor.u32 %v3310, %v3311
        %v3313 = vshll.u32 2102212464, %v3301
        %v3314 = vshrl.u32 920167782, %v3302
        %v3315 = vor.u32 %v3313, %v3314
        %v3316 = vshll.u32 920167782, %v3301
        %v3317 = vshrl.u32 1326507024, %v3302
        %v3318 = vor.u32 %v3316, %v3317
        %vm3319 = vcmp.lt.s32.totalorder %v3300, 1
        %vm3320 = vcmp.lt.s32.totalorder %v3300, 2
        %vm3321 = vcmp.lt.s32.totalorder %v3300, 3
        %vm3322 = vcmp.lt.s32.totalorder %v3300, 4
        %v3323 = vsel %vm3319, %v3303, %v3306
        %v3324 = vsel %vm3322, %v3312, 2102212464
        %v3325 = vsel %vm3321, %v3309, %v3324
        %v3326 = vsel %vm3320, %v3323, %v3325
        %v3327 = vsel %vm3319, %v3306, %v3309
        %v3328 = vsel %vm3322, %v3315, 920167782
        %v3329 = vsel %vm3321, %v3312, %v3328
        %v3330 = vsel %vm3320, %v3327, %v3329
        %v3331 = vsel %vm3319, %v3309, %v3312
        %v3332 = vsel %vm3322, %v3318, 1326507024
        %v3333 = vsel %vm3321, %v3315, %v3332
        %v3334 = vsel %vm3320, %v3331, %v3333
        %v3335 = vshll.u32 %v3295, 8
        %v3336 = vand.u32 %v3335, 65535
        %v3337 = vshrl.u32 %v3335, 16
        %v3338 = vand.u32 %v3334, 65535
        %v3339 = vshrl.u32 %v3334, 16
        %v3340 = vmul.u32 %v3336, %v3338
        %v3341 = vmul.u32 %v3336, %v3339
        %v3342 = vmul.u32 %v3337, %v3338
        %v3343 = vmul.u32 %v3337, %v3339
        %v3344 = vshll.u32 %v3341, 16
        %v3345 = vshrl.u32 %v3341, 16
        %v3346 = vshll.u32 %v3342, 16
        %v3347 = vshrl.u32 %v3342, 16
        %vm3348 = vc.u32 %v3340, %v3344
        %v3349 = vsel %vm3348, 1, 0
        %v3350 = vadd.s32 %v3340, %v3344
        %v3351 = vadd.s32 %v3343, %v3349
        %vm3352 = vc.u32 %v3350, %v3346
        %v3353 = vsel %vm3352, 1, 0
        %v3354 = vadd.s32 %v3350, %v3346
        %v3355 = vadd.s32 %v3351, %v3353
        %v3356 = vadd.s32 %v3355, %v3345
        %v3357 = vadd.s32 %v3356, %v3347
        %v3358 = vand.u32 %v3335, 65535
        %v3359 = vshrl.u32 %v3335, 16
        %v3360 = vand.u32 %v3330, 65535
        %v3361 = vshrl.u32 %v3330, 16
        %v3362 = vmul.u32 %v3358, %v3360
        %v3363 = vmul.u32 %v3358, %v3361
        %v3364 = vmul.u32 %v3359, %v3360
        %v3365 = vmul.u32 %v3359, %v3361
        %v3366 = vshll.u32 %v3363, 16
        %v3367 = vshrl.u32 %v3363, 16
        %v3368 = vshll.u32 %v3364, 16
        %v3369 = vshrl.u32 %v3364, 16
        %vm3370 = vc.u32 %v3362, %v3366
        %v3371 = vsel %vm3370, 1, 0
        %v3372 = vadd.s32 %v3362, %v3366
        %v3373 = vadd.s32 %v3365, %v3371
        %vm3374 = vc.u32 %v3372, %v3368
        %v3375 = vsel %vm3374, 1, 0
        %v3376 = vadd.s32 %v3372, %v3368
        %v3377 = vadd.s32 %v3373, %v3375
        %v3378 = vadd.s32 %v3377, %v3367
        %v3379 = vadd.s32 %v3378, %v3369
        %v3380 = vmul.u32 %v3335, %v3326
        %v3381 = vadd.s32 %v3357, %v3376
        %vm3382 = vc.u32 %v3357, %v3376
        %v3383 = vadd.s32 %v3379, 1
        %v3384 = vsel %vm3382, %v3383, %v3379
        %v3385 = vadd.s32 %v3380, %v3384
        %v3386 = vadd.s32 %v3385, 536870912
        %v3387 = vshrl.u32 %v3386, 30
        %v3388 = vshll.u32 %v3387, 30
        %v3389 = vsub.s32 %v3385, %v3388
        %vm3390 = vcmp.lt.s32.totalorder %v3389, 0
        %v3391 = vsub.s32 0, %v3389
        %v3392 = vsel %vm3390, %v3391, %v3389
        %v3393 = vclz %v3392
        %v3394 = vsub.s32 %v3393, 2
        %vm3395 = vcmp.gt.s32.totalorder 0, %v3394
        %v3396 = vsel %vm3395, 0, %v3394
        %v3397 = vsub.s32 32, %v3396
        %v3398 = vshll.u32 %v3389, %v3396
        %v3399 = vshrl.u32 %v3381, %v3397
        %v3400 = vor.u32 %v3398, %v3399
        %v3401 = vsub.s32 4294967266, %v3396
        %v3402 = vadd.s32 %v3401, 127
        %v3403 = vshll.u32 %v3402, 23
        %v3404 = vor.u32 4788187, %v3403
        %v3405 = vand.u32 2147483647, %v3404
        %v3407 = vcvt.s32.f32 %v3400
        %v3408 = vmul.f32 %v3407, %v3405
        %v3409 = vxor.u32 %v3408, 2147483648
        %v3410 = vsel %vm3289, %v3409, %v3408
        %v3411 = vsub.s32 4, %v3387
        %v3412 = vsel %vm3289, %v3411, %v3387
        %v3413 = vsel %vm3288, %v191, %v3410
        %v3414 = vsel %vm3288, 0, %v3412
        %v3415 = vmul.f32 %v3413, %v3413
        %v3416 = vmul.f32 %v3415, -0.001358992
        %v3417 = vadd.f32 %v3416, 0.041655596
        %v3418 = vmul.f32 %v3415, %v3417
        %v3419 = vadd.f32 %v3418, -0.4999988
        %v3420 = vmul.f32 %v3415, %v3419
        %v3421 = vadd.f32 1.0, %v3420
        %v3422 = vmul.f32 %v3413, %v3413
        %v3423 = vmul.f32 %v3422, -0.00019511016
        %v3424 = vadd.f32 %v3423, 0.008332121
        %v3425 = vmul.f32 %v3422, %v3424
        %v3426 = vadd.f32 %v3425, -0.16666654
        %v3427 = vmul.f32 %v3422, %v3426
        %v3428 = vadd.f32 %v3427, 1.0
        %v3429 = vmul.f32 %v3428, %v3413
        %vm3430 = vweird.f32 %v191
        %v3431 = vadd.s32 %v3414, 3
        %v3432 = vand.u32 %v3431, 3
        %vm3433 = vcmp.lt.s32.totalorder %v3432, 2
        %vm3434 = vcmp.eq.s32.totalorder %v3432, 0
        %v3435 = vxor.u32 %v3429, 2147483648
        %v3436 = vsel %vm3434, %v3421, %v3435
        %vm3437 = vcmp.eq.s32.totalorder %v3432, 2
        %v3438 = vxor.u32 %v3421, 2147483648
        %v3439 = vsel %vm3437, %v3438, %v3429
        %v3440 = vsel %vm3433, %v3436, %v3439
        %v3441 = vsel %vm3430, nan, %v3440
        %v3442 = vand.u32 2147483647, %v192
        %vm3443 = vcmp.le.f32.partialorder %v3442, 0.7853982
        %vm3444 = vcmp.lt.s32.totalorder %v192, 0
        %v3445 = vand.u32 %v192, 2139095040
        %v3446 = vshrl.u32 %v3445, 23
        %v3447 = vsub.s32 %v3446, 127
        %v3448 = vand.u32 2147483647, %v192
        %v3449 = vand.u32 %v3448, 8388607
        %v3450 = vor.u32 %v3449, 8388608
        %v3451 = vsub.s32 0, %v3450
        %v3452 = vadd.s32 %v3447, 1
        %vm3453 = vcmp.gt.s32.totalorder %v3452, 0
        %v3454 = vsel %vm3453, %v3452, 0
        %v3455 = vshrl.u32 %v3454, 5
        %v3456 = vand.u32 %v3454, 31
        %v3457 = vsub.s32 32, %v3456
        %v3458 = vshrl.u32 683565275, %v3457
        %v3459 = vshll.u32 683565275, %v3456
        %v3460 = vshrl.u32 2475754826, %v3457
        %v3461 = vor.u32 %v3459, %v3460
        %v3462 = vshll.u32 2475754826, %v3456
        %v3463 = vshrl.u32 2131351028, %v3457
        %v3464 = vor.u32 %v3462, %v3463
        %v3465 = vshll.u32 2131351028, %v3456
        %v3466 = vshrl.u32 2102212464, %v3457
        %v3467 = vor.u32 %v3465, %v3466
        %v3468 = vshll.u32 2102212464, %v3456
        %v3469 = vshrl.u32 920167782, %v3457
        %v3470 = vor.u32 %v3468, %v3469
        %v3471 = vshll.u32 920167782, %v3456
        %v3472 = vshrl.u32 1326507024, %v3457
        %v3473 = vor.u32 %v3471, %v3472
        %vm3474 = vcmp.lt.s32.totalorder %v3455, 1
        %vm3475 = vcmp.lt.s32.totalorder %v3455, 2
        %vm3476 = vcmp.lt.s32.totalorder %v3455, 3
        %vm3477 = vcmp.lt.s32.totalorder %v3455, 4
        %v3478 = vsel %vm3474, %v3458, %v3461
        %v3479 = vsel %vm3477, %v3467, 2102212464
        %v3480 = vsel %vm3476, %v3464, %v3479
        %v3481 = vsel %vm3475, %v3478, %v3480
        %v3482 = vsel %vm3474, %v3461, %v3464
        %v3483 = vsel %vm3477, %v3470, 920167782
        %v3484 = vsel %vm3476, %v3467, %v3483
        %v3485 = vsel %vm3475, %v3482, %v3484
        %v3486 = vsel %vm3474, %v3464, %v3467
        %v3487 = vsel %vm3477, %v3473, 1326507024
        %v3488 = vsel %vm3476, %v3470, %v3487
        %v3489 = vsel %vm3475, %v3486, %v3488
        %v3490 = vshll.u32 %v3450, 8
        %v3491 = vand.u32 %v3490, 65535
        %v3492 = vshrl.u32 %v3490, 16
        %v3493 = vand.u32 %v3489, 65535
        %v3494 = vshrl.u32 %v3489, 16
        %v3495 = vmul.u32 %v3491, %v3493
        %v3496 = vmul.u32 %v3491, %v3494
        %v3497 = vmul.u32 %v3492, %v3493
        %v3498 = vmul.u32 %v3492, %v3494
        %v3499 = vshll.u32 %v3496, 16
        %v3500 = vshrl.u32 %v3496, 16
        %v3501 = vshll.u32 %v3497, 16
        %v3502 = vshrl.u32 %v3497, 16
        %vm3503 = vc.u32 %v3495, %v3499
        %v3504 = vsel %vm3503, 1, 0
        %v3505 = vadd.s32 %v3495, %v3499
        %v3506 = vadd.s32 %v3498, %v3504
        %vm3507 = vc.u32 %v3505, %v3501
        %v3508 = vsel %vm3507, 1, 0
        %v3509 = vadd.s32 %v3505, %v3501
        %v3510 = vadd.s32 %v3506, %v3508
        %v3511 = vadd.s32 %v3510, %v3500
        %v3512 = vadd.s32 %v3511, %v3502
        %v3513 = vand.u32 %v3490, 65535
        %v3514 = vshrl.u32 %v3490, 16
        %v3515 = vand.u32 %v3485, 65535
        %v3516 = vshrl.u32 %v3485, 16
        %v3517 = vmul.u32 %v3513, %v3515
        %v3518 = vmul.u32 %v3513, %v3516
        %v3519 = vmul.u32 %v3514, %v3515
        %v3520 = vmul.u32 %v3514, %v3516
        %v3521 = vshll.u32 %v3518, 16
        %v3522 = vshrl.u32 %v3518, 16
        %v3523 = vshll.u32 %v3519, 16
        %v3524 = vshrl.u32 %v3519, 16
        %vm3525 = vc.u32 %v3517, %v3521
        %v3526 = vsel %vm3525, 1, 0
        %v3527 = vadd.s32 %v3517, %v3521
        %v3528 = vadd.s32 %v3520, %v3526
        %vm3529 = vc.u32 %v3527, %v3523
        %v3530 = vsel %vm3529, 1, 0
        %v3531 = vadd.s32 %v3527, %v3523
        %v3532 = vadd.s32 %v3528, %v3530
        %v3533 = vadd.s32 %v3532, %v3522
        %v3534 = vadd.s32 %v3533, %v3524
        %v3535 = vmul.u32 %v3490, %v3481
        %v3536 = vadd.s32 %v3512, %v3531
        %vm3537 = vc.u32 %v3512, %v3531
        %v3538 = vadd.s32 %v3534, 1
        %v3539 = vsel %vm3537, %v3538, %v3534
        %v3540 = vadd.s32 %v3535, %v3539
        %v3541 = vadd.s32 %v3540, 536870912
        %v3542 = vshrl.u32 %v3541, 30
        %v3543 = vshll.u32 %v3542, 30
        %v3544 = vsub.s32 %v3540, %v3543
        %vm3545 = vcmp.lt.s32.totalorder %v3544, 0
        %v3546 = vsub.s32 0, %v3544
        %v3547 = vsel %vm3545, %v3546, %v3544
        %v3548 = vclz %v3547
        %v3549 = vsub.s32 %v3548, 2
        %vm3550 = vcmp.gt.s32.totalorder 0, %v3549
        %v3551 = vsel %vm3550, 0, %v3549
        %v3552 = vsub.s32 32, %v3551
        %v3553 = vshll.u32 %v3544, %v3551
        %v3554 = vshrl.u32 %v3536, %v3552
        %v3555 = vor.u32 %v3553, %v3554
        %v3556 = vsub.s32 4294967266, %v3551
        %v3557 = vadd.s32 %v3556, 127
        %v3558 = vshll.u32 %v3557, 23
        %v3559 = vor.u32 4788187, %v3558
        %v3560 = vand.u32 2147483647, %v3559
        %v3562 = vcvt.s32.f32 %v3555
        %v3563 = vmul.f32 %v3562, %v3560
        %v3564 = vxor.u32 %v3563, 2147483648
        %v3565 = vsel %vm3444, %v3564, %v3563
        %v3566 = vsub.s32 4, %v3542
        %v3567 = vsel %vm3444, %v3566, %v3542
        %v3568 = vsel %vm3443, %v192, %v3565
        %v3569 = vsel %vm3443, 0, %v3567
        %v3570 = vmul.f32 %v3568, %v3568
        %v3571 = vmul.f32 %v3570, -0.001358992
        %v3572 = vadd.f32 %v3571, 0.041655596
        %v3573 = vmul.f32 %v3570, %v3572
        %v3574 = vadd.f32 %v3573, -0.4999988
        %v3575 = vmul.f32 %v3570, %v3574
        %v3576 = vadd.f32 1.0, %v3575
        %v3577 = vmul.f32 %v3568, %v3568
        %v3578 = vmul.f32 %v3577, -0.00019511016
        %v3579 = vadd.f32 %v3578, 0.008332121
        %v3580 = vmul.f32 %v3577, %v3579
        %v3581 = vadd.f32 %v3580, -0.16666654
        %v3582 = vmul.f32 %v3577, %v3581
        %v3583 = vadd.f32 %v3582, 1.0
        %v3584 = vmul.f32 %v3583, %v3568
        %vm3585 = vweird.f32 %v192
        %v3586 = vadd.s32 %v3569, 3
        %v3587 = vand.u32 %v3586, 3
        %vm3588 = vcmp.lt.s32.totalorder %v3587, 2
        %vm3589 = vcmp.eq.s32.totalorder %v3587, 0
        %v3590 = vxor.u32 %v3584, 2147483648
        %v3591 = vsel %vm3589, %v3576, %v3590
        %vm3592 = vcmp.eq.s32.totalorder %v3587, 2
        %v3593 = vxor.u32 %v3576, 2147483648
        %v3594 = vsel %vm3592, %v3593, %v3584
        %v3595 = vsel %vm3588, %v3591, %v3594
        %v3596 = vsel %vm3585, nan, %v3595
        %v3597 = vand.u32 2147483647, %v193
        %vm3598 = vcmp.le.f32.partialorder %v3597, 0.7853982
        %vm3599 = vcmp.lt.s32.totalorder %v193, 0
        %v3600 = vand.u32 %v193, 2139095040
        %v3601 = vshrl.u32 %v3600, 23
        %v3602 = vsub.s32 %v3601, 127
        %v3603 = vand.u32 2147483647, %v193
        %v3604 = vand.u32 %v3603, 8388607
        %v3605 = vor.u32 %v3604, 8388608
        %v3606 = vsub.s32 0, %v3605
        %v3607 = vadd.s32 %v3602, 1
        %vm3608 = vcmp.gt.s32.totalorder %v3607, 0
        %v3609 = vsel %vm3608, %v3607, 0
        %v3610 = vshrl.u32 %v3609, 5
        %v3611 = vand.u32 %v3609, 31
        %v3612 = vsub.s32 32, %v3611
        %v3613 = vshrl.u32 683565275, %v3612
        %v3614 = vshll.u32 683565275, %v3611
        %v3615 = vshrl.u32 2475754826, %v3612
        %v3616 = vor.u32 %v3614, %v3615
        %v3617 = vshll.u32 2475754826, %v3611
        %v3618 = vshrl.u32 2131351028, %v3612
        %v3619 = vor.u32 %v3617, %v3618
        %v3620 = vshll.u32 2131351028, %v3611
        %v3621 = vshrl.u32 2102212464, %v3612
        %v3622 = vor.u32 %v3620, %v3621
        %v3623 = vshll.u32 2102212464, %v3611
        %v3624 = vshrl.u32 920167782, %v3612
        %v3625 = vor.u32 %v3623, %v3624
        %v3626 = vshll.u32 920167782, %v3611
        %v3627 = vshrl.u32 1326507024, %v3612
        %v3628 = vor.u32 %v3626, %v3627
        %vm3629 = vcmp.lt.s32.totalorder %v3610, 1
        %vm3630 = vcmp.lt.s32.totalorder %v3610, 2
        %vm3631 = vcmp.lt.s32.totalorder %v3610, 3
        %vm3632 = vcmp.lt.s32.totalorder %v3610, 4
        %v3633 = vsel %vm3629, %v3613, %v3616
        %v3634 = vsel %vm3632, %v3622, 2102212464
        %v3635 = vsel %vm3631, %v3619, %v3634
        %v3636 = vsel %vm3630, %v3633, %v3635
        %v3637 = vsel %vm3629, %v3616, %v3619
        %v3638 = vsel %vm3632, %v3625, 920167782
        %v3639 = vsel %vm3631, %v3622, %v3638
        %v3640 = vsel %vm3630, %v3637, %v3639
        %v3641 = vsel %vm3629, %v3619, %v3622
        %v3642 = vsel %vm3632, %v3628, 1326507024
        %v3643 = vsel %vm3631, %v3625, %v3642
        %v3644 = vsel %vm3630, %v3641, %v3643
        %v3645 = vshll.u32 %v3605, 8
        %v3646 = vand.u32 %v3645, 65535
        %v3647 = vshrl.u32 %v3645, 16
        %v3648 = vand.u32 %v3644, 65535
        %v3649 = vshrl.u32 %v3644, 16
        %v3650 = vmul.u32 %v3646, %v3648
        %v3651 = vmul.u32 %v3646, %v3649
        %v3652 = vmul.u32 %v3647, %v3648
        %v3653 = vmul.u32 %v3647, %v3649
        %v3654 = vshll.u32 %v3651, 16
        %v3655 = vshrl.u32 %v3651, 16
        %v3656 = vshll.u32 %v3652, 16
        %v3657 = vshrl.u32 %v3652, 16
        %vm3658 = vc.u32 %v3650, %v3654
        %v3659 = vsel %vm3658, 1, 0
        %v3660 = vadd.s32 %v3650, %v3654
        %v3661 = vadd.s32 %v3653, %v3659
        %vm3662 = vc.u32 %v3660, %v3656
        %v3663 = vsel %vm3662, 1, 0
        %v3664 = vadd.s32 %v3660, %v3656
        %v3665 = vadd.s32 %v3661, %v3663
        %v3666 = vadd.s32 %v3665, %v3655
        %v3667 = vadd.s32 %v3666, %v3657
        %v3668 = vand.u32 %v3645, 65535
        %v3669 = vshrl.u32 %v3645, 16
        %v3670 = vand.u32 %v3640, 65535
        %v3671 = vshrl.u32 %v3640, 16
        %v3672 = vmul.u32 %v3668, %v3670
        %v3673 = vmul.u32 %v3668, %v3671
        %v3674 = vmul.u32 %v3669, %v3670
        %v3675 = vmul.u32 %v3669, %v3671
        %v3676 = vshll.u32 %v3673, 16
        %v3677 = vshrl.u32 %v3673, 16
        %v3678 = vshll.u32 %v3674, 16
        %v3679 = vshrl.u32 %v3674, 16
        %vm3680 = vc.u32 %v3672, %v3676
        %v3681 = vsel %vm3680, 1, 0
        %v3682 = vadd.s32 %v3672, %v3676
        %v3683 = vadd.s32 %v3675, %v3681
        %vm3684 = vc.u32 %v3682, %v3678
        %v3685 = vsel %vm3684, 1, 0
        %v3686 = vadd.s32 %v3682, %v3678
        %v3687 = vadd.s32 %v3683, %v3685
        %v3688 = vadd.s32 %v3687, %v3677
        %v3689 = vadd.s32 %v3688, %v3679
        %v3690 = vmul.u32 %v3645, %v3636
        %v3691 = vadd.s32 %v3667, %v3686
        %vm3692 = vc.u32 %v3667, %v3686
        %v3693 = vadd.s32 %v3689, 1
        %v3694 = vsel %vm3692, %v3693, %v3689
        %v3695 = vadd.s32 %v3690, %v3694
        %v3696 = vadd.s32 %v3695, 536870912
        %v3697 = vshrl.u32 %v3696, 30
        %v3698 = vshll.u32 %v3697, 30
        %v3699 = vsub.s32 %v3695, %v3698
        %vm3700 = vcmp.lt.s32.totalorder %v3699, 0
        %v3701 = vsub.s32 0, %v3699
        %v3702 = vsel %vm3700, %v3701, %v3699
        %v3703 = vclz %v3702
        %v3704 = vsub.s32 %v3703, 2
        %vm3705 = vcmp.gt.s32.totalorder 0, %v3704
        %v3706 = vsel %vm3705, 0, %v3704
        %v3707 = vsub.s32 32, %v3706
        %v3708 = vshll.u32 %v3699, %v3706
        %v3709 = vshrl.u32 %v3691, %v3707
        %v3710 = vor.u32 %v3708, %v3709
        %v3711 = vsub.s32 4294967266, %v3706
        %v3712 = vadd.s32 %v3711, 127
        %v3713 = vshll.u32 %v3712, 23
        %v3714 = vor.u32 4788187, %v3713
        %v3715 = vand.u32 2147483647, %v3714
        %v3717 = vcvt.s32.f32 %v3710
        %v3718 = vmul.f32 %v3717, %v3715
        %v3719 = vxor.u32 %v3718, 2147483648
        %v3720 = vsel %vm3599, %v3719, %v3718
        %v3721 = vsub.s32 4, %v3697
        %v3722 = vsel %vm3599, %v3721, %v3697
        %v3723 = vsel %vm3598, %v193, %v3720
        %v3724 = vsel %vm3598, 0, %v3722
        %v3725 = vmul.f32 %v3723, %v3723
        %v3726 = vmul.f32 %v3725, -0.001358992
        %v3727 = vadd.f32 %v3726, 0.041655596
        %v3728 = vmul.f32 %v3725, %v3727
        %v3729 = vadd.f32 %v3728, -0.4999988
        %v3730 = vmul.f32 %v3725, %v3729
        %v3731 = vadd.f32 1.0, %v3730
        %v3732 = vmul.f32 %v3723, %v3723
        %v3733 = vmul.f32 %v3732, -0.00019511016
        %v3734 = vadd.f32 %v3733, 0.008332121
        %v3735 = vmul.f32 %v3732, %v3734
        %v3736 = vadd.f32 %v3735, -0.16666654
        %v3737 = vmul.f32 %v3732, %v3736
        %v3738 = vadd.f32 %v3737, 1.0
        %v3739 = vmul.f32 %v3738, %v3723
        %vm3740 = vweird.f32 %v193
        %v3741 = vadd.s32 %v3724, 3
        %v3742 = vand.u32 %v3741, 3
        %vm3743 = vcmp.lt.s32.totalorder %v3742, 2
        %vm3744 = vcmp.eq.s32.totalorder %v3742, 0
        %v3745 = vxor.u32 %v3739, 2147483648
        %v3746 = vsel %vm3744, %v3731, %v3745
        %vm3747 = vcmp.eq.s32.totalorder %v3742, 2
        %v3748 = vxor.u32 %v3731, 2147483648
        %v3749 = vsel %vm3747, %v3748, %v3739
        %v3750 = vsel %vm3743, %v3746, %v3749
        %v3751 = vsel %vm3740, nan, %v3750
        %v3752 = vand.u32 2147483647, %v194
        %vm3753 = vcmp.le.f32.partialorder %v3752, 0.7853982
        %vm3754 = vcmp.lt.s32.totalorder %v194, 0
        %v3755 = vand.u32 %v194, 2139095040
        %v3756 = vshrl.u32 %v3755, 23
        %v3757 = vsub.s32 %v3756, 127
        %v3758 = vand.u32 2147483647, %v194
        %v3759 = vand.u32 %v3758, 8388607
        %v3760 = vor.u32 %v3759, 8388608
        %v3761 = vsub.s32 0, %v3760
        %v3762 = vadd.s32 %v3757, 1
        %vm3763 = vcmp.gt.s32.totalorder %v3762, 0
        %v3764 = vsel %vm3763, %v3762, 0
        %v3765 = vshrl.u32 %v3764, 5
        %v3766 = vand.u32 %v3764, 31
        %v3767 = vsub.s32 32, %v3766
        %v3768 = vshrl.u32 683565275, %v3767
        %v3769 = vshll.u32 683565275, %v3766
        %v3770 = vshrl.u32 2475754826, %v3767
        %v3771 = vor.u32 %v3769, %v3770
        %v3772 = vshll.u32 2475754826, %v3766
        %v3773 = vshrl.u32 2131351028, %v3767
        %v3774 = vor.u32 %v3772, %v3773
        %v3775 = vshll.u32 2131351028, %v3766
        %v3776 = vshrl.u32 2102212464, %v3767
        %v3777 = vor.u32 %v3775, %v3776
        %v3778 = vshll.u32 2102212464, %v3766
        %v3779 = vshrl.u32 920167782, %v3767
        %v3780 = vor.u32 %v3778, %v3779
        %v3781 = vshll.u32 920167782, %v3766
        %v3782 = vshrl.u32 1326507024, %v3767
        %v3783 = vor.u32 %v3781, %v3782
        %vm3784 = vcmp.lt.s32.totalorder %v3765, 1
        %vm3785 = vcmp.lt.s32.totalorder %v3765, 2
        %vm3786 = vcmp.lt.s32.totalorder %v3765, 3
        %vm3787 = vcmp.lt.s32.totalorder %v3765, 4
        %v3788 = vsel %vm3784, %v3768, %v3771
        %v3789 = vsel %vm3787, %v3777, 2102212464
        %v3790 = vsel %vm3786, %v3774, %v3789
        %v3791 = vsel %vm3785, %v3788, %v3790
        %v3792 = vsel %vm3784, %v3771, %v3774
        %v3793 = vsel %vm3787, %v3780, 920167782
        %v3794 = vsel %vm3786, %v3777, %v3793
        %v3795 = vsel %vm3785, %v3792, %v3794
        %v3796 = vsel %vm3784, %v3774, %v3777
        %v3797 = vsel %vm3787, %v3783, 1326507024
        %v3798 = vsel %vm3786, %v3780, %v3797
        %v3799 = vsel %vm3785, %v3796, %v3798
        %v3800 = vshll.u32 %v3760, 8
        %v3801 = vand.u32 %v3800, 65535
        %v3802 = vshrl.u32 %v3800, 16
        %v3803 = vand.u32 %v3799, 65535
        %v3804 = vshrl.u32 %v3799, 16
        %v3805 = vmul.u32 %v3801, %v3803
        %v3806 = vmul.u32 %v3801, %v3804
        %v3807 = vmul.u32 %v3802, %v3803
        %v3808 = vmul.u32 %v3802, %v3804
        %v3809 = vshll.u32 %v3806, 16
        %v3810 = vshrl.u32 %v3806, 16
        %v3811 = vshll.u32 %v3807, 16
        %v3812 = vshrl.u32 %v3807, 16
        %vm3813 = vc.u32 %v3805, %v3809
        %v3814 = vsel %vm3813, 1, 0
        %v3815 = vadd.s32 %v3805, %v3809
        %v3816 = vadd.s32 %v3808, %v3814
        %vm3817 = vc.u32 %v3815, %v3811
        %v3818 = vsel %vm3817, 1, 0
        %v3819 = vadd.s32 %v3815, %v3811
        %v3820 = vadd.s32 %v3816, %v3818
        %v3821 = vadd.s32 %v3820, %v3810
        %v3822 = vadd.s32 %v3821, %v3812
        %v3823 = vand.u32 %v3800, 65535
        %v3824 = vshrl.u32 %v3800, 16
        %v3825 = vand.u32 %v3795, 65535
        %v3826 = vshrl.u32 %v3795, 16
        %v3827 = vmul.u32 %v3823, %v3825
        %v3828 = vmul.u32 %v3823, %v3826
        %v3829 = vmul.u32 %v3824, %v3825
        %v3830 = vmul.u32 %v3824, %v3826
        %v3831 = vshll.u32 %v3828, 16
        %v3832 = vshrl.u32 %v3828, 16
        %v3833 = vshll.u32 %v3829, 16
        %v3834 = vshrl.u32 %v3829, 16
        %vm3835 = vc.u32 %v3827, %v3831
        %v3836 = vsel %vm3835, 1, 0
        %v3837 = vadd.s32 %v3827, %v3831
        %v3838 = vadd.s32 %v3830, %v3836
        %vm3839 = vc.u32 %v3837, %v3833
        %v3840 = vsel %vm3839, 1, 0
        %v3841 = vadd.s32 %v3837, %v3833
        %v3842 = vadd.s32 %v3838, %v3840
        %v3843 = vadd.s32 %v3842, %v3832
        %v3844 = vadd.s32 %v3843, %v3834
        %v3845 = vmul.u32 %v3800, %v3791
        %v3846 = vadd.s32 %v3822, %v3841
        %vm3847 = vc.u32 %v3822, %v3841
        %v3848 = vadd.s32 %v3844, 1
        %v3849 = vsel %vm3847, %v3848, %v3844
        %v3850 = vadd.s32 %v3845, %v3849
        %v3851 = vadd.s32 %v3850, 536870912
        %v3852 = vshrl.u32 %v3851, 30
        %v3853 = vshll.u32 %v3852, 30
        %v3854 = vsub.s32 %v3850, %v3853
        %vm3855 = vcmp.lt.s32.totalorder %v3854, 0
        %v3856 = vsub.s32 0, %v3854
        %v3857 = vsel %vm3855, %v3856, %v3854
        %v3858 = vclz %v3857
        %v3859 = vsub.s32 %v3858, 2
        %vm3860 = vcmp.gt.s32.totalorder 0, %v3859
        %v3861 = vsel %vm3860, 0, %v3859
        %v3862 = vsub.s32 32, %v3861
        %v3863 = vshll.u32 %v3854, %v3861
        %v3864 = vshrl.u32 %v3846, %v3862
        %v3865 = vor.u32 %v3863, %v3864
        %v3866 = vsub.s32 4294967266, %v3861
        %v3867 = vadd.s32 %v3866, 127
        %v3868 = vshll.u32 %v3867, 23
        %v3869 = vor.u32 4788187, %v3868
        %v3870 = vand.u32 2147483647, %v3869
        %v3872 = vcvt.s32.f32 %v3865
        %v3873 = vmul.f32 %v3872, %v3870
        %v3874 = vxor.u32 %v3873, 2147483648
        %v3875 = vsel %vm3754, %v3874, %v3873
        %v3876 = vsub.s32 4, %v3852
        %v3877 = vsel %vm3754, %v3876, %v3852
        %v3878 = vsel %vm3753, %v194, %v3875
        %v3879 = vsel %vm3753, 0, %v3877
        %v3880 = vmul.f32 %v3878, %v3878
        %v3881 = vmul.f32 %v3880, -0.001358992
        %v3882 = vadd.f32 %v3881, 0.041655596
        %v3883 = vmul.f32 %v3880, %v3882
        %v3884 = vadd.f32 %v3883, -0.4999988
        %v3885 = vmul.f32 %v3880, %v3884
        %v3886 = vadd.f32 1.0, %v3885
        %v3887 = vmul.f32 %v3878, %v3878
        %v3888 = vmul.f32 %v3887, -0.00019511016
        %v3889 = vadd.f32 %v3888, 0.008332121
        %v3890 = vmul.f32 %v3887, %v3889
        %v3891 = vadd.f32 %v3890, -0.16666654
        %v3892 = vmul.f32 %v3887, %v3891
        %v3893 = vadd.f32 %v3892, 1.0
        %v3894 = vmul.f32 %v3893, %v3878
        %vm3895 = vweird.f32 %v194
        %v3896 = vadd.s32 %v3879, 3
        %v3897 = vand.u32 %v3896, 3
        %vm3898 = vcmp.lt.s32.totalorder %v3897, 2
        %vm3899 = vcmp.eq.s32.totalorder %v3897, 0
        %v3900 = vxor.u32 %v3894, 2147483648
        %v3901 = vsel %vm3899, %v3886, %v3900
        %vm3902 = vcmp.eq.s32.totalorder %v3897, 2
        %v3903 = vxor.u32 %v3886, 2147483648
        %v3904 = vsel %vm3902, %v3903, %v3894
        %v3905 = vsel %vm3898, %v3901, %v3904
        %v3906 = vsel %vm3895, nan, %v3905
        %v3907 = vand.u32 2147483647, %v195
        %vm3908 = vcmp.le.f32.partialorder %v3907, 0.7853982
        %vm3909 = vcmp.lt.s32.totalorder %v195, 0
        %v3910 = vand.u32 %v195, 2139095040
        %v3911 = vshrl.u32 %v3910, 23
        %v3912 = vsub.s32 %v3911, 127
        %v3913 = vand.u32 2147483647, %v195
        %v3914 = vand.u32 %v3913, 8388607
        %v3915 = vor.u32 %v3914, 8388608
        %v3916 = vsub.s32 0, %v3915
        %v3917 = vadd.s32 %v3912, 1
        %vm3918 = vcmp.gt.s32.totalorder %v3917, 0
        %v3919 = vsel %vm3918, %v3917, 0
        %v3920 = vshrl.u32 %v3919, 5
        %v3921 = vand.u32 %v3919, 31
        %v3922 = vsub.s32 32, %v3921
        %v3923 = vshrl.u32 683565275, %v3922
        %v3924 = vshll.u32 683565275, %v3921
        %v3925 = vshrl.u32 2475754826, %v3922
        %v3926 = vor.u32 %v3924, %v3925
        %v3927 = vshll.u32 2475754826, %v3921
        %v3928 = vshrl.u32 2131351028, %v3922
        %v3929 = vor.u32 %v3927, %v3928
        %v3930 = vshll.u32 2131351028, %v3921
        %v3931 = vshrl.u32 2102212464, %v3922
        %v3932 = vor.u32 %v3930, %v3931
        %v3933 = vshll.u32 2102212464, %v3921
        %v3934 = vshrl.u32 920167782, %v3922
        %v3935 = vor.u32 %v3933, %v3934
        %v3936 = vshll.u32 920167782, %v3921
        %v3937 = vshrl.u32 1326507024, %v3922
        %v3938 = vor.u32 %v3936, %v3937
        %vm3939 = vcmp.lt.s32.totalorder %v3920, 1
        %vm3940 = vcmp.lt.s32.totalorder %v3920, 2
        %vm3941 = vcmp.lt.s32.totalorder %v3920, 3
        %vm3942 = vcmp.lt.s32.totalorder %v3920, 4
        %v3943 = vsel %vm3939, %v3923, %v3926
        %v3944 = vsel %vm3942, %v3932, 2102212464
        %v3945 = vsel %vm3941, %v3929, %v3944
        %v3946 = vsel %vm3940, %v3943, %v3945
        %v3947 = vsel %vm3939, %v3926, %v3929
        %v3948 = vsel %vm3942, %v3935, 920167782
        %v3949 = vsel %vm3941, %v3932, %v3948
        %v3950 = vsel %vm3940, %v3947, %v3949
        %v3951 = vsel %vm3939, %v3929, %v3932
        %v3952 = vsel %vm3942, %v3938, 1326507024
        %v3953 = vsel %vm3941, %v3935, %v3952
        %v3954 = vsel %vm3940, %v3951, %v3953
        %v3955 = vshll.u32 %v3915, 8
        %v3956 = vand.u32 %v3955, 65535
        %v3957 = vshrl.u32 %v3955, 16
        %v3958 = vand.u32 %v3954, 65535
        %v3959 = vshrl.u32 %v3954, 16
        %v3960 = vmul.u32 %v3956, %v3958
        %v3961 = vmul.u32 %v3956, %v3959
        %v3962 = vmul.u32 %v3957, %v3958
        %v3963 = vmul.u32 %v3957, %v3959
        %v3964 = vshll.u32 %v3961, 16
        %v3965 = vshrl.u32 %v3961, 16
        %v3966 = vshll.u32 %v3962, 16
        %v3967 = vshrl.u32 %v3962, 16
        %vm3968 = vc.u32 %v3960, %v3964
        %v3969 = vsel %vm3968, 1, 0
        %v3970 = vadd.s32 %v3960, %v3964
        %v3971 = vadd.s32 %v3963, %v3969
        %vm3972 = vc.u32 %v3970, %v3966
        %v3973 = vsel %vm3972, 1, 0
        %v3974 = vadd.s32 %v3970, %v3966
        %v3975 = vadd.s32 %v3971, %v3973
        %v3976 = vadd.s32 %v3975, %v3965
        %v3977 = vadd.s32 %v3976, %v3967
        %v3978 = vand.u32 %v3955, 65535
        %v3979 = vshrl.u32 %v3955, 16
        %v3980 = vand.u32 %v3950, 65535
        %v3981 = vshrl.u32 %v3950, 16
        %v3982 = vmul.u32 %v3978, %v3980
        %v3983 = vmul.u32 %v3978, %v3981
        %v3984 = vmul.u32 %v3979, %v3980
        %v3985 = vmul.u32 %v3979, %v3981
        %v3986 = vshll.u32 %v3983, 16
        %v3987 = vshrl.u32 %v3983, 16
        %v3988 = vshll.u32 %v3984, 16
        %v3989 = vshrl.u32 %v3984, 16
        %vm3990 = vc.u32 %v3982, %v3986
        %v3991 = vsel %vm3990, 1, 0
        %v3992 = vadd.s32 %v3982, %v3986
        %v3993 = vadd.s32 %v3985, %v3991
        %vm3994 = vc.u32 %v3992, %v3988
        %v3995 = vsel %vm3994, 1, 0
        %v3996 = vadd.s32 %v3992, %v3988
        %v3997 = vadd.s32 %v3993, %v3995
        %v3998 = vadd.s32 %v3997, %v3987
        %v3999 = vadd.s32 %v3998, %v3989
        %v4000 = vmul.u32 %v3955, %v3946
        %v4001 = vadd.s32 %v3977, %v3996
        %vm4002 = vc.u32 %v3977, %v3996
        %v4003 = vadd.s32 %v3999, 1
        %v4004 = vsel %vm4002, %v4003, %v3999
        %v4005 = vadd.s32 %v4000, %v4004
        %v4006 = vadd.s32 %v4005, 536870912
        %v4007 = vshrl.u32 %v4006, 30
        %v4008 = vshll.u32 %v4007, 30
        %v4009 = vsub.s32 %v4005, %v4008
        %vm4010 = vcmp.lt.s32.totalorder %v4009, 0
        %v4011 = vsub.s32 0, %v4009
        %v4012 = vsel %vm4010, %v4011, %v4009
        %v4013 = vclz %v4012
        %v4014 = vsub.s32 %v4013, 2
        %vm4015 = vcmp.gt.s32.totalorder 0, %v4014
        %v4016 = vsel %vm4015, 0, %v4014
        %v4017 = vsub.s32 32, %v4016
        %v4018 = vshll.u32 %v4009, %v4016
        %v4019 = vshrl.u32 %v4001, %v4017
        %v4020 = vor.u32 %v4018, %v4019
        %v4021 = vsub.s32 4294967266, %v4016
        %v4022 = vadd.s32 %v4021, 127
        %v4023 = vshll.u32 %v4022, 23
        %v4024 = vor.u32 4788187, %v4023
        %v4025 = vand.u32 2147483647, %v4024
        %v4027 = vcvt.s32.f32 %v4020
        %v4028 = vmul.f32 %v4027, %v4025
        %v4029 = vxor.u32 %v4028, 2147483648
        %v4030 = vsel %vm3909, %v4029, %v4028
        %v4031 = vsub.s32 4, %v4007
        %v4032 = vsel %vm3909, %v4031, %v4007
        %v4033 = vsel %vm3908, %v195, %v4030
        %v4034 = vsel %vm3908, 0, %v4032
        %v4035 = vmul.f32 %v4033, %v4033
        %v4036 = vmul.f32 %v4035, -0.001358992
        %v4037 = vadd.f32 %v4036, 0.041655596
        %v4038 = vmul.f32 %v4035, %v4037
        %v4039 = vadd.f32 %v4038, -0.4999988
        %v4040 = vmul.f32 %v4035, %v4039
        %v4041 = vadd.f32 1.0, %v4040
        %v4042 = vmul.f32 %v4033, %v4033
        %v4043 = vmul.f32 %v4042, -0.00019511016
        %v4044 = vadd.f32 %v4043, 0.008332121
        %v4045 = vmul.f32 %v4042, %v4044
        %v4046 = vadd.f32 %v4045, -0.16666654
        %v4047 = vmul.f32 %v4042, %v4046
        %v4048 = vadd.f32 %v4047, 1.0
        %v4049 = vmul.f32 %v4048, %v4033
        %vm4050 = vweird.f32 %v195
        %v4051 = vadd.s32 %v4034, 3
        %v4052 = vand.u32 %v4051, 3
        %vm4053 = vcmp.lt.s32.totalorder %v4052, 2
        %vm4054 = vcmp.eq.s32.totalorder %v4052, 0
        %v4055 = vxor.u32 %v4049, 2147483648
        %v4056 = vsel %vm4054, %v4041, %v4055
        %vm4057 = vcmp.eq.s32.totalorder %v4052, 2
        %v4058 = vxor.u32 %v4041, 2147483648
        %v4059 = vsel %vm4057, %v4058, %v4049
        %v4060 = vsel %vm4053, %v4056, %v4059
        %v4061 = vsel %vm4050, nan, %v4060
        %v4062 = vand.u32 2147483647, %v196
        %vm4063 = vcmp.le.f32.partialorder %v4062, 0.7853982
        %vm4064 = vcmp.lt.s32.totalorder %v196, 0
        %v4065 = vand.u32 %v196, 2139095040
        %v4066 = vshrl.u32 %v4065, 23
        %v4067 = vsub.s32 %v4066, 127
        %v4068 = vand.u32 2147483647, %v196
        %v4069 = vand.u32 %v4068, 8388607
        %v4070 = vor.u32 %v4069, 8388608
        %v4071 = vsub.s32 0, %v4070
        %v4072 = vadd.s32 %v4067, 1
        %vm4073 = vcmp.gt.s32.totalorder %v4072, 0
        %v4074 = vsel %vm4073, %v4072, 0
        %v4075 = vshrl.u32 %v4074, 5
        %v4076 = vand.u32 %v4074, 31
        %v4077 = vsub.s32 32, %v4076
        %v4078 = vshrl.u32 683565275, %v4077
        %v4079 = vshll.u32 683565275, %v4076
        %v4080 = vshrl.u32 2475754826, %v4077
        %v4081 = vor.u32 %v4079, %v4080
        %v4082 = vshll.u32 2475754826, %v4076
        %v4083 = vshrl.u32 2131351028, %v4077
        %v4084 = vor.u32 %v4082, %v4083
        %v4085 = vshll.u32 2131351028, %v4076
        %v4086 = vshrl.u32 2102212464, %v4077
        %v4087 = vor.u32 %v4085, %v4086
        %v4088 = vshll.u32 2102212464, %v4076
        %v4089 = vshrl.u32 920167782, %v4077
        %v4090 = vor.u32 %v4088, %v4089
        %v4091 = vshll.u32 920167782, %v4076
        %v4092 = vshrl.u32 1326507024, %v4077
        %v4093 = vor.u32 %v4091, %v4092
        %vm4094 = vcmp.lt.s32.totalorder %v4075, 1
        %vm4095 = vcmp.lt.s32.totalorder %v4075, 2
        %vm4096 = vcmp.lt.s32.totalorder %v4075, 3
        %vm4097 = vcmp.lt.s32.totalorder %v4075, 4
        %v4098 = vsel %vm4094, %v4078, %v4081
        %v4099 = vsel %vm4097, %v4087, 2102212464
        %v4100 = vsel %vm4096, %v4084, %v4099
        %v4101 = vsel %vm4095, %v4098, %v4100
        %v4102 = vsel %vm4094, %v4081, %v4084
        %v4103 = vsel %vm4097, %v4090, 920167782
        %v4104 = vsel %vm4096, %v4087, %v4103
        %v4105 = vsel %vm4095, %v4102, %v4104
        %v4106 = vsel %vm4094, %v4084, %v4087
        %v4107 = vsel %vm4097, %v4093, 1326507024
        %v4108 = vsel %vm4096, %v4090, %v4107
        %v4109 = vsel %vm4095, %v4106, %v4108
        %v4110 = vshll.u32 %v4070, 8
        %v4111 = vand.u32 %v4110, 65535
        %v4112 = vshrl.u32 %v4110, 16
        %v4113 = vand.u32 %v4109, 65535
        %v4114 = vshrl.u32 %v4109, 16
        %v4115 = vmul.u32 %v4111, %v4113
        %v4116 = vmul.u32 %v4111, %v4114
        %v4117 = vmul.u32 %v4112, %v4113
        %v4118 = vmul.u32 %v4112, %v4114
        %v4119 = vshll.u32 %v4116, 16
        %v4120 = vshrl.u32 %v4116, 16
        %v4121 = vshll.u32 %v4117, 16
        %v4122 = vshrl.u32 %v4117, 16
        %vm4123 = vc.u32 %v4115, %v4119
        %v4124 = vsel %vm4123, 1, 0
        %v4125 = vadd.s32 %v4115, %v4119
        %v4126 = vadd.s32 %v4118, %v4124
        %vm4127 = vc.u32 %v4125, %v4121
        %v4128 = vsel %vm4127, 1, 0
        %v4129 = vadd.s32 %v4125, %v4121
        %v4130 = vadd.s32 %v4126, %v4128
        %v4131 = vadd.s32 %v4130, %v4120
        %v4132 = vadd.s32 %v4131, %v4122
        %v4133 = vand.u32 %v4110, 65535
        %v4134 = vshrl.u32 %v4110, 16
        %v4135 = vand.u32 %v4105, 65535
        %v4136 = vshrl.u32 %v4105, 16
        %v4137 = vmul.u32 %v4133, %v4135
        %v4138 = vmul.u32 %v4133, %v4136
        %v4139 = vmul.u32 %v4134, %v4135
        %v4140 = vmul.u32 %v4134, %v4136
        %v4141 = vshll.u32 %v4138, 16
        %v4142 = vshrl.u32 %v4138, 16
        %v4143 = vshll.u32 %v4139, 16
        %v4144 = vshrl.u32 %v4139, 16
        %vm4145 = vc.u32 %v4137, %v4141
        %v4146 = vsel %vm4145, 1, 0
        %v4147 = vadd.s32 %v4137, %v4141
        %v4148 = vadd.s32 %v4140, %v4146
        %vm4149 = vc.u32 %v4147, %v4143
        %v4150 = vsel %vm4149, 1, 0
        %v4151 = vadd.s32 %v4147, %v4143
        %v4152 = vadd.s32 %v4148, %v4150
        %v4153 = vadd.s32 %v4152, %v4142
        %v4154 = vadd.s32 %v4153, %v4144
        %v4155 = vmul.u32 %v4110, %v4101
        %v4156 = vadd.s32 %v4132, %v4151
        %vm4157 = vc.u32 %v4132, %v4151
        %v4158 = vadd.s32 %v4154, 1
        %v4159 = vsel %vm4157, %v4158, %v4154
        %v4160 = vadd.s32 %v4155, %v4159
        %v4161 = vadd.s32 %v4160, 536870912
        %v4162 = vshrl.u32 %v4161, 30
        %v4163 = vshll.u32 %v4162, 30
        %v4164 = vsub.s32 %v4160, %v4163
        %vm4165 = vcmp.lt.s32.totalorder %v4164, 0
        %v4166 = vsub.s32 0, %v4164
        %v4167 = vsel %vm4165, %v4166, %v4164
        %v4168 = vclz %v4167
        %v4169 = vsub.s32 %v4168, 2
        %vm4170 = vcmp.gt.s32.totalorder 0, %v4169
        %v4171 = vsel %vm4170, 0, %v4169
        %v4172 = vsub.s32 32, %v4171
        %v4173 = vshll.u32 %v4164, %v4171
        %v4174 = vshrl.u32 %v4156, %v4172
        %v4175 = vor.u32 %v4173, %v4174
        %v4176 = vsub.s32 4294967266, %v4171
        %v4177 = vadd.s32 %v4176, 127
        %v4178 = vshll.u32 %v4177, 23
        %v4179 = vor.u32 4788187, %v4178
        %v4180 = vand.u32 2147483647, %v4179
        %v4182 = vcvt.s32.f32 %v4175
        %v4183 = vmul.f32 %v4182, %v4180
        %v4184 = vxor.u32 %v4183, 2147483648
        %v4185 = vsel %vm4064, %v4184, %v4183
        %v4186 = vsub.s32 4, %v4162
        %v4187 = vsel %vm4064, %v4186, %v4162
        %v4188 = vsel %vm4063, %v196, %v4185
        %v4189 = vsel %vm4063, 0, %v4187
        %v4190 = vmul.f32 %v4188, %v4188
        %v4191 = vmul.f32 %v4190, -0.001358992
        %v4192 = vadd.f32 %v4191, 0.041655596
        %v4193 = vmul.f32 %v4190, %v4192
        %v4194 = vadd.f32 %v4193, -0.4999988
        %v4195 = vmul.f32 %v4190, %v4194
        %v4196 = vadd.f32 1.0, %v4195
        %v4197 = vmul.f32 %v4188, %v4188
        %v4198 = vmul.f32 %v4197, -0.00019511016
        %v4199 = vadd.f32 %v4198, 0.008332121
        %v4200 = vmul.f32 %v4197, %v4199
        %v4201 = vadd.f32 %v4200, -0.16666654
        %v4202 = vmul.f32 %v4197, %v4201
        %v4203 = vadd.f32 %v4202, 1.0
        %v4204 = vmul.f32 %v4203, %v4188
        %vm4205 = vweird.f32 %v196
        %v4206 = vadd.s32 %v4189, 3
        %v4207 = vand.u32 %v4206, 3
        %vm4208 = vcmp.lt.s32.totalorder %v4207, 2
        %vm4209 = vcmp.eq.s32.totalorder %v4207, 0
        %v4210 = vxor.u32 %v4204, 2147483648
        %v4211 = vsel %vm4209, %v4196, %v4210
        %vm4212 = vcmp.eq.s32.totalorder %v4207, 2
        %v4213 = vxor.u32 %v4196, 2147483648
        %v4214 = vsel %vm4212, %v4213, %v4204
        %v4215 = vsel %vm4208, %v4211, %v4214
        %v4216 = vsel %vm4205, nan, %v4215
        %v4217 = vand.u32 2147483647, %v197
        %vm4218 = vcmp.le.f32.partialorder %v4217, 0.7853982
        %vm4219 = vcmp.lt.s32.totalorder %v197, 0
        %v4220 = vand.u32 %v197, 2139095040
        %v4221 = vshrl.u32 %v4220, 23
        %v4222 = vsub.s32 %v4221, 127
        %v4223 = vand.u32 2147483647, %v197
        %v4224 = vand.u32 %v4223, 8388607
        %v4225 = vor.u32 %v4224, 8388608
        %v4226 = vsub.s32 0, %v4225
        %v4227 = vadd.s32 %v4222, 1
        %vm4228 = vcmp.gt.s32.totalorder %v4227, 0
        %v4229 = vsel %vm4228, %v4227, 0
        %v4230 = vshrl.u32 %v4229, 5
        %v4231 = vand.u32 %v4229, 31
        %v4232 = vsub.s32 32, %v4231
        %v4233 = vshrl.u32 683565275, %v4232
        %v4234 = vshll.u32 683565275, %v4231
        %v4235 = vshrl.u32 2475754826, %v4232
        %v4236 = vor.u32 %v4234, %v4235
        %v4237 = vshll.u32 2475754826, %v4231
        %v4238 = vshrl.u32 2131351028, %v4232
        %v4239 = vor.u32 %v4237, %v4238
        %v4240 = vshll.u32 2131351028, %v4231
        %v4241 = vshrl.u32 2102212464, %v4232
        %v4242 = vor.u32 %v4240, %v4241
        %v4243 = vshll.u32 2102212464, %v4231
        %v4244 = vshrl.u32 920167782, %v4232
        %v4245 = vor.u32 %v4243, %v4244
        %v4246 = vshll.u32 920167782, %v4231
        %v4247 = vshrl.u32 1326507024, %v4232
        %v4248 = vor.u32 %v4246, %v4247
        %vm4249 = vcmp.lt.s32.totalorder %v4230, 1
        %vm4250 = vcmp.lt.s32.totalorder %v4230, 2
        %vm4251 = vcmp.lt.s32.totalorder %v4230, 3
        %vm4252 = vcmp.lt.s32.totalorder %v4230, 4
        %v4253 = vsel %vm4249, %v4233, %v4236
        %v4254 = vsel %vm4252, %v4242, 2102212464
        %v4255 = vsel %vm4251, %v4239, %v4254
        %v4256 = vsel %vm4250, %v4253, %v4255
        %v4257 = vsel %vm4249, %v4236, %v4239
        %v4258 = vsel %vm4252, %v4245, 920167782
        %v4259 = vsel %vm4251, %v4242, %v4258
        %v4260 = vsel %vm4250, %v4257, %v4259
        %v4261 = vsel %vm4249, %v4239, %v4242
        %v4262 = vsel %vm4252, %v4248, 1326507024
        %v4263 = vsel %vm4251, %v4245, %v4262
        %v4264 = vsel %vm4250, %v4261, %v4263
        %v4265 = vshll.u32 %v4225, 8
        %v4266 = vand.u32 %v4265, 65535
        %v4267 = vshrl.u32 %v4265, 16
        %v4268 = vand.u32 %v4264, 65535
        %v4269 = vshrl.u32 %v4264, 16
        %v4270 = vmul.u32 %v4266, %v4268
        %v4271 = vmul.u32 %v4266, %v4269
        %v4272 = vmul.u32 %v4267, %v4268
        %v4273 = vmul.u32 %v4267, %v4269
        %v4274 = vshll.u32 %v4271, 16
        %v4275 = vshrl.u32 %v4271, 16
        %v4276 = vshll.u32 %v4272, 16
        %v4277 = vshrl.u32 %v4272, 16
        %vm4278 = vc.u32 %v4270, %v4274
        %v4279 = vsel %vm4278, 1, 0
        %v4280 = vadd.s32 %v4270, %v4274
        %v4281 = vadd.s32 %v4273, %v4279
        %vm4282 = vc.u32 %v4280, %v4276
        %v4283 = vsel %vm4282, 1, 0
        %v4284 = vadd.s32 %v4280, %v4276
        %v4285 = vadd.s32 %v4281, %v4283
        %v4286 = vadd.s32 %v4285, %v4275
        %v4287 = vadd.s32 %v4286, %v4277
        %v4288 = vand.u32 %v4265, 65535
        %v4289 = vshrl.u32 %v4265, 16
        %v4290 = vand.u32 %v4260, 65535
        %v4291 = vshrl.u32 %v4260, 16
        %v4292 = vmul.u32 %v4288, %v4290
        %v4293 = vmul.u32 %v4288, %v4291
        %v4294 = vmul.u32 %v4289, %v4290
        %v4295 = vmul.u32 %v4289, %v4291
        %v4296 = vshll.u32 %v4293, 16
        %v4297 = vshrl.u32 %v4293, 16
        %v4298 = vshll.u32 %v4294, 16
        %v4299 = vshrl.u32 %v4294, 16
        %vm4300 = vc.u32 %v4292, %v4296
        %v4301 = vsel %vm4300, 1, 0
        %v4302 = vadd.s32 %v4292, %v4296
        %v4303 = vadd.s32 %v4295, %v4301
        %vm4304 = vc.u32 %v4302, %v4298
        %v4305 = vsel %vm4304, 1, 0
        %v4306 = vadd.s32 %v4302, %v4298
        %v4307 = vadd.s32 %v4303, %v4305
        %v4308 = vadd.s32 %v4307, %v4297
        %v4309 = vadd.s32 %v4308, %v4299
        %v4310 = vmul.u32 %v4265, %v4256
        %v4311 = vadd.s32 %v4287, %v4306
        %vm4312 = vc.u32 %v4287, %v4306
        %v4313 = vadd.s32 %v4309, 1
        %v4314 = vsel %vm4312, %v4313, %v4309
        %v4315 = vadd.s32 %v4310, %v4314
        %v4316 = vadd.s32 %v4315, 536870912
        %v4317 = vshrl.u32 %v4316, 30
        %v4318 = vshll.u32 %v4317, 30
        %v4319 = vsub.s32 %v4315, %v4318
        %vm4320 = vcmp.lt.s32.totalorder %v4319, 0
        %v4321 = vsub.s32 0, %v4319
        %v4322 = vsel %vm4320, %v4321, %v4319
        %v4323 = vclz %v4322
        %v4324 = vsub.s32 %v4323, 2
        %vm4325 = vcmp.gt.s32.totalorder 0, %v4324
        %v4326 = vsel %vm4325, 0, %v4324
        %v4327 = vsub.s32 32, %v4326
        %v4328 = vshll.u32 %v4319, %v4326
        %v4329 = vshrl.u32 %v4311, %v4327
        %v4330 = vor.u32 %v4328, %v4329
        %v4331 = vsub.s32 4294967266, %v4326
        %v4332 = vadd.s32 %v4331, 127
        %v4333 = vshll.u32 %v4332, 23
        %v4334 = vor.u32 4788187, %v4333
        %v4335 = vand.u32 2147483647, %v4334
        %v4337 = vcvt.s32.f32 %v4330
        %v4338 = vmul.f32 %v4337, %v4335
        %v4339 = vxor.u32 %v4338, 2147483648
        %v4340 = vsel %vm4219, %v4339, %v4338
        %v4341 = vsub.s32 4, %v4317
        %v4342 = vsel %vm4219, %v4341, %v4317
        %v4343 = vsel %vm4218, %v197, %v4340
        %v4344 = vsel %vm4218, 0, %v4342
        %v4345 = vmul.f32 %v4343, %v4343
        %v4346 = vmul.f32 %v4345, -0.001358992
        %v4347 = vadd.f32 %v4346, 0.041655596
        %v4348 = vmul.f32 %v4345, %v4347
        %v4349 = vadd.f32 %v4348, -0.4999988
        %v4350 = vmul.f32 %v4345, %v4349
        %v4351 = vadd.f32 1.0, %v4350
        %v4352 = vmul.f32 %v4343, %v4343
        %v4353 = vmul.f32 %v4352, -0.00019511016
        %v4354 = vadd.f32 %v4353, 0.008332121
        %v4355 = vmul.f32 %v4352, %v4354
        %v4356 = vadd.f32 %v4355, -0.16666654
        %v4357 = vmul.f32 %v4352, %v4356
        %v4358 = vadd.f32 %v4357, 1.0
        %v4359 = vmul.f32 %v4358, %v4343
        %vm4360 = vweird.f32 %v197
        %v4361 = vadd.s32 %v4344, 3
        %v4362 = vand.u32 %v4361, 3
        %vm4363 = vcmp.lt.s32.totalorder %v4362, 2
        %vm4364 = vcmp.eq.s32.totalorder %v4362, 0
        %v4365 = vxor.u32 %v4359, 2147483648
        %v4366 = vsel %vm4364, %v4351, %v4365
        %vm4367 = vcmp.eq.s32.totalorder %v4362, 2
        %v4368 = vxor.u32 %v4351, 2147483648
        %v4369 = vsel %vm4367, %v4368, %v4359
        %v4370 = vsel %vm4363, %v4366, %v4369
        %v4371 = vsel %vm4360, nan, %v4370
        %v4372 = vand.u32 2147483647, %v198
        %vm4373 = vcmp.le.f32.partialorder %v4372, 0.7853982
        %vm4374 = vcmp.lt.s32.totalorder %v198, 0
        %v4375 = vand.u32 %v198, 2139095040
        %v4376 = vshrl.u32 %v4375, 23
        %v4377 = vsub.s32 %v4376, 127
        %v4378 = vand.u32 2147483647, %v198
        %v4379 = vand.u32 %v4378, 8388607
        %v4380 = vor.u32 %v4379, 8388608
        %v4381 = vsub.s32 0, %v4380
        %v4382 = vadd.s32 %v4377, 1
        %vm4383 = vcmp.gt.s32.totalorder %v4382, 0
        %v4384 = vsel %vm4383, %v4382, 0
        %v4385 = vshrl.u32 %v4384, 5
        %v4386 = vand.u32 %v4384, 31
        %v4387 = vsub.s32 32, %v4386
        %v4388 = vshrl.u32 683565275, %v4387
        %v4389 = vshll.u32 683565275, %v4386
        %v4390 = vshrl.u32 2475754826, %v4387
        %v4391 = vor.u32 %v4389, %v4390
        %v4392 = vshll.u32 2475754826, %v4386
        %v4393 = vshrl.u32 2131351028, %v4387
        %v4394 = vor.u32 %v4392, %v4393
        %v4395 = vshll.u32 2131351028, %v4386
        %v4396 = vshrl.u32 2102212464, %v4387
        %v4397 = vor.u32 %v4395, %v4396
        %v4398 = vshll.u32 2102212464, %v4386
        %v4399 = vshrl.u32 920167782, %v4387
        %v4400 = vor.u32 %v4398, %v4399
        %v4401 = vshll.u32 920167782, %v4386
        %v4402 = vshrl.u32 1326507024, %v4387
        %v4403 = vor.u32 %v4401, %v4402
        %vm4404 = vcmp.lt.s32.totalorder %v4385, 1
        %vm4405 = vcmp.lt.s32.totalorder %v4385, 2
        %vm4406 = vcmp.lt.s32.totalorder %v4385, 3
        %vm4407 = vcmp.lt.s32.totalorder %v4385, 4
        %v4408 = vsel %vm4404, %v4388, %v4391
        %v4409 = vsel %vm4407, %v4397, 2102212464
        %v4410 = vsel %vm4406, %v4394, %v4409
        %v4411 = vsel %vm4405, %v4408, %v4410
        %v4412 = vsel %vm4404, %v4391, %v4394
        %v4413 = vsel %vm4407, %v4400, 920167782
        %v4414 = vsel %vm4406, %v4397, %v4413
        %v4415 = vsel %vm4405, %v4412, %v4414
        %v4416 = vsel %vm4404, %v4394, %v4397
        %v4417 = vsel %vm4407, %v4403, 1326507024
        %v4418 = vsel %vm4406, %v4400, %v4417
        %v4419 = vsel %vm4405, %v4416, %v4418
        %v4420 = vshll.u32 %v4380, 8
        %v4421 = vand.u32 %v4420, 65535
        %v4422 = vshrl.u32 %v4420, 16
        %v4423 = vand.u32 %v4419, 65535
        %v4424 = vshrl.u32 %v4419, 16
        %v4425 = vmul.u32 %v4421, %v4423
        %v4426 = vmul.u32 %v4421, %v4424
        %v4427 = vmul.u32 %v4422, %v4423
        %v4428 = vmul.u32 %v4422, %v4424
        %v4429 = vshll.u32 %v4426, 16
        %v4430 = vshrl.u32 %v4426, 16
        %v4431 = vshll.u32 %v4427, 16
        %v4432 = vshrl.u32 %v4427, 16
        %vm4433 = vc.u32 %v4425, %v4429
        %v4434 = vsel %vm4433, 1, 0
        %v4435 = vadd.s32 %v4425, %v4429
        %v4436 = vadd.s32 %v4428, %v4434
        %vm4437 = vc.u32 %v4435, %v4431
        %v4438 = vsel %vm4437, 1, 0
        %v4439 = vadd.s32 %v4435, %v4431
        %v4440 = vadd.s32 %v4436, %v4438
        %v4441 = vadd.s32 %v4440, %v4430
        %v4442 = vadd.s32 %v4441, %v4432
        %v4443 = vand.u32 %v4420, 65535
        %v4444 = vshrl.u32 %v4420, 16
        %v4445 = vand.u32 %v4415, 65535
        %v4446 = vshrl.u32 %v4415, 16
        %v4447 = vmul.u32 %v4443, %v4445
        %v4448 = vmul.u32 %v4443, %v4446
        %v4449 = vmul.u32 %v4444, %v4445
        %v4450 = vmul.u32 %v4444, %v4446
        %v4451 = vshll.u32 %v4448, 16
        %v4452 = vshrl.u32 %v4448, 16
        %v4453 = vshll.u32 %v4449, 16
        %v4454 = vshrl.u32 %v4449, 16
        %vm4455 = vc.u32 %v4447, %v4451
        %v4456 = vsel %vm4455, 1, 0
        %v4457 = vadd.s32 %v4447, %v4451
        %v4458 = vadd.s32 %v4450, %v4456
        %vm4459 = vc.u32 %v4457, %v4453
        %v4460 = vsel %vm4459, 1, 0
        %v4461 = vadd.s32 %v4457, %v4453
        %v4462 = vadd.s32 %v4458, %v4460
        %v4463 = vadd.s32 %v4462, %v4452
        %v4464 = vadd.s32 %v4463, %v4454
        %v4465 = vmul.u32 %v4420, %v4411
        %v4466 = vadd.s32 %v4442, %v4461
        %vm4467 = vc.u32 %v4442, %v4461
        %v4468 = vadd.s32 %v4464, 1
        %v4469 = vsel %vm4467, %v4468, %v4464
        %v4470 = vadd.s32 %v4465, %v4469
        %v4471 = vadd.s32 %v4470, 536870912
        %v4472 = vshrl.u32 %v4471, 30
        %v4473 = vshll.u32 %v4472, 30
        %v4474 = vsub.s32 %v4470, %v4473
        %vm4475 = vcmp.lt.s32.totalorder %v4474, 0
        %v4476 = vsub.s32 0, %v4474
        %v4477 = vsel %vm4475, %v4476, %v4474
        %v4478 = vclz %v4477
        %v4479 = vsub.s32 %v4478, 2
        %vm4480 = vcmp.gt.s32.totalorder 0, %v4479
        %v4481 = vsel %vm4480, 0, %v4479
        %v4482 = vsub.s32 32, %v4481
        %v4483 = vshll.u32 %v4474, %v4481
        %v4484 = vshrl.u32 %v4466, %v4482
        %v4485 = vor.u32 %v4483, %v4484
        %v4486 = vsub.s32 4294967266, %v4481
        %v4487 = vadd.s32 %v4486, 127
        %v4488 = vshll.u32 %v4487, 23
        %v4489 = vor.u32 4788187, %v4488
        %v4490 = vand.u32 2147483647, %v4489
        %v4492 = vcvt.s32.f32 %v4485
        %v4493 = vmul.f32 %v4492, %v4490
        %v4494 = vxor.u32 %v4493, 2147483648
        %v4495 = vsel %vm4374, %v4494, %v4493
        %v4496 = vsub.s32 4, %v4472
        %v4497 = vsel %vm4374, %v4496, %v4472
        %v4498 = vsel %vm4373, %v198, %v4495
        %v4499 = vsel %vm4373, 0, %v4497
        %v4500 = vmul.f32 %v4498, %v4498
        %v4501 = vmul.f32 %v4500, -0.001358992
        %v4502 = vadd.f32 %v4501, 0.041655596
        %v4503 = vmul.f32 %v4500, %v4502
        %v4504 = vadd.f32 %v4503, -0.4999988
        %v4505 = vmul.f32 %v4500, %v4504
        %v4506 = vadd.f32 1.0, %v4505
        %v4507 = vmul.f32 %v4498, %v4498
        %v4508 = vmul.f32 %v4507, -0.00019511016
        %v4509 = vadd.f32 %v4508, 0.008332121
        %v4510 = vmul.f32 %v4507, %v4509
        %v4511 = vadd.f32 %v4510, -0.16666654
        %v4512 = vmul.f32 %v4507, %v4511
        %v4513 = vadd.f32 %v4512, 1.0
        %v4514 = vmul.f32 %v4513, %v4498
        %vm4515 = vweird.f32 %v198
        %v4516 = vadd.s32 %v4499, 3
        %v4517 = vand.u32 %v4516, 3
        %vm4518 = vcmp.lt.s32.totalorder %v4517, 2
        %vm4519 = vcmp.eq.s32.totalorder %v4517, 0
        %v4520 = vxor.u32 %v4514, 2147483648
        %v4521 = vsel %vm4519, %v4506, %v4520
        %vm4522 = vcmp.eq.s32.totalorder %v4517, 2
        %v4523 = vxor.u32 %v4506, 2147483648
        %v4524 = vsel %vm4522, %v4523, %v4514
        %v4525 = vsel %vm4518, %v4521, %v4524
        %v4526 = vsel %vm4515, nan, %v4525
        %v4527 = vand.u32 2147483647, %v199
        %vm4528 = vcmp.le.f32.partialorder %v4527, 0.7853982
        %vm4529 = vcmp.lt.s32.totalorder %v199, 0
        %v4530 = vand.u32 %v199, 2139095040
        %v4531 = vshrl.u32 %v4530, 23
        %v4532 = vsub.s32 %v4531, 127
        %v4533 = vand.u32 2147483647, %v199
        %v4534 = vand.u32 %v4533, 8388607
        %v4535 = vor.u32 %v4534, 8388608
        %v4536 = vsub.s32 0, %v4535
        %v4537 = vadd.s32 %v4532, 1
        %vm4538 = vcmp.gt.s32.totalorder %v4537, 0
        %v4539 = vsel %vm4538, %v4537, 0
        %v4540 = vshrl.u32 %v4539, 5
        %v4541 = vand.u32 %v4539, 31
        %v4542 = vsub.s32 32, %v4541
        %v4543 = vshrl.u32 683565275, %v4542
        %v4544 = vshll.u32 683565275, %v4541
        %v4545 = vshrl.u32 2475754826, %v4542
        %v4546 = vor.u32 %v4544, %v4545
        %v4547 = vshll.u32 2475754826, %v4541
        %v4548 = vshrl.u32 2131351028, %v4542
        %v4549 = vor.u32 %v4547, %v4548
        %v4550 = vshll.u32 2131351028, %v4541
        %v4551 = vshrl.u32 2102212464, %v4542
        %v4552 = vor.u32 %v4550, %v4551
        %v4553 = vshll.u32 2102212464, %v4541
        %v4554 = vshrl.u32 920167782, %v4542
        %v4555 = vor.u32 %v4553, %v4554
        %v4556 = vshll.u32 920167782, %v4541
        %v4557 = vshrl.u32 1326507024, %v4542
        %v4558 = vor.u32 %v4556, %v4557
        %vm4559 = vcmp.lt.s32.totalorder %v4540, 1
        %vm4560 = vcmp.lt.s32.totalorder %v4540, 2
        %vm4561 = vcmp.lt.s32.totalorder %v4540, 3
        %vm4562 = vcmp.lt.s32.totalorder %v4540, 4
        %v4563 = vsel %vm4559, %v4543, %v4546
        %v4564 = vsel %vm4562, %v4552, 2102212464
        %v4565 = vsel %vm4561, %v4549, %v4564
        %v4566 = vsel %vm4560, %v4563, %v4565
        %v4567 = vsel %vm4559, %v4546, %v4549
        %v4568 = vsel %vm4562, %v4555, 920167782
        %v4569 = vsel %vm4561, %v4552, %v4568
        %v4570 = vsel %vm4560, %v4567, %v4569
        %v4571 = vsel %vm4559, %v4549, %v4552
        %v4572 = vsel %vm4562, %v4558, 1326507024
        %v4573 = vsel %vm4561, %v4555, %v4572
        %v4574 = vsel %vm4560, %v4571, %v4573
        %v4575 = vshll.u32 %v4535, 8
        %v4576 = vand.u32 %v4575, 65535
        %v4577 = vshrl.u32 %v4575, 16
        %v4578 = vand.u32 %v4574, 65535
        %v4579 = vshrl.u32 %v4574, 16
        %v4580 = vmul.u32 %v4576, %v4578
        %v4581 = vmul.u32 %v4576, %v4579
        %v4582 = vmul.u32 %v4577, %v4578
        %v4583 = vmul.u32 %v4577, %v4579
        %v4584 = vshll.u32 %v4581, 16
        %v4585 = vshrl.u32 %v4581, 16
        %v4586 = vshll.u32 %v4582, 16
        %v4587 = vshrl.u32 %v4582, 16
        %vm4588 = vc.u32 %v4580, %v4584
        %v4589 = vsel %vm4588, 1, 0
        %v4590 = vadd.s32 %v4580, %v4584
        %v4591 = vadd.s32 %v4583, %v4589
        %vm4592 = vc.u32 %v4590, %v4586
        %v4593 = vsel %vm4592, 1, 0
        %v4594 = vadd.s32 %v4590, %v4586
        %v4595 = vadd.s32 %v4591, %v4593
        %v4596 = vadd.s32 %v4595, %v4585
        %v4597 = vadd.s32 %v4596, %v4587
        %v4598 = vand.u32 %v4575, 65535
        %v4599 = vshrl.u32 %v4575, 16
        %v4600 = vand.u32 %v4570, 65535
        %v4601 = vshrl.u32 %v4570, 16
        %v4602 = vmul.u32 %v4598, %v4600
        %v4603 = vmul.u32 %v4598, %v4601
        %v4604 = vmul.u32 %v4599, %v4600
        %v4605 = vmul.u32 %v4599, %v4601
        %v4606 = vshll.u32 %v4603, 16
        %v4607 = vshrl.u32 %v4603, 16
        %v4608 = vshll.u32 %v4604, 16
        %v4609 = vshrl.u32 %v4604, 16
        %vm4610 = vc.u32 %v4602, %v4606
        %v4611 = vsel %vm4610, 1, 0
        %v4612 = vadd.s32 %v4602, %v4606
        %v4613 = vadd.s32 %v4605, %v4611
        %vm4614 = vc.u32 %v4612, %v4608
        %v4615 = vsel %vm4614, 1, 0
        %v4616 = vadd.s32 %v4612, %v4608
        %v4617 = vadd.s32 %v4613, %v4615
        %v4618 = vadd.s32 %v4617, %v4607
        %v4619 = vadd.s32 %v4618, %v4609
        %v4620 = vmul.u32 %v4575, %v4566
        %v4621 = vadd.s32 %v4597, %v4616
        %vm4622 = vc.u32 %v4597, %v4616
        %v4623 = vadd.s32 %v4619, 1
        %v4624 = vsel %vm4622, %v4623, %v4619
        %v4625 = vadd.s32 %v4620, %v4624
        %v4626 = vadd.s32 %v4625, 536870912
        %v4627 = vshrl.u32 %v4626, 30
        %v4628 = vshll.u32 %v4627, 30
        %v4629 = vsub.s32 %v4625, %v4628
        %vm4630 = vcmp.lt.s32.totalorder %v4629, 0
        %v4631 = vsub.s32 0, %v4629
        %v4632 = vsel %vm4630, %v4631, %v4629
        %v4633 = vclz %v4632
        %v4634 = vsub.s32 %v4633, 2
        %vm4635 = vcmp.gt.s32.totalorder 0, %v4634
        %v4636 = vsel %vm4635, 0, %v4634
        %v4637 = vsub.s32 32, %v4636
        %v4638 = vshll.u32 %v4629, %v4636
        %v4639 = vshrl.u32 %v4621, %v4637
        %v4640 = vor.u32 %v4638, %v4639
        %v4641 = vsub.s32 4294967266, %v4636
        %v4642 = vadd.s32 %v4641, 127
        %v4643 = vshll.u32 %v4642, 23
        %v4644 = vor.u32 4788187, %v4643
        %v4645 = vand.u32 2147483647, %v4644
        %v4647 = vcvt.s32.f32 %v4640
        %v4648 = vmul.f32 %v4647, %v4645
        %v4649 = vxor.u32 %v4648, 2147483648
        %v4650 = vsel %vm4529, %v4649, %v4648
        %v4651 = vsub.s32 4, %v4627
        %v4652 = vsel %vm4529, %v4651, %v4627
        %v4653 = vsel %vm4528, %v199, %v4650
        %v4654 = vsel %vm4528, 0, %v4652
        %v4655 = vmul.f32 %v4653, %v4653
        %v4656 = vmul.f32 %v4655, -0.001358992
        %v4657 = vadd.f32 %v4656, 0.041655596
        %v4658 = vmul.f32 %v4655, %v4657
        %v4659 = vadd.f32 %v4658, -0.4999988
        %v4660 = vmul.f32 %v4655, %v4659
        %v4661 = vadd.f32 1.0, %v4660
        %v4662 = vmul.f32 %v4653, %v4653
        %v4663 = vmul.f32 %v4662, -0.00019511016
        %v4664 = vadd.f32 %v4663, 0.008332121
        %v4665 = vmul.f32 %v4662, %v4664
        %v4666 = vadd.f32 %v4665, -0.16666654
        %v4667 = vmul.f32 %v4662, %v4666
        %v4668 = vadd.f32 %v4667, 1.0
        %v4669 = vmul.f32 %v4668, %v4653
        %vm4670 = vweird.f32 %v199
        %v4671 = vadd.s32 %v4654, 3
        %v4672 = vand.u32 %v4671, 3
        %vm4673 = vcmp.lt.s32.totalorder %v4672, 2
        %vm4674 = vcmp.eq.s32.totalorder %v4672, 0
        %v4675 = vxor.u32 %v4669, 2147483648
        %v4676 = vsel %vm4674, %v4661, %v4675
        %vm4677 = vcmp.eq.s32.totalorder %v4672, 2
        %v4678 = vxor.u32 %v4661, 2147483648
        %v4679 = vsel %vm4677, %v4678, %v4669
        %v4680 = vsel %vm4673, %v4676, %v4679
        %v4681 = vsel %vm4670, nan, %v4680
        %v4682 = vand.u32 2147483647, %v200
        %vm4683 = vcmp.le.f32.partialorder %v4682, 0.7853982
        %vm4684 = vcmp.lt.s32.totalorder %v200, 0
        %v4685 = vand.u32 %v200, 2139095040
        %v4686 = vshrl.u32 %v4685, 23
        %v4687 = vsub.s32 %v4686, 127
        %v4688 = vand.u32 2147483647, %v200
        %v4689 = vand.u32 %v4688, 8388607
        %v4690 = vor.u32 %v4689, 8388608
        %v4691 = vsub.s32 0, %v4690
        %v4692 = vadd.s32 %v4687, 1
        %vm4693 = vcmp.gt.s32.totalorder %v4692, 0
        %v4694 = vsel %vm4693, %v4692, 0
        %v4695 = vshrl.u32 %v4694, 5
        %v4696 = vand.u32 %v4694, 31
        %v4697 = vsub.s32 32, %v4696
        %v4698 = vshrl.u32 683565275, %v4697
        %v4699 = vshll.u32 683565275, %v4696
        %v4700 = vshrl.u32 2475754826, %v4697
        %v4701 = vor.u32 %v4699, %v4700
        %v4702 = vshll.u32 2475754826, %v4696
        %v4703 = vshrl.u32 2131351028, %v4697
        %v4704 = vor.u32 %v4702, %v4703
        %v4705 = vshll.u32 2131351028, %v4696
        %v4706 = vshrl.u32 2102212464, %v4697
        %v4707 = vor.u32 %v4705, %v4706
        %v4708 = vshll.u32 2102212464, %v4696
        %v4709 = vshrl.u32 920167782, %v4697
        %v4710 = vor.u32 %v4708, %v4709
        %v4711 = vshll.u32 920167782, %v4696
        %v4712 = vshrl.u32 1326507024, %v4697
        %v4713 = vor.u32 %v4711, %v4712
        %vm4714 = vcmp.lt.s32.totalorder %v4695, 1
        %vm4715 = vcmp.lt.s32.totalorder %v4695, 2
        %vm4716 = vcmp.lt.s32.totalorder %v4695, 3
        %vm4717 = vcmp.lt.s32.totalorder %v4695, 4
        %v4718 = vsel %vm4714, %v4698, %v4701
        %v4719 = vsel %vm4717, %v4707, 2102212464
        %v4720 = vsel %vm4716, %v4704, %v4719
        %v4721 = vsel %vm4715, %v4718, %v4720
        %v4722 = vsel %vm4714, %v4701, %v4704
        %v4723 = vsel %vm4717, %v4710, 920167782
        %v4724 = vsel %vm4716, %v4707, %v4723
        %v4725 = vsel %vm4715, %v4722, %v4724
        %v4726 = vsel %vm4714, %v4704, %v4707
        %v4727 = vsel %vm4717, %v4713, 1326507024
        %v4728 = vsel %vm4716, %v4710, %v4727
        %v4729 = vsel %vm4715, %v4726, %v4728
        %v4730 = vshll.u32 %v4690, 8
        %v4731 = vand.u32 %v4730, 65535
        %v4732 = vshrl.u32 %v4730, 16
        %v4733 = vand.u32 %v4729, 65535
        %v4734 = vshrl.u32 %v4729, 16
        %v4735 = vmul.u32 %v4731, %v4733
        %v4736 = vmul.u32 %v4731, %v4734
        %v4737 = vmul.u32 %v4732, %v4733
        %v4738 = vmul.u32 %v4732, %v4734
        %v4739 = vshll.u32 %v4736, 16
        %v4740 = vshrl.u32 %v4736, 16
        %v4741 = vshll.u32 %v4737, 16
        %v4742 = vshrl.u32 %v4737, 16
        %vm4743 = vc.u32 %v4735, %v4739
        %v4744 = vsel %vm4743, 1, 0
        %v4745 = vadd.s32 %v4735, %v4739
        %v4746 = vadd.s32 %v4738, %v4744
        %vm4747 = vc.u32 %v4745, %v4741
        %v4748 = vsel %vm4747, 1, 0
        %v4749 = vadd.s32 %v4745, %v4741
        %v4750 = vadd.s32 %v4746, %v4748
        %v4751 = vadd.s32 %v4750, %v4740
        %v4752 = vadd.s32 %v4751, %v4742
        %v4753 = vand.u32 %v4730, 65535
        %v4754 = vshrl.u32 %v4730, 16
        %v4755 = vand.u32 %v4725, 65535
        %v4756 = vshrl.u32 %v4725, 16
        %v4757 = vmul.u32 %v4753, %v4755
        %v4758 = vmul.u32 %v4753, %v4756
        %v4759 = vmul.u32 %v4754, %v4755
        %v4760 = vmul.u32 %v4754, %v4756
        %v4761 = vshll.u32 %v4758, 16
        %v4762 = vshrl.u32 %v4758, 16
        %v4763 = vshll.u32 %v4759, 16
        %v4764 = vshrl.u32 %v4759, 16
        %vm4765 = vc.u32 %v4757, %v4761
        %v4766 = vsel %vm4765, 1, 0
        %v4767 = vadd.s32 %v4757, %v4761
        %v4768 = vadd.s32 %v4760, %v4766
        %vm4769 = vc.u32 %v4767, %v4763
        %v4770 = vsel %vm4769, 1, 0
        %v4771 = vadd.s32 %v4767, %v4763
        %v4772 = vadd.s32 %v4768, %v4770
        %v4773 = vadd.s32 %v4772, %v4762
        %v4774 = vadd.s32 %v4773, %v4764
        %v4775 = vmul.u32 %v4730, %v4721
        %v4776 = vadd.s32 %v4752, %v4771
        %vm4777 = vc.u32 %v4752, %v4771
        %v4778 = vadd.s32 %v4774, 1
        %v4779 = vsel %vm4777, %v4778, %v4774
        %v4780 = vadd.s32 %v4775, %v4779
        %v4781 = vadd.s32 %v4780, 536870912
        %v4782 = vshrl.u32 %v4781, 30
        %v4783 = vshll.u32 %v4782, 30
        %v4784 = vsub.s32 %v4780, %v4783
        %vm4785 = vcmp.lt.s32.totalorder %v4784, 0
        %v4786 = vsub.s32 0, %v4784
        %v4787 = vsel %vm4785, %v4786, %v4784
        %v4788 = vclz %v4787
        %v4789 = vsub.s32 %v4788, 2
        %vm4790 = vcmp.gt.s32.totalorder 0, %v4789
        %v4791 = vsel %vm4790, 0, %v4789
        %v4792 = vsub.s32 32, %v4791
        %v4793 = vshll.u32 %v4784, %v4791
        %v4794 = vshrl.u32 %v4776, %v4792
        %v4795 = vor.u32 %v4793, %v4794
        %v4796 = vsub.s32 4294967266, %v4791
        %v4797 = vadd.s32 %v4796, 127
        %v4798 = vshll.u32 %v4797, 23
        %v4799 = vor.u32 4788187, %v4798
        %v4800 = vand.u32 2147483647, %v4799
        %v4802 = vcvt.s32.f32 %v4795
        %v4803 = vmul.f32 %v4802, %v4800
        %v4804 = vxor.u32 %v4803, 2147483648
        %v4805 = vsel %vm4684, %v4804, %v4803
        %v4806 = vsub.s32 4, %v4782
        %v4807 = vsel %vm4684, %v4806, %v4782
        %v4808 = vsel %vm4683, %v200, %v4805
        %v4809 = vsel %vm4683, 0, %v4807
        %v4810 = vmul.f32 %v4808, %v4808
        %v4811 = vmul.f32 %v4810, -0.001358992
        %v4812 = vadd.f32 %v4811, 0.041655596
        %v4813 = vmul.f32 %v4810, %v4812
        %v4814 = vadd.f32 %v4813, -0.4999988
        %v4815 = vmul.f32 %v4810, %v4814
        %v4816 = vadd.f32 1.0, %v4815
        %v4817 = vmul.f32 %v4808, %v4808
        %v4818 = vmul.f32 %v4817, -0.00019511016
        %v4819 = vadd.f32 %v4818, 0.008332121
        %v4820 = vmul.f32 %v4817, %v4819
        %v4821 = vadd.f32 %v4820, -0.16666654
        %v4822 = vmul.f32 %v4817, %v4821
        %v4823 = vadd.f32 %v4822, 1.0
        %v4824 = vmul.f32 %v4823, %v4808
        %vm4825 = vweird.f32 %v200
        %v4826 = vadd.s32 %v4809, 3
        %v4827 = vand.u32 %v4826, 3
        %vm4828 = vcmp.lt.s32.totalorder %v4827, 2
        %vm4829 = vcmp.eq.s32.totalorder %v4827, 0
        %v4830 = vxor.u32 %v4824, 2147483648
        %v4831 = vsel %vm4829, %v4816, %v4830
        %vm4832 = vcmp.eq.s32.totalorder %v4827, 2
        %v4833 = vxor.u32 %v4816, 2147483648
        %v4834 = vsel %vm4832, %v4833, %v4824
        %v4835 = vsel %vm4828, %v4831, %v4834
        %v4836 = vsel %vm4825, nan, %v4835
        %v4837 = vand.u32 2147483647, %v201
        %vm4838 = vcmp.le.f32.partialorder %v4837, 0.7853982
        %vm4839 = vcmp.lt.s32.totalorder %v201, 0
        %v4840 = vand.u32 %v201, 2139095040
        %v4841 = vshrl.u32 %v4840, 23
        %v4842 = vsub.s32 %v4841, 127
        %v4843 = vand.u32 2147483647, %v201
        %v4844 = vand.u32 %v4843, 8388607
        %v4845 = vor.u32 %v4844, 8388608
        %v4846 = vsub.s32 0, %v4845
        %v4847 = vadd.s32 %v4842, 1
        %vm4848 = vcmp.gt.s32.totalorder %v4847, 0
        %v4849 = vsel %vm4848, %v4847, 0
        %v4850 = vshrl.u32 %v4849, 5
        %v4851 = vand.u32 %v4849, 31
        %v4852 = vsub.s32 32, %v4851
        %v4853 = vshrl.u32 683565275, %v4852
        %v4854 = vshll.u32 683565275, %v4851
        %v4855 = vshrl.u32 2475754826, %v4852
        %v4856 = vor.u32 %v4854, %v4855
        %v4857 = vshll.u32 2475754826, %v4851
        %v4858 = vshrl.u32 2131351028, %v4852
        %v4859 = vor.u32 %v4857, %v4858
        %v4860 = vshll.u32 2131351028, %v4851
        %v4861 = vshrl.u32 2102212464, %v4852
        %v4862 = vor.u32 %v4860, %v4861
        %v4863 = vshll.u32 2102212464, %v4851
        %v4864 = vshrl.u32 920167782, %v4852
        %v4865 = vor.u32 %v4863, %v4864
        %v4866 = vshll.u32 920167782, %v4851
        %v4867 = vshrl.u32 1326507024, %v4852
        %v4868 = vor.u32 %v4866, %v4867
        %vm4869 = vcmp.lt.s32.totalorder %v4850, 1
        %vm4870 = vcmp.lt.s32.totalorder %v4850, 2
        %vm4871 = vcmp.lt.s32.totalorder %v4850, 3
        %vm4872 = vcmp.lt.s32.totalorder %v4850, 4
        %v4873 = vsel %vm4869, %v4853, %v4856
        %v4874 = vsel %vm4872, %v4862, 2102212464
        %v4875 = vsel %vm4871, %v4859, %v4874
        %v4876 = vsel %vm4870, %v4873, %v4875
        %v4877 = vsel %vm4869, %v4856, %v4859
        %v4878 = vsel %vm4872, %v4865, 920167782
        %v4879 = vsel %vm4871, %v4862, %v4878
        %v4880 = vsel %vm4870, %v4877, %v4879
        %v4881 = vsel %vm4869, %v4859, %v4862
        %v4882 = vsel %vm4872, %v4868, 1326507024
        %v4883 = vsel %vm4871, %v4865, %v4882
        %v4884 = vsel %vm4870, %v4881, %v4883
        %v4885 = vshll.u32 %v4845, 8
        %v4886 = vand.u32 %v4885, 65535
        %v4887 = vshrl.u32 %v4885, 16
        %v4888 = vand.u32 %v4884, 65535
        %v4889 = vshrl.u32 %v4884, 16
        %v4890 = vmul.u32 %v4886, %v4888
        %v4891 = vmul.u32 %v4886, %v4889
        %v4892 = vmul.u32 %v4887, %v4888
        %v4893 = vmul.u32 %v4887, %v4889
        %v4894 = vshll.u32 %v4891, 16
        %v4895 = vshrl.u32 %v4891, 16
        %v4896 = vshll.u32 %v4892, 16
        %v4897 = vshrl.u32 %v4892, 16
        %vm4898 = vc.u32 %v4890, %v4894
        %v4899 = vsel %vm4898, 1, 0
        %v4900 = vadd.s32 %v4890, %v4894
        %v4901 = vadd.s32 %v4893, %v4899
        %vm4902 = vc.u32 %v4900, %v4896
        %v4903 = vsel %vm4902, 1, 0
        %v4904 = vadd.s32 %v4900, %v4896
        %v4905 = vadd.s32 %v4901, %v4903
        %v4906 = vadd.s32 %v4905, %v4895
        %v4907 = vadd.s32 %v4906, %v4897
        %v4908 = vand.u32 %v4885, 65535
        %v4909 = vshrl.u32 %v4885, 16
        %v4910 = vand.u32 %v4880, 65535
        %v4911 = vshrl.u32 %v4880, 16
        %v4912 = vmul.u32 %v4908, %v4910
        %v4913 = vmul.u32 %v4908, %v4911
        %v4914 = vmul.u32 %v4909, %v4910
        %v4915 = vmul.u32 %v4909, %v4911
        %v4916 = vshll.u32 %v4913, 16
        %v4917 = vshrl.u32 %v4913, 16
        %v4918 = vshll.u32 %v4914, 16
        %v4919 = vshrl.u32 %v4914, 16
        %vm4920 = vc.u32 %v4912, %v4916
        %v4921 = vsel %vm4920, 1, 0
        %v4922 = vadd.s32 %v4912, %v4916
        %v4923 = vadd.s32 %v4915, %v4921
        %vm4924 = vc.u32 %v4922, %v4918
        %v4925 = vsel %vm4924, 1, 0
        %v4926 = vadd.s32 %v4922, %v4918
        %v4927 = vadd.s32 %v4923, %v4925
        %v4928 = vadd.s32 %v4927, %v4917
        %v4929 = vadd.s32 %v4928, %v4919
        %v4930 = vmul.u32 %v4885, %v4876
        %v4931 = vadd.s32 %v4907, %v4926
        %vm4932 = vc.u32 %v4907, %v4926
        %v4933 = vadd.s32 %v4929, 1
        %v4934 = vsel %vm4932, %v4933, %v4929
        %v4935 = vadd.s32 %v4930, %v4934
        %v4936 = vadd.s32 %v4935, 536870912
        %v4937 = vshrl.u32 %v4936, 30
        %v4938 = vshll.u32 %v4937, 30
        %v4939 = vsub.s32 %v4935, %v4938
        %vm4940 = vcmp.lt.s32.totalorder %v4939, 0
        %v4941 = vsub.s32 0, %v4939
        %v4942 = vsel %vm4940, %v4941, %v4939
        %v4943 = vclz %v4942
        %v4944 = vsub.s32 %v4943, 2
        %vm4945 = vcmp.gt.s32.totalorder 0, %v4944
        %v4946 = vsel %vm4945, 0, %v4944
        %v4947 = vsub.s32 32, %v4946
        %v4948 = vshll.u32 %v4939, %v4946
        %v4949 = vshrl.u32 %v4931, %v4947
        %v4950 = vor.u32 %v4948, %v4949
        %v4951 = vsub.s32 4294967266, %v4946
        %v4952 = vadd.s32 %v4951, 127
        %v4953 = vshll.u32 %v4952, 23
        %v4954 = vor.u32 4788187, %v4953
        %v4955 = vand.u32 2147483647, %v4954
        %v4957 = vcvt.s32.f32 %v4950
        %v4958 = vmul.f32 %v4957, %v4955
        %v4959 = vxor.u32 %v4958, 2147483648
        %v4960 = vsel %vm4839, %v4959, %v4958
        %v4961 = vsub.s32 4, %v4937
        %v4962 = vsel %vm4839, %v4961, %v4937
        %v4963 = vsel %vm4838, %v201, %v4960
        %v4964 = vsel %vm4838, 0, %v4962
        %v4965 = vmul.f32 %v4963, %v4963
        %v4966 = vmul.f32 %v4965, -0.001358992
        %v4967 = vadd.f32 %v4966, 0.041655596
        %v4968 = vmul.f32 %v4965, %v4967
        %v4969 = vadd.f32 %v4968, -0.4999988
        %v4970 = vmul.f32 %v4965, %v4969
        %v4971 = vadd.f32 1.0, %v4970
        %v4972 = vmul.f32 %v4963, %v4963
        %v4973 = vmul.f32 %v4972, -0.00019511016
        %v4974 = vadd.f32 %v4973, 0.008332121
        %v4975 = vmul.f32 %v4972, %v4974
        %v4976 = vadd.f32 %v4975, -0.16666654
        %v4977 = vmul.f32 %v4972, %v4976
        %v4978 = vadd.f32 %v4977, 1.0
        %v4979 = vmul.f32 %v4978, %v4963
        %vm4980 = vweird.f32 %v201
        %v4981 = vadd.s32 %v4964, 3
        %v4982 = vand.u32 %v4981, 3
        %vm4983 = vcmp.lt.s32.totalorder %v4982, 2
        %vm4984 = vcmp.eq.s32.totalorder %v4982, 0
        %v4985 = vxor.u32 %v4979, 2147483648
        %v4986 = vsel %vm4984, %v4971, %v4985
        %vm4987 = vcmp.eq.s32.totalorder %v4982, 2
        %v4988 = vxor.u32 %v4971, 2147483648
        %v4989 = vsel %vm4987, %v4988, %v4979
        %v4990 = vsel %vm4983, %v4986, %v4989
        %v4991 = vsel %vm4980, nan, %v4990
        %v4992 = vand.u32 2147483647, %v202
        %vm4993 = vcmp.le.f32.partialorder %v4992, 0.7853982
        %vm4994 = vcmp.lt.s32.totalorder %v202, 0
        %v4995 = vand.u32 %v202, 2139095040
        %v4996 = vshrl.u32 %v4995, 23
        %v4997 = vsub.s32 %v4996, 127
        %v4998 = vand.u32 2147483647, %v202
        %v4999 = vand.u32 %v4998, 8388607
        %v5000 = vor.u32 %v4999, 8388608
        %v5001 = vsub.s32 0, %v5000
        %v5002 = vadd.s32 %v4997, 1
        %vm5003 = vcmp.gt.s32.totalorder %v5002, 0
        %v5004 = vsel %vm5003, %v5002, 0
        %v5005 = vshrl.u32 %v5004, 5
        %v5006 = vand.u32 %v5004, 31
        %v5007 = vsub.s32 32, %v5006
        %v5008 = vshrl.u32 683565275, %v5007
        %v5009 = vshll.u32 683565275, %v5006
        %v5010 = vshrl.u32 2475754826, %v5007
        %v5011 = vor.u32 %v5009, %v5010
        %v5012 = vshll.u32 2475754826, %v5006
        %v5013 = vshrl.u32 2131351028, %v5007
        %v5014 = vor.u32 %v5012, %v5013
        %v5015 = vshll.u32 2131351028, %v5006
        %v5016 = vshrl.u32 2102212464, %v5007
        %v5017 = vor.u32 %v5015, %v5016
        %v5018 = vshll.u32 2102212464, %v5006
        %v5019 = vshrl.u32 920167782, %v5007
        %v5020 = vor.u32 %v5018, %v5019
        %v5021 = vshll.u32 920167782, %v5006
        %v5022 = vshrl.u32 1326507024, %v5007
        %v5023 = vor.u32 %v5021, %v5022
        %vm5024 = vcmp.lt.s32.totalorder %v5005, 1
        %vm5025 = vcmp.lt.s32.totalorder %v5005, 2
        %vm5026 = vcmp.lt.s32.totalorder %v5005, 3
        %vm5027 = vcmp.lt.s32.totalorder %v5005, 4
        %v5028 = vsel %vm5024, %v5008, %v5011
        %v5029 = vsel %vm5027, %v5017, 2102212464
        %v5030 = vsel %vm5026, %v5014, %v5029
        %v5031 = vsel %vm5025, %v5028, %v5030
        %v5032 = vsel %vm5024, %v5011, %v5014
        %v5033 = vsel %vm5027, %v5020, 920167782
        %v5034 = vsel %vm5026, %v5017, %v5033
        %v5035 = vsel %vm5025, %v5032, %v5034
        %v5036 = vsel %vm5024, %v5014, %v5017
        %v5037 = vsel %vm5027, %v5023, 1326507024
        %v5038 = vsel %vm5026, %v5020, %v5037
        %v5039 = vsel %vm5025, %v5036, %v5038
        %v5040 = vshll.u32 %v5000, 8
        %v5041 = vand.u32 %v5040, 65535
        %v5042 = vshrl.u32 %v5040, 16
        %v5043 = vand.u32 %v5039, 65535
        %v5044 = vshrl.u32 %v5039, 16
        %v5045 = vmul.u32 %v5041, %v5043
        %v5046 = vmul.u32 %v5041, %v5044
        %v5047 = vmul.u32 %v5042, %v5043
        %v5048 = vmul.u32 %v5042, %v5044
        %v5049 = vshll.u32 %v5046, 16
        %v5050 = vshrl.u32 %v5046, 16
        %v5051 = vshll.u32 %v5047, 16
        %v5052 = vshrl.u32 %v5047, 16
        %vm5053 = vc.u32 %v5045, %v5049
        %v5054 = vsel %vm5053, 1, 0
        %v5055 = vadd.s32 %v5045, %v5049
        %v5056 = vadd.s32 %v5048, %v5054
        %vm5057 = vc.u32 %v5055, %v5051
        %v5058 = vsel %vm5057, 1, 0
        %v5059 = vadd.s32 %v5055, %v5051
        %v5060 = vadd.s32 %v5056, %v5058
        %v5061 = vadd.s32 %v5060, %v5050
        %v5062 = vadd.s32 %v5061, %v5052
        %v5063 = vand.u32 %v5040, 65535
        %v5064 = vshrl.u32 %v5040, 16
        %v5065 = vand.u32 %v5035, 65535
        %v5066 = vshrl.u32 %v5035, 16
        %v5067 = vmul.u32 %v5063, %v5065
        %v5068 = vmul.u32 %v5063, %v5066
        %v5069 = vmul.u32 %v5064, %v5065
        %v5070 = vmul.u32 %v5064, %v5066
        %v5071 = vshll.u32 %v5068, 16
        %v5072 = vshrl.u32 %v5068, 16
        %v5073 = vshll.u32 %v5069, 16
        %v5074 = vshrl.u32 %v5069, 16
        %vm5075 = vc.u32 %v5067, %v5071
        %v5076 = vsel %vm5075, 1, 0
        %v5077 = vadd.s32 %v5067, %v5071
        %v5078 = vadd.s32 %v5070, %v5076
        %vm5079 = vc.u32 %v5077, %v5073
        %v5080 = vsel %vm5079, 1, 0
        %v5081 = vadd.s32 %v5077, %v5073
        %v5082 = vadd.s32 %v5078, %v5080
        %v5083 = vadd.s32 %v5082, %v5072
        %v5084 = vadd.s32 %v5083, %v5074
        %v5085 = vmul.u32 %v5040, %v5031
        %v5086 = vadd.s32 %v5062, %v5081
        %vm5087 = vc.u32 %v5062, %v5081
        %v5088 = vadd.s32 %v5084, 1
        %v5089 = vsel %vm5087, %v5088, %v5084
        %v5090 = vadd.s32 %v5085, %v5089
        %v5091 = vadd.s32 %v5090, 536870912
        %v5092 = vshrl.u32 %v5091, 30
        %v5093 = vshll.u32 %v5092, 30
        %v5094 = vsub.s32 %v5090, %v5093
        %vm5095 = vcmp.lt.s32.totalorder %v5094, 0
        %v5096 = vsub.s32 0, %v5094
        %v5097 = vsel %vm5095, %v5096, %v5094
        %v5098 = vclz %v5097
        %v5099 = vsub.s32 %v5098, 2
        %vm5100 = vcmp.gt.s32.totalorder 0, %v5099
        %v5101 = vsel %vm5100, 0, %v5099
        %v5102 = vsub.s32 32, %v5101
        %v5103 = vshll.u32 %v5094, %v5101
        %v5104 = vshrl.u32 %v5086, %v5102
        %v5105 = vor.u32 %v5103, %v5104
        %v5106 = vsub.s32 4294967266, %v5101
        %v5107 = vadd.s32 %v5106, 127
        %v5108 = vshll.u32 %v5107, 23
        %v5109 = vor.u32 4788187, %v5108
        %v5110 = vand.u32 2147483647, %v5109
        %v5112 = vcvt.s32.f32 %v5105
        %v5113 = vmul.f32 %v5112, %v5110
        %v5114 = vxor.u32 %v5113, 2147483648
        %v5115 = vsel %vm4994, %v5114, %v5113
        %v5116 = vsub.s32 4, %v5092
        %v5117 = vsel %vm4994, %v5116, %v5092
        %v5118 = vsel %vm4993, %v202, %v5115
        %v5119 = vsel %vm4993, 0, %v5117
        %v5120 = vmul.f32 %v5118, %v5118
        %v5121 = vmul.f32 %v5120, -0.001358992
        %v5122 = vadd.f32 %v5121, 0.041655596
        %v5123 = vmul.f32 %v5120, %v5122
        %v5124 = vadd.f32 %v5123, -0.4999988
        %v5125 = vmul.f32 %v5120, %v5124
        %v5126 = vadd.f32 1.0, %v5125
        %v5127 = vmul.f32 %v5118, %v5118
        %v5128 = vmul.f32 %v5127, -0.00019511016
        %v5129 = vadd.f32 %v5128, 0.008332121
        %v5130 = vmul.f32 %v5127, %v5129
        %v5131 = vadd.f32 %v5130, -0.16666654
        %v5132 = vmul.f32 %v5127, %v5131
        %v5133 = vadd.f32 %v5132, 1.0
        %v5134 = vmul.f32 %v5133, %v5118
        %vm5135 = vweird.f32 %v202
        %v5136 = vadd.s32 %v5119, 3
        %v5137 = vand.u32 %v5136, 3
        %vm5138 = vcmp.lt.s32.totalorder %v5137, 2
        %vm5139 = vcmp.eq.s32.totalorder %v5137, 0
        %v5140 = vxor.u32 %v5134, 2147483648
        %v5141 = vsel %vm5139, %v5126, %v5140
        %vm5142 = vcmp.eq.s32.totalorder %v5137, 2
        %v5143 = vxor.u32 %v5126, 2147483648
        %v5144 = vsel %vm5142, %v5143, %v5134
        %v5145 = vsel %vm5138, %v5141, %v5144
        %v5146 = vsel %vm5135, nan, %v5145
        %5147 = vst [vmem:[%s136 + $0x10] sm:$0xff] %v356
        %5148 = vst [vmem:[%s136 + $0x50] sm:$0xff] %v510
        %5149 = vst [vmem:[%s136 + $0x90] sm:$0xff] %v664
        %5150 = vst [vmem:[%s136 + $0xd0] sm:$0xff] %v818
        %5151 = vst [vmem:[%s136 + $0x110] sm:$0xff] %v972
        %5152 = vst [vmem:[%s136 + $0x150] sm:$0xff] %v1126
        %5153 = vst [vmem:[%s136 + $0x190] sm:$0xff] %v1280
        %5154 = vst [vmem:[%s136 + $0x1d0] sm:$0xff] %v1434
        %5155 = vst [vmem:[%s136 + $0x210] sm:$0xff] %v1588
        %5156 = vst [vmem:[%s136 + $0x250] sm:$0xff] %v1742
        %5157 = vst [vmem:[%s136 + $0x290] sm:$0xff] %v1896
        %5158 = vst [vmem:[%s136 + $0x2d0] sm:$0xff] %v2050
        %5159 = vst [vmem:[%s136 + $0x310] sm:$0xff] %v2204
        %5160 = vst [vmem:[%s136 + $0x350] sm:$0xff] %v2358
        %5161 = vst [vmem:[%s136 + $0x390] sm:$0xff] %v2512
        %5162 = vst [vmem:[%s136 + $0x3d0] sm:$0xff] %v2666
        %5163 = vst [vmem:[%s136 + $0x18] sm:$0xff] %v2821
        %5164 = vst [vmem:[%s136 + $0x58] sm:$0xff] %v2976
        %5165 = vst [vmem:[%s136 + $0x98] sm:$0xff] %v3131
        %5166 = vst [vmem:[%s136 + $0xd8] sm:$0xff] %v3286
        %5167 = vst [vmem:[%s136 + $0x118] sm:$0xff] %v3441
        %5168 = vst [vmem:[%s136 + $0x158] sm:$0xff] %v3596
        %5169 = vst [vmem:[%s136 + $0x198] sm:$0xff] %v3751
        %5170 = vst [vmem:[%s136 + $0x1d8] sm:$0xff] %v3906
        %5171 = vst [vmem:[%s136 + $0x218] sm:$0xff] %v4061
        %5172 = vst [vmem:[%s136 + $0x258] sm:$0xff] %v4216
        %5173 = vst [vmem:[%s136 + $0x298] sm:$0xff] %v4371
        %5174 = vst [vmem:[%s136 + $0x2d8] sm:$0xff] %v4526
        %5175 = vst [vmem:[%s136 + $0x318] sm:$0xff] %v4681
        %5176 = vst [vmem:[%s136 + $0x358] sm:$0xff] %v4836
        %5177 = vst [vmem:[%s136 + $0x398] sm:$0xff] %v4991
        %5178 = vst [vmem:[%s136 + $0x3d8] sm:$0xff] %v5146
        %v5179 = vmul.f32 %v356, %v356
        %v5180 = vmul.f32 %v510, %v510
        %v5181 = vmul.f32 %v664, %v664
        %v5182 = vmul.f32 %v818, %v818
        %v5183 = vmul.f32 %v972, %v972
        %v5184 = vmul.f32 %v1126, %v1126
        %v5185 = vmul.f32 %v1280, %v1280
        %v5186 = vmul.f32 %v1434, %v1434
        %v5187 = vmul.f32 %v1588, %v1588
        %v5188 = vmul.f32 %v1742, %v1742
        %v5189 = vmul.f32 %v1896, %v1896
        %v5190 = vmul.f32 %v2050, %v2050
        %v5191 = vmul.f32 %v2204, %v2204
        %v5192 = vmul.f32 %v2358, %v2358
        %v5193 = vmul.f32 %v2512, %v2512
        %v5194 = vmul.f32 %v2666, %v2666
        %v5195 = vmul.f32 %v2821, %v2821
        %v5196 = vmul.f32 %v2976, %v2976
        %v5197 = vmul.f32 %v3131, %v3131
        %v5198 = vmul.f32 %v3286, %v3286
        %v5199 = vmul.f32 %v3441, %v3441
        %v5200 = vmul.f32 %v3596, %v3596
        %v5201 = vmul.f32 %v3751, %v3751
        %v5202 = vmul.f32 %v3906, %v3906
        %v5203 = vmul.f32 %v4061, %v4061
        %v5204 = vmul.f32 %v4216, %v4216
        %v5205 = vmul.f32 %v4371, %v4371
        %v5206 = vmul.f32 %v4526, %v4526
        %v5207 = vmul.f32 %v4681, %v4681
        %v5208 = vmul.f32 %v4836, %v4836
        %v5209 = vmul.f32 %v4991, %v4991
        %v5210 = vmul.f32 %v5146, %v5146
        %v5211 = vsub.f32 %v5179, %v5195
        %v5212 = vsub.f32 %v5180, %v5196
        %v5213 = vsub.f32 %v5181, %v5197
        %v5214 = vsub.f32 %v5182, %v5198
        %v5215 = vsub.f32 %v5183, %v5199
        %v5216 = vsub.f32 %v5184, %v5200
        %v5217 = vsub.f32 %v5185, %v5201
        %v5218 = vsub.f32 %v5186, %v5202
        %v5219 = vsub.f32 %v5187, %v5203
        %v5220 = vsub.f32 %v5188, %v5204
        %v5221 = vsub.f32 %v5189, %v5205
        %v5222 = vsub.f32 %v5190, %v5206
        %v5223 = vsub.f32 %v5191, %v5207
        %v5224 = vsub.f32 %v5192, %v5208
        %v5225 = vsub.f32 %v5193, %v5209
        %v5226 = vsub.f32 %v5194, %v5210
        %v5227 = vmul.f32 %v2821, %v356
        %v5228 = vmul.f32 %v2976, %v510
        %v5229 = vmul.f32 %v3131, %v664
        %v5230 = vmul.f32 %v3286, %v818
        %v5231 = vmul.f32 %v3441, %v972
        %v5232 = vmul.f32 %v3596, %v1126
        %v5233 = vmul.f32 %v3751, %v1280
        %v5234 = vmul.f32 %v3906, %v1434
        %v5235 = vmul.f32 %v4061, %v1588
        %v5236 = vmul.f32 %v4216, %v1742
        %v5237 = vmul.f32 %v4371, %v1896
        %v5238 = vmul.f32 %v4526, %v2050
        %v5239 = vmul.f32 %v4681, %v2204
        %v5240 = vmul.f32 %v4836, %v2358
        %v5241 = vmul.f32 %v4991, %v2512
        %v5242 = vmul.f32 %v5146, %v2666
        %v5243 = vadd.f32 %v5227, %v5227
        %v5244 = vadd.f32 %v5228, %v5228
        %v5245 = vadd.f32 %v5229, %v5229
        %v5246 = vadd.f32 %v5230, %v5230
        %v5247 = vadd.f32 %v5231, %v5231
        %v5248 = vadd.f32 %v5232, %v5232
        %v5249 = vadd.f32 %v5233, %v5233
        %v5250 = vadd.f32 %v5234, %v5234
        %v5251 = vadd.f32 %v5235, %v5235
        %v5252 = vadd.f32 %v5236, %v5236
        %v5253 = vadd.f32 %v5237, %v5237
        %v5254 = vadd.f32 %v5238, %v5238
        %v5255 = vadd.f32 %v5239, %v5239
        %v5256 = vadd.f32 %v5240, %v5240
        %v5257 = vadd.f32 %v5241, %v5241
        %v5258 = vadd.f32 %v5242, %v5242
        %5259 = vst [vmem:[%s136 + $0x20] sm:$0xff] %v5211
        %5260 = vst [vmem:[%s136 + $0x60] sm:$0xff] %v5212
        %5261 = vst [vmem:[%s136 + $0xa0] sm:$0xff] %v5213
        %5262 = vst [vmem:[%s136 + $0xe0] sm:$0xff] %v5214
        %5263 = vst [vmem:[%s136 + $0x120] sm:$0xff] %v5215
        %5264 = vst [vmem:[%s136 + $0x160] sm:$0xff] %v5216
        %5265 = vst [vmem:[%s136 + $0x1a0] sm:$0xff] %v5217
        %5266 = vst [vmem:[%s136 + $0x1e0] sm:$0xff] %v5218
        %5267 = vst [vmem:[%s136 + $0x220] sm:$0xff] %v5219
        %5268 = vst [vmem:[%s136 + $0x260] sm:$0xff] %v5220
        %5269 = vst [vmem:[%s136 + $0x2a0] sm:$0xff] %v5221
        %5270 = vst [vmem:[%s136 + $0x2e0] sm:$0xff] %v5222
        %5271 = vst [vmem:[%s136 + $0x320] sm:$0xff] %v5223
        %5272 = vst [vmem:[%s136 + $0x360] sm:$0xff] %v5224
        %5273 = vst [vmem:[%s136 + $0x3a0] sm:$0xff] %v5225
        %5274 = vst [vmem:[%s136 + $0x3e0] sm:$0xff] %v5226
        %5275 = vst [vmem:[%s136 + $0x28] sm:$0xff] %v5243
        %5276 = vst [vmem:[%s136 + $0x68] sm:$0xff] %v5244
        %5277 = vst [vmem:[%s136 + $0xa8] sm:$0xff] %v5245
        %5278 = vst [vmem:[%s136 + $0xe8] sm:$0xff] %v5246
        %5279 = vst [vmem:[%s136 + $0x128] sm:$0xff] %v5247
        %5280 = vst [vmem:[%s136 + $0x168] sm:$0xff] %v5248
        %5281 = vst [vmem:[%s136 + $0x1a8] sm:$0xff] %v5249
        %5282 = vst [vmem:[%s136 + $0x1e8] sm:$0xff] %v5250
        %5283 = vst [vmem:[%s136 + $0x228] sm:$0xff] %v5251
        %5284 = vst [vmem:[%s136 + $0x268] sm:$0xff] %v5252
        %5285 = vst [vmem:[%s136 + $0x2a8] sm:$0xff] %v5253
        %5286 = vst [vmem:[%s136 + $0x2e8] sm:$0xff] %v5254
        %5287 = vst [vmem:[%s136 + $0x328] sm:$0xff] %v5255
        %5288 = vst [vmem:[%s136 + $0x368] sm:$0xff] %v5256
        %5289 = vst [vmem:[%s136 + $0x3a8] sm:$0xff] %v5257
        %5290 = vst [vmem:[%s136 + $0x3e8] sm:$0xff] %v5258
        %v5291 = vmul.f32 %v5211, %v356
        %v5292 = vmul.f32 %v5212, %v510
        %v5293 = vmul.f32 %v5213, %v664
        %v5294 = vmul.f32 %v5214, %v818
        %v5295 = vmul.f32 %v5215, %v972
        %v5296 = vmul.f32 %v5216, %v1126
        %v5297 = vmul.f32 %v5217, %v1280
        %v5298 = vmul.f32 %v5218, %v1434
        %v5299 = vmul.f32 %v5219, %v1588
        %v5300 = vmul.f32 %v5220, %v1742
        %v5301 = vmul.f32 %v5221, %v1896
        %v5302 = vmul.f32 %v5222, %v2050
        %v5303 = vmul.f32 %v5223, %v2204
        %v5304 = vmul.f32 %v5224, %v2358
        %v5305 = vmul.f32 %v5225, %v2512
        %v5306 = vmul.f32 %v5226, %v2666
        %v5307 = vmul.f32 %v5243, %v2821
        %v5308 = vmul.f32 %v5244, %v2976
        %v5309 = vmul.f32 %v5245, %v3131
        %v5310 = vmul.f32 %v5246, %v3286
        %v5311 = vmul.f32 %v5247, %v3441
        %v5312 = vmul.f32 %v5248, %v3596
        %v5313 = vmul.f32 %v5249, %v3751
        %v5314 = vmul.f32 %v5250, %v3906
        %v5315 = vmul.f32 %v5251, %v4061
        %v5316 = vmul.f32 %v5252, %v4216
        %v5317 = vmul.f32 %v5253, %v4371
        %v5318 = vmul.f32 %v5254, %v4526
        %v5319 = vmul.f32 %v5255, %v4681
        %v5320 = vmul.f32 %v5256, %v4836
        %v5321 = vmul.f32 %v5257, %v4991
        %v5322 = vmul.f32 %v5258, %v5146
        %v5323 = vsub.f32 %v5291, %v5307
        %v5324 = vsub.f32 %v5292, %v5308
        %v5325 = vsub.f32 %v5293, %v5309
        %v5326 = vsub.f32 %v5294, %v5310
        %v5327 = vsub.f32 %v5295, %v5311
        %v5328 = vsub.f32 %v5296, %v5312
        %v5329 = vsub.f32 %v5297, %v5313
        %v5330 = vsub.f32 %v5298, %v5314
        %v5331 = vsub.f32 %v5299, %v5315
        %v5332 = vsub.f32 %v5300, %v5316
        %v5333 = vsub.f32 %v5301, %v5317
        %v5334 = vsub.f32 %v5302, %v5318
        %v5335 = vsub.f32 %v5303, %v5319
        %v5336 = vsub.f32 %v5304, %v5320
        %v5337 = vsub.f32 %v5305, %v5321
        %v5338 = vsub.f32 %v5306, %v5322
        %v5339 = vmul.f32 %v5243, %v356
        %v5340 = vmul.f32 %v5244, %v510
        %v5341 = vmul.f32 %v5245, %v664
        %v5342 = vmul.f32 %v5246, %v818
        %v5343 = vmul.f32 %v5247, %v972
        %v5344 = vmul.f32 %v5248, %v1126
        %v5345 = vmul.f32 %v5249, %v1280
        %v5346 = vmul.f32 %v5250, %v1434
        %v5347 = vmul.f32 %v5251, %v1588
        %v5348 = vmul.f32 %v5252, %v1742
        %v5349 = vmul.f32 %v5253, %v1896
        %v5350 = vmul.f32 %v5254, %v2050
        %v5351 = vmul.f32 %v5255, %v2204
        %v5352 = vmul.f32 %v5256, %v2358
        %v5353 = vmul.f32 %v5257, %v2512
        %v5354 = vmul.f32 %v5258, %v2666
        %v5355 = vmul.f32 %v5211, %v2821
        %v5356 = vmul.f32 %v5212, %v2976
        %v5357 = vmul.f32 %v5213, %v3131
        %v5358 = vmul.f32 %v5214, %v3286
        %v5359 = vmul.f32 %v5215, %v3441
        %v5360 = vmul.f32 %v5216, %v3596
        %v5361 = vmul.f32 %v5217, %v3751
        %v5362 = vmul.f32 %v5218, %v3906
        %v5363 = vmul.f32 %v5219, %v4061
        %v5364 = vmul.f32 %v5220, %v4216
        %v5365 = vmul.f32 %v5221, %v4371
        %v5366 = vmul.f32 %v5222, %v4526
        %v5367 = vmul.f32 %v5223, %v4681
        %v5368 = vmul.f32 %v5224, %v4836
        %v5369 = vmul.f32 %v5225, %v4991
        %v5370 = vmul.f32 %v5226, %v5146
        %v5371 = vadd.f32 %v5339, %v5355
        %v5372 = vadd.f32 %v5340, %v5356
        %v5373 = vadd.f32 %v5341, %v5357
        %v5374 = vadd.f32 %v5342, %v5358
        %v5375 = vadd.f32 %v5343, %v5359
        %v5376 = vadd.f32 %v5344, %v5360
        %v5377 = vadd.f32 %v5345, %v5361
        %v5378 = vadd.f32 %v5346, %v5362
        %v5379 = vadd.f32 %v5347, %v5363
        %v5380 = vadd.f32 %v5348, %v5364
        %v5381 = vadd.f32 %v5349, %v5365
        %v5382 = vadd.f32 %v5350, %v5366
        %v5383 = vadd.f32 %v5351, %v5367
        %v5384 = vadd.f32 %v5352, %v5368
        %v5385 = vadd.f32 %v5353, %v5369
        %v5386 = vadd.f32 %v5354, %v5370
        %5387 = vst [vmem:[%s136 + $0x30] sm:$0xff] %v5323
        %5388 = vst [vmem:[%s136 + $0x70] sm:$0xff] %v5324
        %5389 = vst [vmem:[%s136 + $0xb0] sm:$0xff] %v5325
        %5390 = vst [vmem:[%s136 + $0xf0] sm:$0xff] %v5326
        %5391 = vst [vmem:[%s136 + $0x130] sm:$0xff] %v5327
        %5392 = vst [vmem:[%s136 + $0x170] sm:$0xff] %v5328
        %5393 = vst [vmem:[%s136 + $0x1b0] sm:$0xff] %v5329
        %5394 = vst [vmem:[%s136 + $0x1f0] sm:$0xff] %v5330
        %5395 = vst [vmem:[%s136 + $0x230] sm:$0xff] %v5331
        %5396 = vst [vmem:[%s136 + $0x270] sm:$0xff] %v5332
        %5397 = vst [vmem:[%s136 + $0x2b0] sm:$0xff] %v5333
        %5398 = vst [vmem:[%s136 + $0x2f0] sm:$0xff] %v5334
        %5399 = vst [vmem:[%s136 + $0x330] sm:$0xff] %v5335
        %5400 = vst [vmem:[%s136 + $0x370] sm:$0xff] %v5336
        %5401 = vst [vmem:[%s136 + $0x3b0] sm:$0xff] %v5337
        %5402 = vst [vmem:[%s136 + $0x3f0] sm:$0xff] %v5338
        %5403 = vst [vmem:[%s136 + $0x38] sm:$0xff] %v5371
        %5404 = vst [vmem:[%s136 + $0x78] sm:$0xff] %v5372
        %5405 = vst [vmem:[%s136 + $0xb8] sm:$0xff] %v5373
        %5406 = vst [vmem:[%s136 + $0xf8] sm:$0xff] %v5374
        %5407 = vst [vmem:[%s136 + $0x138] sm:$0xff] %v5375
        %5408 = vst [vmem:[%s136 + $0x178] sm:$0xff] %v5376
        %5409 = vst [vmem:[%s136 + $0x1b8] sm:$0xff] %v5377
        %5410 = vst [vmem:[%s136 + $0x1f8] sm:$0xff] %v5378
        %5411 = vst [vmem:[%s136 + $0x238] sm:$0xff] %v5379
        %5412 = vst [vmem:[%s136 + $0x278] sm:$0xff] %v5380
        %5413 = vst [vmem:[%s136 + $0x2b8] sm:$0xff] %v5381
        %5414 = vst [vmem:[%s136 + $0x2f8] sm:$0xff] %v5382
        %5415 = vst [vmem:[%s136 + $0x338] sm:$0xff] %v5383
        %5416 = vst [vmem:[%s136 + $0x378] sm:$0xff] %v5384
        %5417 = vst [vmem:[%s136 + $0x3b8] sm:$0xff] %v5385
        %5418 = vst [vmem:[%s136 + $0x3f8] sm:$0xff] %v5386
        %s5419 = sand.u32 %s52, 1
        %s5420 = scalar_lea.sflag [#allocation4], %s5419
        %s5421 = sand.u32 %s52, 1
        %s5422 = smul.addr %s5421, 1024
        %s5423 = scalar_lea.vmem [#allocation5], %s5422
        // Predicated region
        $region29: #{tpu_custom_call.1} parent=23 // pred_check
          %p5424 = pneg %p62
        $region30: #{tpu_custom_call.1} parent=23 // pred_check_branch
          %5426 = sbr.rel (%p5424) target = $region32
        $region31: #{tpu_custom_call.1} parent=23 // pred_region
          %s5427 = smul.u32 16, %s18
          %5429 = vsyncadd %s5420, 0
          %s5430 = smul.addr %s5427, 8
          %s5431 = smul.addr %s5430, 8
          %s5432 = scalar_lea.hbm %s1, %s5431
          %s5433 = sshll.u32 %s5423, 4
          %s5434 = int_to_ptr.vmem [resolvable:$true] %s5433
          %s5435 = sshll.u32 %s5432, 4
          %s5436 = int_to_ptr.hbm [resolvable:$true] %s5435
          %5441 = dma.vmem_to_hbm [thread:$0]  %s5434, 16384, %s5436, %s5420, 1024, 1024, 64
        $region32: #{tpu_custom_call.1} parent=23 // pred_fallthru
          _
      $region24: #{tpu_custom_call.1} parent=5 // pred_fallthru
        _
      %p5442 = scmp.le.s32.totalorder 2, %s13
      // Predicated region
      $region33: #{tpu_custom_call.1} parent=5 // pred_check
        %p5443 = pneg %p5442
      $region34: #{tpu_custom_call.1} parent=5 // pred_check_branch
        %5445 = sbr.rel (%p5443) target = $region36
      $region35: #{tpu_custom_call.1} parent=5 // pred_region
        %s5446 = ssub.s32 %s13, 2
        // Predicated region
        $region37: #{tpu_custom_call.1} parent=35 // pred_check
          %p5447 = pneg %p68
        $region38: #{tpu_custom_call.1} parent=35 // pred_check_branch
          %5449 = sbr.rel (%p5447) target = $region40
        $region39: #{tpu_custom_call.1} parent=35 // pred_region
          %s5450 = sand.u32 %s53, 1
          %s5451 = scalar_lea.sflag [#allocation4], %s5450
          %s5452 = sand.u32 %s53, 1
          %s5453 = smul.addr %s5452, 1024
          %s5454 = scalar_lea.vmem [#allocation5], %s5453
          %5456 = dma.done %s5451, 16384
        $region40: #{tpu_custom_call.1} parent=35 // pred_fallthru
          _
      $region36: #{tpu_custom_call.1} parent=5 // pred_fallthru
        _
    $region6: #{tpu_custom_call.1} parent=1 // loop_footer
      %s17 = sadd.s32 1, %s13
    $region7: #{tpu_custom_call.1} parent=1 // loop_footer_branch
      %12 = sbr.rel target = $region3
    $region8: #{tpu_custom_call.1} parent=1 // loop_exit
      _
    %5457 = vsyncpa [#allocation3], 1
    %s5458 = scalar_lea.sflag [#allocation3], 1
    %5459 = vsyncpa %s5458, 1
    %5460 = vsyncpa [#allocation4], 1
    %s5461 = scalar_lea.sflag [#allocation4], 1
    %5462 = vsyncpa %s5461, 1

</llo_original>
